<compile_context>
chip_gen: v7x
topology: tpu7x:2x2x1
jax: 0.10.0
libtpu: 0.0.40
codegen_flags: <defaults>
</compile_context>

<pallas_src>
import jax
import jax.numpy as jnp
from jax import lax
from jax.experimental import pallas as pl
from jax.experimental.pallas import tpu as pltpu

_EPS = 1e-8  # PyTorch F.cosine_similarity default eps


def _round_up(v, m):
    return -(-v // m) * m


def _tile_partials(xs, xd, w_row, thrd):
    """Per-tile masked hinge sum and kept count.

    xs, xd: (te, D) float32 endpoint features
    w_row:  (1, te) float32 edge weights (lane-dense; padded tail is 0)
    thrd:   scalar float32 threshold
    returns (tot, cnt), each (1, 1) float32
    """
    dots = jnp.sum(xs * xd, axis=-1, keepdims=True)           # (te, 1)
    ns2 = jnp.sum(xs * xs, axis=-1, keepdims=True)            # (te, 1)
    nd2 = jnp.sum(xd * xd, axis=-1, keepdims=True)            # (te, 1)
    # torch: dot / max(|a|*|b|, eps)  ==  dot * rsqrt(max(|a|^2*|b|^2, eps^2))
    inv = lax.rsqrt(jnp.maximum(ns2 * nd2, _EPS * _EPS))      # EUP slot
    hinge = jnp.maximum(thrd - dots * inv, 0.0)               # (te, 1)
    keep = (w_row > 0.0).astype(jnp.float32)                  # (1, te) lane-dense
    # Masked reduction as a (1,te)x(te,1) dot on the idle MXU (HIGHEST keeps f32).
    tot = lax.dot_general(keep, hinge, (((1,), (0,)), ((), ())),
                          precision=lax.Precision.HIGHEST,
                          preferred_element_type=jnp.float32)  # (1, 1)
    cnt = jnp.sum(keep, axis=-1, keepdims=True)                # (1, 1)
    return tot, cnt


def _fused_gather_kernel(thrd_ref, src_ref, dst_ref, w_ref, x_ref, tot_ref, cnt_ref):
    # thrd_ref: SMEM (1,)       f32 threshold
    # src_ref:  VMEM (1,1,te)   i32 source-node ids (lane-dense)
    # dst_ref:  VMEM (1,1,te)   i32 destination-node ids
    # w_ref:    VMEM (1,1,te)   f32 edge weights (padded tail = 0)
    # x_ref:    VMEM (N,D)      node features, resident across the whole grid
    # tot_ref / cnt_ref: VMEM (1,1,1) f32 per-core accumulators (output blocks)
    i = pl.program_id(1)

    @pl.when(i == 0)
    def _init():
        tot_ref[...] = jnp.zeros_like(tot_ref)
        cnt_ref[...] = jnp.zeros_like(cnt_ref)

    te = src_ref.shape[-1]
    n_nodes = x_ref.shape[0]
    x = x_ref[...]                                             # (N, D) native dtype

    ids_s = src_ref[...].reshape(te, 1)                        # small lane->sublane relayout
    ids_d = dst_ref[...].reshape(te, 1)
    node_iota = lax.broadcasted_iota(jnp.int32, (te, n_nodes), 1)
    oh_s = (ids_s == node_iota).astype(x.dtype)                # (te, N) one-hot
    oh_d = (ids_d == node_iota).astype(x.dtype)

    def gather(oh):
        # Exact row gather: one-hot matmul on the MXU, f32 accumulate.
        return lax.dot_general(oh, x, (((1,), (0,)), ((), ())),
                               precision=lax.Precision.HIGHEST,
                               preferred_element_type=jnp.float32)

    xs = gather(oh_s)                                          # (te, D) f32
    xd = gather(oh_d)

    tot, cnt = _tile_partials(xs, xd, w_ref[...].reshape(1, te), thrd_ref[0])
    tot_ref[...] += tot.reshape(1, 1, 1)
    cnt_ref[...] += cnt.reshape(1, 1, 1)


def _streamed_kernel(thrd_ref, w_ref, xs_ref, xd_ref, tot_ref, cnt_ref):
    # Fallback path: xs/xd were gathered by XLA (indices padded beforehand).
    i = pl.program_id(1)

    @pl.when(i == 0)
    def _init():
        tot_ref[...] = jnp.zeros_like(tot_ref)
        cnt_ref[...] = jnp.zeros_like(cnt_ref)

    te = w_ref.shape[-1]
    xs = xs_ref[...].astype(jnp.float32)                       # (te, D)
    xd = xd_ref[...].astype(jnp.float32)
    tot, cnt = _tile_partials(xs, xd, w_ref[...].reshape(1, te), thrd_ref[0])
    tot_ref[...] += tot.reshape(1, 1, 1)
    cnt_ref[...] += cnt.reshape(1, 1, 1)


def homo_loss(trigger_edge_index, trigger_edge_weights, x, thrd, *,
              tile_edges=None, fused=None, num_core_splits=2):
    """JAX/Pallas equivalent of HomoLoss.forward.

    Returns NaN when no edge has positive weight (matches torch.mean of empty).
    """
    src = jnp.asarray(trigger_edge_index[0], jnp.int32)
    dst = jnp.asarray(trigger_edge_index[1], jnp.int32)
    w = jnp.asarray(trigger_edge_weights, jnp.float32)
    num_edges = src.shape[0]
    n_nodes, feat_dim = x.shape
    itemsize = jnp.dtype(x.dtype).itemsize

    x_buf = n_nodes * feat_dim * itemsize
    # Conservative residency threshold so the fused path is safe even on v7x
    # (64 MiB VMEM / 32 MiB default scoped); v5e/v6e have plenty of headroom.
    if fused is None:
        fused = x_buf <= (6 << 20)

    nc = max(1, int(num_core_splits))          # 2 TensorCores on v7x; serial on v5e/v6e

    per_edge = 2 * n_nodes * 4 + 4 * feat_dim * 4 + 64   # one-hots + gathered tiles
    budget = (24 << 20) - 2 * x_buf
    if fused and budget < 128 * per_edge:
        fused = False                                     # not enough VMEM headroom

    if fused:
        te_raw = budget // per_edge
        te_cap = 2048
    else:
        # ~1.5 MiB per streamed (te, D) feature buffer (double-buffered x2 operands)
        te_raw = (3 << 20) // (2 * max(feat_dim, 1) * itemsize)
        te_cap = 8192

    needed = _round_up(max(1, -(-num_edges // nc)), 128)  # don't over-pad tiny E
    te = min(te_cap, te_raw, needed)
    te = max(128, (te // 128) * 128)                      # lane-dense tiles
    if tile_edges is not None:
        te = max(128, (int(tile_edges) // 128) * 128)

    steps = max(1, -(-num_edges // (nc * te)))
    e_pad = nc * steps * te
    pad = e_pad - num_edges
    if pad:
        # Pad the cheap 1-D arrays only (index 0 is always valid, weight 0 masks).
        src = jnp.pad(src, (0, pad))
        dst = jnp.pad(dst, (0, pad))
        w = jnp.pad(w, (0, pad))
    n_tiles = nc * steps
    src_b = src.reshape(n_tiles, 1, te)
    dst_b = dst.reshape(n_tiles, 1, te)
    w_b = w.reshape(n_tiles, 1, te)
    thrd_arr = jnp.asarray([thrd], dtype=jnp.float32)

    edge_spec = pl.BlockSpec((1, 1, te), lambda c, i: (c * steps + i, 0, 0))
    out_shape = (jax.ShapeDtypeStruct((nc, 1, 1), jnp.float32),
                 jax.ShapeDtypeStruct((nc, 1, 1), jnp.float32))
    out_specs = (pl.BlockSpec((1, 1, 1), lambda c, i: (c, 0, 0)),
                 pl.BlockSpec((1, 1, 1), lambda c, i: (c, 0, 0)))
    small_bytes = 3 * 2 * te * 4                          # lane-dense idx/idx/w, 2 buffers

    if fused:
        vmem_limit = int(min(max(2 * x_buf + te * per_edge + small_bytes + (4 << 20),
                                 16 << 20), 32 << 20))
        tot, cnt = pl.pallas_call(
            _fused_gather_kernel,
            grid=(nc, steps),
            out_shape=out_shape,
            in_specs=[
                pl.BlockSpec(memory_space=pltpu.MemorySpace.SMEM),   # thrd scalar
                edge_spec,                                            # src ids
                edge_spec,                                            # dst ids
                edge_spec,                                            # weights
                pl.BlockSpec((n_nodes, feat_dim), lambda c, i: (0, 0)),  # resident x
            ],
            out_specs=out_specs,
            compiler_params=pltpu.CompilerParams(
                dimension_semantics=("parallel", "arbitrary"),
                vmem_limit_bytes=vmem_limit),
        )(thrd_arr, src_b, dst_b, w_b, x)
    else:
        # XLA gather stays outside the kernel, but on pre-padded indices so no
        # extra (E, D) padding pass over the gathered features.
        xs = jnp.take(x, src, axis=0)                      # (e_pad, D) native dtype
        xd = jnp.take(x, dst, axis=0)
        feat_bytes = 2 * 2 * te * feat_dim * itemsize
        cast_bytes = 2 * te * feat_dim * 4 if itemsize < 4 else 0
        vmem_limit = int(min(max(feat_bytes + cast_bytes + small_bytes + (4 << 20),
                                 16 << 20), 32 << 20))
        tot, cnt = pl.pallas_call(
            _streamed_kernel,
            grid=(nc, steps),
            out_shape=out_shape,
            in_specs=[
                pl.BlockSpec(memory_space=pltpu.MemorySpace.SMEM),           # thrd
                edge_spec,                                                    # weights
                pl.BlockSpec((te, feat_dim), lambda c, i: (c * steps + i, 0)),  # x[src]
                pl.BlockSpec((te, feat_dim), lambda c, i: (c * steps + i, 0)),  # x[dst]
            ],
            out_specs=out_specs,
            compiler_params=pltpu.CompilerParams(
                dimension_semantics=("parallel", "arbitrary"),
                vmem_limit_bytes=vmem_limit),
        )(thrd_arr, w_b, xs, xd)

    total = jnp.sum(tot[:, 0, 0])
    count = jnp.sum(cnt[:, 0, 0])
    return total / count


def _reference(trigger_edge_index, trigger_edge_weights, x, thrd):
    """Torch-faithful reference (F.cosine_similarity clamps the norm product)."""
    src = trigger_edge_index[0]
    dst = trigger_edge_index[1]
    a = x[src].astype(jnp.float32)
    b = x[dst].astype(jnp.float32)
    dots = jnp.sum(a * b, axis=-1)
    denom = jnp.maximum(jnp.linalg.norm(a, axis=-1) * jnp.linalg.norm(b, axis=-1),
                        _EPS)
    sims = dots / denom
    hinge = jnp.maximum(thrd - sims, 0.0)
    m = (trigger_edge_weights > 0.0).astype(jnp.float32)
    return jnp.sum(hinge * m) / jnp.sum(m)


if __name__ == "__main__":
    keys = jax.random.split(jax.random.PRNGKey(0), 6)

    # --- case 1: small graph, single tile, fused in-kernel gather ---
    N, D, E = 16, 32, 8
    x = jax.random.normal(keys[0], (N, D), dtype=jnp.float32)
    edge_index = jax.random.randint(keys[1], (2, E), 0, N, dtype=jnp.int32)
    edge_w = jax.random.uniform(keys[2], (E,), jnp.float32, minval=-0.5, maxval=1.0)
    edge_w = edge_w.at[0].set(0.7)             # guarantee at least one kept edge
    thrd = 0.5

    loss = jax.block_until_ready(homo_loss(edge_index, edge_w, x, thrd))
    ref = _reference(edge_index, edge_w, x, thrd)
    assert jnp.allclose(loss, ref, rtol=1e-5, atol=1e-6), (loss, ref)

    # --- case 2: multi-tile / multi-step fused path (grid accumulation, padding,
    #             2-way core split) ---
    N2, D2, E2 = 64, 64, 700
    x2 = jax.random.normal(keys[3], (N2, D2), dtype=jnp.float32)
    edge_index2 = jax.random.randint(keys[4], (2, E2), 0, N2, dtype=jnp.int32)
    edge_w2 = jax.random.uniform(keys[5], (E2,), jnp.float32, minval=-0.5, maxval=1.0)
    edge_w2 = edge_w2.at[0].set(0.9)

    loss2 = jax.block_until_ready(homo_loss(edge_index2, edge_w2, x2, 0.3,
                                            tile_edges=128))
    ref2 = _reference(edge_index2, edge_w2, x2, 0.3)
    assert jnp.allclose(loss2, ref2, rtol=1e-5, atol=1e-6), (loss2, ref2)

    # --- case 3: streamed fallback path (XLA gather on pre-padded indices),
    #             bf16 features exercising the in-kernel upcast ---
    x3 = x2.astype(jnp.bfloat16)
    loss3 = jax.block_until_ready(homo_loss(edge_index2, edge_w2, x3, 0.3,
                                            fused=False, tile_edges=128))
    ref3 = _reference(edge_index2, edge_w2, x3, 0.3)
    assert jnp.allclose(loss3, ref3, rtol=1e-5, atol=1e-6), (loss3, ref3)

    print("KERNEL_OK")
</pallas_src>

<mosaic_0001>
module attributes {stable_mosaic.version = 11 : i64} {
  func.func @_fused_gather_kernel(%arg0: i32, %arg1: i32, %arg2: memref<1xf32, #tpu.memory_space<smem>>, %arg3: memref<1x1x128xi32, #tpu.memory_space<vmem>>, %arg4: memref<1x1x128xi32, #tpu.memory_space<vmem>>, %arg5: memref<1x1x128xf32, #tpu.memory_space<vmem>>, %arg6: memref<16x32xf32, #tpu.memory_space<vmem>>, %arg7: memref<1x1x1xf32, #tpu.memory_space<vmem>>, %arg8: memref<1x1x1xf32, #tpu.memory_space<vmem>>) attributes {dimension_semantics = [#tpu.dimension_semantics<parallel>, #tpu.dimension_semantics<arbitrary>], iteration_bounds = array<i64: 2, 1>, scalar_prefetch = 0 : i64, scratch_operands = 0 : i64, tpu.core_type = #tpu.core_type<tc>, window_params = [{transform_indices = @transform_0, window_bounds = array<i64: 1>}, {transform_indices = @transform_1, window_bounds = array<i64: 1, 1, 128>}, {transform_indices = @transform_2, window_bounds = array<i64: 1, 1, 128>}, {transform_indices = @transform_3, window_bounds = array<i64: 1, 1, 128>}, {pipeline_mode = #tpu.pipeline_mode<synchronous>, transform_indices = @transform_4, window_bounds = array<i64: 16, 32>}, {transform_indices = @transform_5, window_bounds = array<i64: 1, 1, 1>}, {transform_indices = @transform_6, window_bounds = array<i64: 1, 1, 1>}]} {
    %c0_i32 = arith.constant 0 : i32
    %0 = arith.cmpi eq, %arg1, %c0_i32 : i32
    %1 = arith.extui %0 : i1 to i32
    %c0_i32_0 = arith.constant 0 : i32
    %2 = arith.cmpi ne, %1, %c0_i32_0 : i32
    scf.if %2 {
      %cst_33 = arith.constant 0.000000e+00 : f32
      %55 = vector.broadcast %cst_33 : f32 to vector<1x1x1xf32>
      %c0_34 = arith.constant 0 : index
      %c0_35 = arith.constant 0 : index
      %c0_36 = arith.constant 0 : index
      %56 = vector.load %arg7[%c0_34, %c0_35, %c0_36] : memref<1x1x1xf32, #tpu.memory_space<vmem>>, vector<1x1x1xf32>
      tpu.vector_store %arg7[%c0_34, %c0_35, %c0_36], %55 {strides = array<i32>} : memref<1x1x1xf32, #tpu.memory_space<vmem>>, vector<1x1x1xf32>,
      %cst_37 = arith.constant 0.000000e+00 : f32
      %57 = vector.broadcast %cst_37 : f32 to vector<1x1x1xf32>
      %c0_38 = arith.constant 0 : index
      %c0_39 = arith.constant 0 : index
      %c0_40 = arith.constant 0 : index
      %58 = vector.load %arg8[%c0_38, %c0_39, %c0_40] : memref<1x1x1xf32, #tpu.memory_space<vmem>>, vector<1x1x1xf32>
      tpu.vector_store %arg8[%c0_38, %c0_39, %c0_40], %57 {strides = array<i32>} : memref<1x1x1xf32, #tpu.memory_space<vmem>>, vector<1x1x1xf32>,
    } else {
    }
    %c0 = arith.constant 0 : index
    %c0_1 = arith.constant 0 : index
    %3 = vector.load %arg6[%c0, %c0_1] : memref<16x32xf32, #tpu.memory_space<vmem>>, vector<16x32xf32>
    %c0_2 = arith.constant 0 : index
    %c0_3 = arith.constant 0 : index
    %c0_4 = arith.constant 0 : index
    %4 = vector.load %arg3[%c0_2, %c0_3, %c0_4] : memref<1x1x128xi32, #tpu.memory_space<vmem>>, vector<1x1x128xi32>
    %5 = vector.shape_cast %4 : vector<1x1x128xi32> to vector<128x1xi32>
    %c0_5 = arith.constant 0 : index
    %c0_6 = arith.constant 0 : index
    %c0_7 = arith.constant 0 : index
    %6 = vector.load %arg4[%c0_5, %c0_6, %c0_7] : memref<1x1x128xi32, #tpu.memory_space<vmem>>, vector<1x1x128xi32>
    %7 = vector.shape_cast %6 : vector<1x1x128xi32> to vector<128x1xi32>
    %8 = tpu.iota {dimensions = array<i32: 1>} : vector<128x16xi32>
    %9 = vector.broadcast %5 : vector<128x1xi32> to vector<128x16xi32>
    %10 = arith.cmpi eq, %9, %8 : vector<128x16xi32>
    %11 = arith.extui %10 : vector<128x16xi1> to vector<128x16xi32>
    %12 = arith.sitofp %11 : vector<128x16xi32> to vector<128x16xf32>
    %13 = vector.broadcast %7 : vector<128x1xi32> to vector<128x16xi32>
    %14 = arith.cmpi eq, %13, %8 : vector<128x16xi32>
    %15 = arith.extui %14 : vector<128x16xi1> to vector<128x16xi32>
    %16 = arith.sitofp %15 : vector<128x16xi32> to vector<128x16xf32>
    %cst = arith.constant dense<0.000000e+00> : vector<128x32xf32>
    %17 = tpu.matmul %12, %3, %cst {dimension_numbers = #tpu.dot_dimension_numbers<[1], [0], [0], [1], [0, 0, 1, 1], [], []>, precision = #tpu.contract_precision<fp32>} : vector<128x16xf32>, vector<16x32xf32>, vector<128x32xf32> -> vector<128x32xf32>
    %cst_8 = arith.constant dense<0.000000e+00> : vector<128x32xf32>
    %18 = tpu.matmul %16, %3, %cst_8 {dimension_numbers = #tpu.dot_dimension_numbers<[1], [0], [0], [1], [0, 0, 1, 1], [], []>, precision = #tpu.contract_precision<fp32>} : vector<128x16xf32>, vector<16x32xf32>, vector<128x32xf32> -> vector<128x32xf32>
    %c0_9 = arith.constant 0 : index
    %c0_10 = arith.constant 0 : index
    %c0_11 = arith.constant 0 : index
    %19 = vector.load %arg5[%c0_9, %c0_10, %c0_11] : memref<1x1x128xf32, #tpu.memory_space<vmem>>, vector<1x1x128xf32>
    %20 = vector.shape_cast %19 : vector<1x1x128xf32> to vector<1x128xf32>
    %c0_12 = arith.constant 0 : index
    %21 = memref.load %arg2[%c0_12] : memref<1xf32, #tpu.memory_space<smem>>
    %22 = arith.mulf %17, %18 : vector<128x32xf32>
    %cst_13 = arith.constant dense<0.000000e+00> : vector<128xf32>
    %23 = vector.multi_reduction <add>, %22, %cst_13 [1] : vector<128x32xf32> to vector<128xf32>
    %24 = vector.shape_cast %23 : vector<128xf32> to vector<128x1xf32>
    %25 = arith.mulf %17, %17 : vector<128x32xf32>
    %cst_14 = arith.constant dense<0.000000e+00> : vector<128xf32>
    %26 = vector.multi_reduction <add>, %25, %cst_14 [1] : vector<128x32xf32> to vector<128xf32>
    %27 = vector.shape_cast %26 : vector<128xf32> to vector<128x1xf32>
    %28 = arith.mulf %18, %18 : vector<128x32xf32>
    %cst_15 = arith.constant dense<0.000000e+00> : vector<128xf32>
    %29 = vector.multi_reduction <add>, %28, %cst_15 [1] : vector<128x32xf32> to vector<128xf32>
    %30 = vector.shape_cast %29 : vector<128xf32> to vector<128x1xf32>
    %31 = arith.mulf %27, %30 : vector<128x1xf32>
    %cst_16 = arith.constant 1.000000e-16 : f32
    %32 = vector.broadcast %cst_16 : f32 to vector<128x1xf32>
    %33 = arith.maximumf %31, %32 : vector<128x1xf32>
    %34 = math.rsqrt %33 : vector<128x1xf32>
    %35 = arith.mulf %24, %34 : vector<128x1xf32>
    %36 = vector.broadcast %21 : f32 to vector<128x1xf32>
    %37 = arith.subf %36, %35 : vector<128x1xf32>
    %cst_17 = arith.constant 0.000000e+00 : f32
    %38 = vector.broadcast %cst_17 : f32 to vector<128x1xf32>
    %39 = arith.maximumf %37, %38 : vector<128x1xf32>
    %cst_18 = arith.constant 0.000000e+00 : f32
    %40 = vector.broadcast %cst_18 : f32 to vector<1x128xf32>
    %41 = arith.cmpf ogt, %20, %40 : vector<1x128xf32>
    %42 = arith.extui %41 : vector<1x128xi1> to vector<1x128xi32>
    %43 = arith.sitofp %42 : vector<1x128xi32> to vector<1x128xf32>
    %cst_19 = arith.constant dense<0.000000e+00> : vector<1x1xf32>
    %44 = tpu.matmul %43, %39, %cst_19 {dimension_numbers = #tpu.dot_dimension_numbers<[1], [0], [0], [1], [0, 0, 1, 1], [], []>, precision = #tpu.contract_precision<fp32>} : vector<1x128xf32>, vector<128x1xf32>, vector<1x1xf32> -> vector<1x1xf32>
    %cst_20 = arith.constant dense<0.000000e+00> : vector<1xf32>
    %45 = vector.multi_reduction <add>, %43, %cst_20 [1] : vector<1x128xf32> to vector<1xf32>
    %46 = vector.shape_cast %45 : vector<1xf32> to vector<1x1xf32>
    %c0_21 = arith.constant 0 : index
    %c0_22 = arith.constant 0 : index
    %c0_23 = arith.constant 0 : index
    %47 = vector.load %arg7[%c0_21, %c0_22, %c0_23] : memref<1x1x1xf32, #tpu.memory_space<vmem>>, vector<1x1x1xf32>
    %48 = vector.shape_cast %44 : vector<1x1xf32> to vector<1x1x1xf32>
    %49 = arith.addf %47, %48 : vector<1x1x1xf32>
    %c0_24 = arith.constant 0 : index
    %c0_25 = arith.constant 0 : index
    %c0_26 = arith.constant 0 : index
    %50 = vector.load %arg7[%c0_24, %c0_25, %c0_26] : memref<1x1x1xf32, #tpu.memory_space<vmem>>, vector<1x1x1xf32>
    tpu.vector_store %arg7[%c0_24, %c0_25, %c0_26], %49 {strides = array<i32>} : memref<1x1x1xf32, #tpu.memory_space<vmem>>, vector<1x1x1xf32>,
    %c0_27 = arith.constant 0 : index
    %c0_28 = arith.constant 0 : index
    %c0_29 = arith.constant 0 : index
    %51 = vector.load %arg8[%c0_27, %c0_28, %c0_29] : memref<1x1x1xf32, #tpu.memory_space<vmem>>, vector<1x1x1xf32>
    %52 = vector.shape_cast %46 : vector<1x1xf32> to vector<1x1x1xf32>
    %53 = arith.addf %51, %52 : vector<1x1x1xf32>
    %c0_30 = arith.constant 0 : index
    %c0_31 = arith.constant 0 : index
    %c0_32 = arith.constant 0 : index
    %54 = vector.load %arg8[%c0_30, %c0_31, %c0_32] : memref<1x1x1xf32, #tpu.memory_space<vmem>>, vector<1x1x1xf32>
    tpu.vector_store %arg8[%c0_30, %c0_31, %c0_32], %53 {strides = array<i32>} : memref<1x1x1xf32, #tpu.memory_space<vmem>>, vector<1x1x1xf32>,
    return
  }
  func.func @transform_0(%arg0: i32, %arg1: i32) -> i32 {
    %c0_i32 = arith.constant 0 : i32
    %c0_i32_0 = arith.constant 0 : i32
    return %c0_i32 : i32
  }
  func.func @transform_1(%arg0: i32, %arg1: i32) -> (i32, i32, i32) {
    %c1_i32 = arith.constant 1 : i32
    %0 = arith.muli %arg0, %c1_i32 : i32
    %1 = arith.addi %0, %arg1 : i32
    %c0_i32 = arith.constant 0 : i32
    %c0_i32_0 = arith.constant 0 : i32
    %c0_i32_1 = arith.constant 0 : i32
    return %1, %c0_i32, %c0_i32_0 : i32, i32, i32
  }
  func.func @transform_2(%arg0: i32, %arg1: i32) -> (i32, i32, i32) {
    %c1_i32 = arith.constant 1 : i32
    %0 = arith.muli %arg0, %c1_i32 : i32
    %1 = arith.addi %0, %arg1 : i32
    %c0_i32 = arith.constant 0 : i32
    %c0_i32_0 = arith.constant 0 : i32
    %c0_i32_1 = arith.constant 0 : i32
    return %1, %c0_i32, %c0_i32_0 : i32, i32, i32
  }
  func.func @transform_3(%arg0: i32, %arg1: i32) -> (i32, i32, i32) {
    %c1_i32 = arith.constant 1 : i32
    %0 = arith.muli %arg0, %c1_i32 : i32
    %1 = arith.addi %0, %arg1 : i32
    %c0_i32 = arith.constant 0 : i32
    %c0_i32_0 = arith.constant 0 : i32
    %c0_i32_1 = arith.constant 0 : i32
    return %1, %c0_i32, %c0_i32_0 : i32, i32, i32
  }
  func.func @transform_4(%arg0: i32, %arg1: i32) -> (i32, i32) {
    %c0_i32 = arith.constant 0 : i32
    %c0_i32_0 = arith.constant 0 : i32
    %c0_i32_1 = arith.constant 0 : i32
    return %c0_i32, %c0_i32_0 : i32, i32
  }
  func.func @transform_5(%arg0: i32, %arg1: i32) -> (i32, i32, i32) {
    %c0_i32 = arith.constant 0 : i32
    %c0_i32_0 = arith.constant 0 : i32
    %c0_i32_1 = arith.constant 0 : i32
    return %arg0, %c0_i32, %c0_i32_0 : i32, i32, i32
  }
  func.func @transform_6(%arg0: i32, %arg1: i32) -> (i32, i32, i32) {
    %c0_i32 = arith.constant 0 : i32
    %c0_i32_0 = arith.constant 0 : i32
    %c0_i32_1 = arith.constant 0 : i32
    return %arg0, %c0_i32, %c0_i32_0 : i32, i32, i32
  }
}

</mosaic_0001>

<llo_original>
// kernel: tpu_custom_call.1
$region0: #{tpu_custom_call.1}
  #allocation0 [shape = 'u32[]', space=smem, size = 0x4, offset = 0x4, fixed_abs, tag = 'smem constant byte address 0x4 - core index']
  #allocation1 [shape = 'u32[144,128]{1,0:T(1,128)}', space=vmem, size = 0x12000, scoped, tag = 'internal scratch']
  #allocation2 [shape = 'f32[1]{0:T(128)S(6)}', space=smem, size = 0x200, scoped, tag = 'scoped memory for tpu_custom_call.1']
  %s0 = inlined_call_operand.<no memory space> [shape: f32[1], index: 0, kind: input, shape index: {}]
  %s1 = inlined_call_operand.vmem [shape: s32[2,1,128], index: 1, kind: input, shape index: {}]
  %s2 = inlined_call_operand.vmem [shape: s32[2,1,128], index: 2, kind: input, shape index: {}]
  %s3 = inlined_call_operand.vmem [shape: f32[2,1,128], index: 3, kind: input, shape index: {}]
  %s4 = inlined_call_operand.hbm [shape: f32[16,32], index: 4, kind: input, shape index: {}]
  %s5 = inlined_call_operand.vmem [shape: f32[2,1,1], index: 5, kind: output, shape index: {0}]
  %s6 = inlined_call_operand.vmem [shape: f32[2,1,1], index: 6, kind: output, shape index: {1}]
  %7 = xla_tuple %s5, %s6
  %s8 = sld [smem:[#allocation0]]
  $region69: #{tpu_custom_call.1} parent=0
    _
  %s10 = ssub.s32 1, %s8
  %s11 = scalar_select 0, %s10, %s8
  %12 = sst [smem:[#allocation2]] %s0
  $region1: #{tpu_custom_call.1} parent=0
    #allocation3 [shape = 'u8[8192]{0}', space=vmem, size = 0x2000, scoped, tag = 'input window, operand 4, single buffered']
    #allocation4 [shape = 's32[2]{0}', space=sflag, size = 0x8, scoped, tag = 'scoped memory for tpu_custom_call.1']
    %13 = vsyncpa [#allocation4], 0
    loop: start=0, step=1, limit=4
    $region2: #{tpu_custom_call.1} parent=1 // loop_pre_header
      _
    $region3: #{tpu_custom_call.1} parent=1 // loop_header
      %s15 = sphi 0, %s19
      %p16 = scmp.ge.s32.totalorder %s15, 4
      %s22 = sphi 0, %s34
      %s23 = sphi 0, %s30
      %s24 = sphi 0, %s22
      %s25 = sphi 0, %s23
      %s26 = sphi 0, %s24
      %s27 = sphi 0, %s25
      %s35 = sphi 0, %s35
      %s37 = sphi 0, %s35
      %s38 = sphi 0, %s37
      %s52 = sphi 0, %s38
      %s60 = sphi 0, %s62
      %s63 = sphi 0, %s60
      %s64 = sphi 0, %s63
      %s80 = sphi 0, %s64
      %s88 = sphi 0, %s90
      %s91 = sphi 0, %s88
      %s92 = sphi 0, %s91
      %s108 = sphi 0, %s92
      %s116 = sphi 0, %s118
      %s119 = sphi 0, %s116
      %s120 = sphi 0, %s119
      %s136 = sphi 0, %s120
      %s140 = sphi 0, %s140
      %s142 = sphi 0, %s140
      %s143 = sphi 0, %s142
      %s157 = sphi 0, %s143
      %s163 = sphi 0, %s165
      %s166 = sphi 0, %s163
      %s167 = sphi 0, %s166
      %s183 = sphi 0, %s167
      %s189 = sphi 0, %s191
      %s192 = sphi 0, %s189
      %s193 = sphi 0, %s192
      %s209 = sphi 0, %s193
    $region4: #{tpu_custom_call.1} parent=1 // loop_header_branch
      %18 = sbr.rel (%p16) target = $region8
    $region5: #{tpu_custom_call.1} parent=1 // loop_body
      %s20 = ssub.s32 %s15, 1
      %s21 = ssub.s32 %s15, 2
      %s28 = sadd.s32 1, %s23
      %p29 = scmp.ge.s32.totalorder %s28, 1
      %s30 = scalar_select %p29, 0, %s28
      %s31 = sadd.s32 1, %s22
      %s32 = scalar_select %p29, %s31, %s22
      %p33 = scmp.ge.s32.totalorder %s32, 2
      %s34 = scalar_select %p33, 0, %s32
      %s36 = sadd.s32 %s35, 1
      %p39 = scmp.eq.s32.totalorder %s15, 1
      %p40 = scmp.ne.s32.totalorder %s35, %s37
      %p41 = scmp.eq.s32.totalorder %s15, 0
      %p42 = por %p40, %p41
      %p43 = scmp.ne.s32.totalorder %s35, %s37
      %p44 = scmp.eq.s32.totalorder %s20, 1
      %p45 = por %p43, %p44
      %p46 = scmp.ne.s32.totalorder %s37, %s38
      %p47 = scmp.eq.s32.totalorder %s20, 0
      %p48 = por %p46, %p47
      %p49 = scmp.ne.s32.totalorder %s37, %s38
      %p50 = scmp.eq.s32.totalorder %s21, 1
      %p51 = por %p49, %p50
      %p53 = scmp.ne.s32.totalorder %s38, %s52
      %p54 = scmp.eq.s32.totalorder %s21, 0
      %p55 = por %p53, %p54
      %s56 = sadd.s32 %s22, %s23
      %s57 = sadd.s32 %s34, %s30
      %s58 = ssub.s32 %s56, %s57
      %p59 = scmp.eq.s32.totalorder %s58, 0
      %s61 = sadd.s32 %s60, 1
      %s62 = scalar_select %p59, %s60, %s61
      %p65 = pneg %p59
      %p66 = scmp.eq.s32.totalorder %s15, 1
      %p67 = por %p65, %p66
      %p68 = scmp.ne.s32.totalorder %s60, %s63
      %p69 = scmp.eq.s32.totalorder %s15, 0
      %p70 = por %p68, %p69
      %p71 = scmp.ne.s32.totalorder %s60, %s63
      %p72 = scmp.eq.s32.totalorder %s20, 1
      %p73 = por %p71, %p72
      %p74 = scmp.ne.s32.totalorder %s63, %s64
      %p75 = scmp.eq.s32.totalorder %s20, 0
      %p76 = por %p74, %p75
      %p77 = scmp.ne.s32.totalorder %s63, %s64
      %p78 = scmp.eq.s32.totalorder %s21, 1
      %p79 = por %p77, %p78
      %p81 = scmp.ne.s32.totalorder %s64, %s80
      %p82 = scmp.eq.s32.totalorder %s21, 0
      %p83 = por %p81, %p82
      %s84 = sadd.s32 %s22, %s23
      %s85 = sadd.s32 %s34, %s30
      %s86 = ssub.s32 %s84, %s85
      %p87 = scmp.eq.s32.totalorder %s86, 0
      %s89 = sadd.s32 %s88, 1
      %s90 = scalar_select %p87, %s88, %s89
      %p93 = pneg %p87
      %p94 = scmp.eq.s32.totalorder %s15, 1
      %p95 = por %p93, %p94
      %p96 = scmp.ne.s32.totalorder %s88, %s91
      %p97 = scmp.eq.s32.totalorder %s15, 0
      %p98 = por %p96, %p97
      %p99 = scmp.ne.s32.totalorder %s88, %s91
      %p100 = scmp.eq.s32.totalorder %s20, 1
      %p101 = por %p99, %p100
      %p102 = scmp.ne.s32.totalorder %s91, %s92
      %p103 = scmp.eq.s32.totalorder %s20, 0
      %p104 = por %p102, %p103
      %p105 = scmp.ne.s32.totalorder %s91, %s92
      %p106 = scmp.eq.s32.totalorder %s21, 1
      %p107 = por %p105, %p106
      %p109 = scmp.ne.s32.totalorder %s92, %s108
      %p110 = scmp.eq.s32.totalorder %s21, 0
      %p111 = por %p109, %p110
      %s112 = sadd.s32 %s22, %s23
      %s113 = sadd.s32 %s34, %s30
      %s114 = ssub.s32 %s112, %s113
      %p115 = scmp.eq.s32.totalorder %s114, 0
      %s117 = sadd.s32 %s116, 1
      %s118 = scalar_select %p115, %s116, %s117
      %p121 = pneg %p115
      %p122 = scmp.eq.s32.totalorder %s15, 1
      %p123 = por %p121, %p122
      %p124 = scmp.ne.s32.totalorder %s116, %s119
      %p125 = scmp.eq.s32.totalorder %s15, 0
      %p126 = por %p124, %p125
      %p127 = scmp.ne.s32.totalorder %s116, %s119
      %p128 = scmp.eq.s32.totalorder %s20, 1
      %p129 = por %p127, %p128
      %p130 = scmp.ne.s32.totalorder %s119, %s120
      %p131 = scmp.eq.s32.totalorder %s20, 0
      %p132 = por %p130, %p131
      %p133 = scmp.ne.s32.totalorder %s119, %s120
      %p134 = scmp.eq.s32.totalorder %s21, 1
      %p135 = por %p133, %p134
      %p137 = scmp.ne.s32.totalorder %s120, %s136
      %p138 = scmp.eq.s32.totalorder %s21, 0
      %p139 = por %p137, %p138
      %s141 = sadd.s32 %s140, 1
      %p144 = scmp.eq.s32.totalorder %s15, 1
      %p145 = scmp.ne.s32.totalorder %s140, %s142
      %p146 = scmp.eq.s32.totalorder %s15, 0
      %p147 = por %p145, %p146
      %p148 = scmp.ne.s32.totalorder %s140, %s142
      %p149 = scmp.eq.s32.totalorder %s20, 1
      %p150 = por %p148, %p149
      %p151 = scmp.ne.s32.totalorder %s142, %s143
      %p152 = scmp.eq.s32.totalorder %s20, 0
      %p153 = por %p151, %p152
      %p154 = scmp.ne.s32.totalorder %s142, %s143
      %p155 = scmp.eq.s32.totalorder %s21, 1
      %p156 = por %p154, %p155
      %p158 = scmp.ne.s32.totalorder %s143, %s157
      %p159 = scmp.eq.s32.totalorder %s21, 0
      %p160 = por %p158, %p159
      %s161 = ssub.s32 %s22, %s34
      %p162 = scmp.eq.s32.totalorder %s161, 0
      %s164 = sadd.s32 %s163, 1
      %s165 = scalar_select %p162, %s163, %s164
      %p168 = pneg %p162
      %p169 = scmp.eq.s32.totalorder %s15, 1
      %p170 = por %p168, %p169
      %p171 = scmp.ne.s32.totalorder %s163, %s166
      %p172 = scmp.eq.s32.totalorder %s15, 0
      %p173 = por %p171, %p172
      %p174 = scmp.ne.s32.totalorder %s163, %s166
      %p175 = scmp.eq.s32.totalorder %s20, 1
      %p176 = por %p174, %p175
      %p177 = scmp.ne.s32.totalorder %s166, %s167
      %p178 = scmp.eq.s32.totalorder %s20, 0
      %p179 = por %p177, %p178
      %p180 = scmp.ne.s32.totalorder %s166, %s167
      %p181 = scmp.eq.s32.totalorder %s21, 1
      %p182 = por %p180, %p181
      %p184 = scmp.ne.s32.totalorder %s167, %s183
      %p185 = scmp.eq.s32.totalorder %s21, 0
      %p186 = por %p184, %p185
      %s187 = ssub.s32 %s22, %s34
      %p188 = scmp.eq.s32.totalorder %s187, 0
      %s190 = sadd.s32 %s189, 1
      %s191 = scalar_select %p188, %s189, %s190
      %p194 = pneg %p188
      %p195 = scmp.eq.s32.totalorder %s15, 1
      %p196 = por %p194, %p195
      %p197 = scmp.ne.s32.totalorder %s189, %s192
      %p198 = scmp.eq.s32.totalorder %s15, 0
      %p199 = por %p197, %p198
      %p200 = scmp.ne.s32.totalorder %s189, %s192
      %p201 = scmp.eq.s32.totalorder %s20, 1
      %p202 = por %p200, %p201
      %p203 = scmp.ne.s32.totalorder %s192, %s193
      %p204 = scmp.eq.s32.totalorder %s20, 0
      %p205 = por %p203, %p204
      %p206 = scmp.ne.s32.totalorder %s192, %s193
      %p207 = scmp.eq.s32.totalorder %s21, 1
      %p208 = por %p206, %p207
      %p210 = scmp.ne.s32.totalorder %s193, %s209
      %p211 = scmp.eq.s32.totalorder %s21, 0
      %p212 = por %p210, %p211
      %p213 = scmp.le.s32.totalorder 1, %s15
      %p214 = scmp.lt.s32.totalorder %s15, 3
      %p215 = pnand %p213, %p214
      %p216 = pneg %p215
      // Predicated region
      $region9: #{tpu_custom_call.1} parent=5 // pred_check
        _
      $region10: #{tpu_custom_call.1} parent=5 // pred_check_branch
        %218 = sbr.rel (%p215) target = $region12
      $region11: #{tpu_custom_call.1} parent=5 // pred_region
        %s219 = ssub.s32 %s15, 1
        // Predicated region
        $region13: #{tpu_custom_call.1} parent=11 // pred_check
          %p220 = pneg %p48
        $region14: #{tpu_custom_call.1} parent=11 // pred_check_branch
          %222 = sbr.rel (%p220) target = $region16
        $region15: #{tpu_custom_call.1} parent=11 // pred_region
          _
        $region16: #{tpu_custom_call.1} parent=11 // pred_fallthru
          _
        // Predicated region
        $region17: #{tpu_custom_call.1} parent=11 // pred_check
          %p223 = pneg %p153
        $region18: #{tpu_custom_call.1} parent=11 // pred_check_branch
          %225 = sbr.rel (%p223) target = $region20
        $region19: #{tpu_custom_call.1} parent=11 // pred_region
          %s227 = ssub.s32 256, 256
          %228 = vsyncadd [#allocation4], %s227
          %s229 = sshll.u32 [#allocation3], 4
          %s230 = int_to_ptr.vmem [resolvable:$true] %s229
          %235 = dma.hbm_to_vmem [thread:$0]  %s4, 256, %s230, [#allocation4], 128, 128, 8
        $region20: #{tpu_custom_call.1} parent=11 // pred_fallthru
          _
      $region12: #{tpu_custom_call.1} parent=5 // pred_fallthru
        _
      %p236 = scmp.lt.s32.totalorder %s15, 2
      // Predicated region
      $region21: #{tpu_custom_call.1} parent=5 // pred_check
        %p237 = pneg %p236
      $region22: #{tpu_custom_call.1} parent=5 // pred_check_branch
        %239 = sbr.rel (%p237) target = $region24
      $region23: #{tpu_custom_call.1} parent=5 // pred_region
        // Predicated region
        $region25: #{tpu_custom_call.1} parent=23 // pred_check
          %p240 = pneg %p70
        $region26: #{tpu_custom_call.1} parent=23 // pred_check_branch
          %242 = sbr.rel (%p240) target = $region28
        $region27: #{tpu_custom_call.1} parent=23 // pred_region
          %s243 = sadd.s32 %s22, %s23
          %p244 = scmp.lt.s32.totalorder %s243, 1
          %s245 = scalar_select %p244, %s243, 1
          %s246 = scalar_lea.vmem %s1, %s245
          %s247 = sadd.s32 %s22, %s23
        $region28: #{tpu_custom_call.1} parent=23 // pred_fallthru
          _
        // Predicated region
        $region29: #{tpu_custom_call.1} parent=23 // pred_check
          %p248 = pneg %p98
        $region30: #{tpu_custom_call.1} parent=23 // pred_check_branch
          %250 = sbr.rel (%p248) target = $region32
        $region31: #{tpu_custom_call.1} parent=23 // pred_region
          %s251 = sadd.s32 %s22, %s23
          %p252 = scmp.lt.s32.totalorder %s251, 1
          %s253 = scalar_select %p252, %s251, 1
          %s254 = scalar_lea.vmem %s2, %s253
          %s255 = sadd.s32 %s22, %s23
        $region32: #{tpu_custom_call.1} parent=23 // pred_fallthru
          _
        // Predicated region
        $region33: #{tpu_custom_call.1} parent=23 // pred_check
          %p256 = pneg %p126
        $region34: #{tpu_custom_call.1} parent=23 // pred_check_branch
          %258 = sbr.rel (%p256) target = $region36
        $region35: #{tpu_custom_call.1} parent=23 // pred_region
          %s259 = sadd.s32 %s22, %s23
          %p260 = scmp.lt.s32.totalorder %s259, 1
          %s261 = scalar_select %p260, %s259, 1
          %s262 = scalar_lea.vmem %s3, %s261
          %s263 = sadd.s32 %s22, %s23
        $region36: #{tpu_custom_call.1} parent=23 // pred_fallthru
          _
      $region24: #{tpu_custom_call.1} parent=5 // pred_fallthru
        _
      %p264 = scmp.le.s32.totalorder 1, %s15
      %p265 = scmp.lt.s32.totalorder %s15, 3
      %p266 = pnand %p264, %p265
      %p267 = pneg %p266
      // Predicated region
      $region37: #{tpu_custom_call.1} parent=5 // pred_check
        _
      $region38: #{tpu_custom_call.1} parent=5 // pred_check_branch
        %269 = sbr.rel (%p266) target = $region40
      $region39: #{tpu_custom_call.1} parent=5 // pred_region
        %s270 = ssub.s32 %s15, 1
        // Predicated region
        $region41: #{tpu_custom_call.1} parent=39 // pred_check
          %p271 = pneg %p153
        $region42: #{tpu_custom_call.1} parent=39 // pred_check_branch
          %273 = sbr.rel (%p271) target = $region44
        $region43: #{tpu_custom_call.1} parent=39 // pred_region
          %274 = dma.done [#allocation4], 256
        $region44: #{tpu_custom_call.1} parent=39 // pred_fallthru
          _
        %p275 = pneg %p48
        %p276 = pneg %p45
        %s277 = sadd.s32 %s24, %s25
        %p278 = scmp.lt.s32.totalorder %s277, 1
        %s279 = scalar_select %p278, %s277, 1
        %s280 = scalar_lea.vmem %s1, %s279
        %p281 = pneg %p76
        %p282 = pneg %p73
        %s283 = sadd.s32 %s24, %s25
        %p284 = scmp.lt.s32.totalorder %s283, 1
        %s285 = scalar_select %p284, %s283, 1
        %s286 = scalar_lea.vmem %s2, %s285
        %p287 = pneg %p104
        %p288 = pneg %p101
        %s289 = sadd.s32 %s24, %s25
        %p290 = scmp.lt.s32.totalorder %s289, 1
        %s291 = scalar_select %p290, %s289, 1
        %s292 = scalar_lea.vmem %s3, %s291
        %p293 = pneg %p132
        %p294 = pneg %p129
        %p295 = pneg %p153
        %p296 = pneg %p150
        %p297 = pneg %p179
        %p298 = pneg %p176
        %p299 = scmp.lt.s32.totalorder %s24, 1
        %s300 = scalar_select %p299, %s24, 1
        %s301 = scalar_lea.vmem %s5, %s300
        %p302 = pneg %p205
        %p303 = pneg %p202
        %p304 = scmp.lt.s32.totalorder %s24, 1
        %s305 = scalar_select %p304, %s24, 1
        %s306 = scalar_lea.vmem %s6, %s305
        %s307 = sadd.s32 %s24, %s25
        %p308 = scmp.lt.s32.totalorder %s307, 1
        %s309 = scalar_select %p308, %s307, 1
        %s310 = scalar_lea.vmem %s1, %s309
        %s311 = sadd.s32 %s24, %s25
        %s312 = sadd.s32 %s24, %s25
        %p313 = scmp.lt.s32.totalorder %s312, 1
        %s314 = scalar_select %p313, %s312, 1
        %s315 = scalar_lea.vmem %s2, %s314
        %s316 = sadd.s32 %s24, %s25
        %s317 = sadd.s32 %s24, %s25
        %p318 = scmp.lt.s32.totalorder %s317, 1
        %s319 = scalar_select %p318, %s317, 1
        %s320 = scalar_lea.vmem %s3, %s319
        %s321 = sadd.s32 %s24, %s25
        %p322 = scmp.lt.s32.totalorder %s24, 1
        %s323 = scalar_select %p322, %s24, 1
        %s324 = scalar_lea.vmem %s5, %s323
        %p325 = scmp.lt.s32.totalorder %s24, 1
        %s326 = scalar_select %p325, %s24, 1
        %s327 = scalar_lea.vmem %s6, %s326
        %p328 = scmp.eq.s32.totalorder %s25, 0
        // Predicated region
        $region45: #{tpu_custom_call.1} parent=39 // pred_check
          %p329 = pneg %p328
        $region46: #{tpu_custom_call.1} parent=39 // pred_check_branch
          %331 = sbr.rel (%p329) target = $region48
        $region47: #{tpu_custom_call.1} parent=39 // pred_region
          %vm332 = vcmask 0
          %333 = vst.msk [vmem:[%s324] sm:$0x1] %vm332, 0.0
          %334 = vst.msk [vmem:[%s327] sm:$0x1] %vm332, 0.0
        $region48: #{tpu_custom_call.1} parent=39 // pred_fallthru
          _
        %v335 = vld [vmem:[#allocation3] sm:$0xff]
        %v336 = vld [vmem:[#allocation3 + $0x8] sm:$0xff]
        %v337 = vld [vmem:[%s310] sm:$0x1]
        %v338 = vlaneseq
        %v339 = vshrl.u32 %v338, 7
        %v340 = vsub.s32 0, %v339
        %v341 = vrot.slane %v337, %v340
        %343 = vbcast.lane.b32.xlu0 %v341, 256
        %v344 = vpop.permute.xlu0 %343
        %s346 = sor.u32 256, 8
        %347 = vbcast.lane.b32.xlu0 %v341, %s346
        %v348 = vpop.permute.xlu0 %347
        %s350 = sor.u32 256, 16
        %351 = vbcast.lane.b32.xlu0 %v341, %s350
        %v352 = vpop.permute.xlu0 %351
        %s354 = sor.u32 256, 24
        %355 = vbcast.lane.b32.xlu0 %v341, %s354
        %v356 = vpop.permute.xlu0 %355
        %s358 = sor.u32 256, 32
        %359 = vbcast.lane.b32.xlu0 %v341, %s358
        %v360 = vpop.permute.xlu0 %359
        %s362 = sor.u32 256, 40
        %363 = vbcast.lane.b32.xlu0 %v341, %s362
        %v364 = vpop.permute.xlu0 %363
        %s366 = sor.u32 256, 48
        %367 = vbcast.lane.b32.xlu0 %v341, %s366
        %v368 = vpop.permute.xlu0 %367
        %s370 = sor.u32 256, 56
        %371 = vbcast.lane.b32.xlu0 %v341, %s370
        %v372 = vpop.permute.xlu0 %371
        %s374 = sor.u32 256, 64
        %375 = vbcast.lane.b32.xlu0 %v341, %s374
        %v376 = vpop.permute.xlu0 %375
        %s378 = sor.u32 256, 72
        %379 = vbcast.lane.b32.xlu0 %v341, %s378
        %v380 = vpop.permute.xlu0 %379
        %s382 = sor.u32 256, 80
        %383 = vbcast.lane.b32.xlu0 %v341, %s382
        %v384 = vpop.permute.xlu0 %383
        %s386 = sor.u32 256, 88
        %387 = vbcast.lane.b32.xlu0 %v341, %s386
        %v388 = vpop.permute.xlu0 %387
        %s390 = sor.u32 256, 96
        %391 = vbcast.lane.b32.xlu0 %v341, %s390
        %v392 = vpop.permute.xlu0 %391
        %s394 = sor.u32 256, 104
        %395 = vbcast.lane.b32.xlu0 %v341, %s394
        %v396 = vpop.permute.xlu0 %395
        %s398 = sor.u32 256, 112
        %399 = vbcast.lane.b32.xlu0 %v341, %s398
        %v400 = vpop.permute.xlu0 %399
        %s402 = sor.u32 256, 120
        %403 = vbcast.lane.b32.xlu0 %v341, %s402
        %v404 = vpop.permute.xlu0 %403
        %v405 = vld [vmem:[%s315] sm:$0x1]
        %v406 = vlaneseq
        %v407 = vshrl.u32 %v406, 7
        %v408 = vsub.s32 0, %v407
        %v409 = vrot.slane %v405, %v408
        %411 = vbcast.lane.b32.xlu0 %v409, 256
        %v412 = vpop.permute.xlu0 %411
        %s414 = sor.u32 256, 8
        %415 = vbcast.lane.b32.xlu0 %v409, %s414
        %v416 = vpop.permute.xlu0 %415
        %s418 = sor.u32 256, 16
        %419 = vbcast.lane.b32.xlu0 %v409, %s418
        %v420 = vpop.permute.xlu0 %419
        %s422 = sor.u32 256, 24
        %423 = vbcast.lane.b32.xlu0 %v409, %s422
        %v424 = vpop.permute.xlu0 %423
        %s426 = sor.u32 256, 32
        %427 = vbcast.lane.b32.xlu0 %v409, %s426
        %v428 = vpop.permute.xlu0 %427
        %s430 = sor.u32 256, 40
        %431 = vbcast.lane.b32.xlu0 %v409, %s430
        %v432 = vpop.permute.xlu0 %431
        %s434 = sor.u32 256, 48
        %435 = vbcast.lane.b32.xlu0 %v409, %s434
        %v436 = vpop.permute.xlu0 %435
        %s438 = sor.u32 256, 56
        %439 = vbcast.lane.b32.xlu0 %v409, %s438
        %v440 = vpop.permute.xlu0 %439
        %s442 = sor.u32 256, 64
        %443 = vbcast.lane.b32.xlu0 %v409, %s442
        %v444 = vpop.permute.xlu0 %443
        %s446 = sor.u32 256, 72
        %447 = vbcast.lane.b32.xlu0 %v409, %s446
        %v448 = vpop.permute.xlu0 %447
        %s450 = sor.u32 256, 80
        %451 = vbcast.lane.b32.xlu0 %v409, %s450
        %v452 = vpop.permute.xlu0 %451
        %s454 = sor.u32 256, 88
        %455 = vbcast.lane.b32.xlu0 %v409, %s454
        %v456 = vpop.permute.xlu0 %455
        %s458 = sor.u32 256, 96
        %459 = vbcast.lane.b32.xlu0 %v409, %s458
        %v460 = vpop.permute.xlu0 %459
        %s462 = sor.u32 256, 104
        %463 = vbcast.lane.b32.xlu0 %v409, %s462
        %v464 = vpop.permute.xlu0 %463
        %s466 = sor.u32 256, 112
        %467 = vbcast.lane.b32.xlu0 %v409, %s466
        %v468 = vpop.permute.xlu0 %467
        %s470 = sor.u32 256, 120
        %471 = vbcast.lane.b32.xlu0 %v409, %s470
        %v472 = vpop.permute.xlu0 %471
        %v473 = vlaneseq
        %v474 = vand.u32 %v473, 127
        %vm475 = vcmp.eq.s32.totalorder %v344, %v474
        %vm476 = vcmp.eq.s32.totalorder %v348, %v474
        %vm477 = vcmp.eq.s32.totalorder %v352, %v474
        %vm478 = vcmp.eq.s32.totalorder %v356, %v474
        %vm479 = vcmp.eq.s32.totalorder %v360, %v474
        %vm480 = vcmp.eq.s32.totalorder %v364, %v474
        %vm481 = vcmp.eq.s32.totalorder %v368, %v474
        %vm482 = vcmp.eq.s32.totalorder %v372, %v474
        %vm483 = vcmp.eq.s32.totalorder %v376, %v474
        %vm484 = vcmp.eq.s32.totalorder %v380, %v474
        %vm485 = vcmp.eq.s32.totalorder %v384, %v474
        %vm486 = vcmp.eq.s32.totalorder %v388, %v474
        %vm487 = vcmp.eq.s32.totalorder %v392, %v474
        %vm488 = vcmp.eq.s32.totalorder %v396, %v474
        %vm489 = vcmp.eq.s32.totalorder %v400, %v474
        %vm490 = vcmp.eq.s32.totalorder %v404, %v474
        %v491 = vsel %vm475, 1, 0
        %v492 = vsel %vm476, 1, 0
        %v493 = vsel %vm477, 1, 0
        %v494 = vsel %vm478, 1, 0
        %v495 = vsel %vm479, 1, 0
        %v496 = vsel %vm480, 1, 0
        %v497 = vsel %vm481, 1, 0
        %v498 = vsel %vm482, 1, 0
        %v499 = vsel %vm483, 1, 0
        %v500 = vsel %vm484, 1, 0
        %v501 = vsel %vm485, 1, 0
        %v502 = vsel %vm486, 1, 0
        %v503 = vsel %vm487, 1, 0
        %v504 = vsel %vm488, 1, 0
        %v505 = vsel %vm489, 1, 0
        %v506 = vsel %vm490, 1, 0
        %v507 = vcvt.s32.f32 %v491
        %v508 = vcvt.s32.f32 %v492
        %v509 = vcvt.s32.f32 %v493
        %v510 = vcvt.s32.f32 %v494
        %v511 = vcvt.s32.f32 %v495
        %v512 = vcvt.s32.f32 %v496
        %v513 = vcvt.s32.f32 %v497
        %v514 = vcvt.s32.f32 %v498
        %v515 = vcvt.s32.f32 %v499
        %v516 = vcvt.s32.f32 %v500
        %v517 = vcvt.s32.f32 %v501
        %v518 = vcvt.s32.f32 %v502
        %v519 = vcvt.s32.f32 %v503
        %v520 = vcvt.s32.f32 %v504
        %v521 = vcvt.s32.f32 %v505
        %v522 = vcvt.s32.f32 %v506
        %vm523 = vcmp.eq.s32.totalorder %v412, %v474
        %vm524 = vcmp.eq.s32.totalorder %v416, %v474
        %vm525 = vcmp.eq.s32.totalorder %v420, %v474
        %vm526 = vcmp.eq.s32.totalorder %v424, %v474
        %vm527 = vcmp.eq.s32.totalorder %v428, %v474
        %vm528 = vcmp.eq.s32.totalorder %v432, %v474
        %vm529 = vcmp.eq.s32.totalorder %v436, %v474
        %vm530 = vcmp.eq.s32.totalorder %v440, %v474
        %vm531 = vcmp.eq.s32.totalorder %v444, %v474
        %vm532 = vcmp.eq.s32.totalorder %v448, %v474
        %vm533 = vcmp.eq.s32.totalorder %v452, %v474
        %vm534 = vcmp.eq.s32.totalorder %v456, %v474
        %vm535 = vcmp.eq.s32.totalorder %v460, %v474
        %vm536 = vcmp.eq.s32.totalorder %v464, %v474
        %vm537 = vcmp.eq.s32.totalorder %v468, %v474
        %vm538 = vcmp.eq.s32.totalorder %v472, %v474
        %v539 = vsel %vm523, 1, 0
        %v540 = vsel %vm524, 1, 0
        %v541 = vsel %vm525, 1, 0
        %v542 = vsel %vm526, 1, 0
        %v543 = vsel %vm527, 1, 0
        %v544 = vsel %vm528, 1, 0
        %v545 = vsel %vm529, 1, 0
        %v546 = vsel %vm530, 1, 0
        %v547 = vsel %vm531, 1, 0
        %v548 = vsel %vm532, 1, 0
        %v549 = vsel %vm533, 1, 0
        %v550 = vsel %vm534, 1, 0
        %v551 = vsel %vm535, 1, 0
        %v552 = vsel %vm536, 1, 0
        %v553 = vsel %vm537, 1, 0
        %v554 = vsel %vm538, 1, 0
        %v555 = vcvt.s32.f32 %v539
        %v556 = vcvt.s32.f32 %v540
        %v557 = vcvt.s32.f32 %v541
        %v558 = vcvt.s32.f32 %v542
        %v559 = vcvt.s32.f32 %v543
        %v560 = vcvt.s32.f32 %v544
        %v561 = vcvt.s32.f32 %v545
        %v562 = vcvt.s32.f32 %v546
        %v563 = vcvt.s32.f32 %v547
        %v564 = vcvt.s32.f32 %v548
        %v565 = vcvt.s32.f32 %v549
        %v566 = vcvt.s32.f32 %v550
        %v567 = vcvt.s32.f32 %v551
        %v568 = vcvt.s32.f32 %v552
        %v569 = vcvt.s32.f32 %v553
        %v570 = vcvt.s32.f32 %v554
        %vm571 = vcmask 130048
        %v573 = vsel %vm571, %v507, 0
        %v576 = vsel %vm571, %v508, 0
        %v579 = vsel %vm571, %v509, 0
        %v582 = vsel %vm571, %v510, 0
        %v585 = vsel %vm571, %v511, 0
        %v588 = vsel %vm571, %v512, 0
        %v591 = vsel %vm571, %v513, 0
        %v594 = vsel %vm571, %v514, 0
        %v597 = vsel %vm571, %v515, 0
        %v600 = vsel %vm571, %v516, 0
        %v603 = vsel %vm571, %v517, 0
        %v606 = vsel %vm571, %v518, 0
        %v609 = vsel %vm571, %v519, 0
        %v612 = vsel %vm571, %v520, 0
        %v615 = vsel %vm571, %v521, 0
        %v618 = vsel %vm571, %v522, 0
        %620 = vmatprep.subr.mxu0 0.0
        %v621 = vand.u32 %v335, 4294901760
        %622 = vmatpush1.msra.mxu0 %v621
        %623 = vmatprep.subr.mxu0 0.0
        %v624 = vand.u32 %v336, 4294901760
        %625 = vmatpush1.msra.mxu0 %v624
        %626 = vmatprep.subr.mxu0 0.0
        %627 = vmatpush1.msra.mxu0 0.0
        %628 = vmatprep.subr.mxu0 0.0
        %629 = vmatpush1.msra.mxu0 0.0
        %630 = vmatprep.subr.mxu0 0.0
        %631 = vmatpush1.msra.mxu0 0.0
        %632 = vmatprep.subr.mxu0 0.0
        %633 = vmatpush1.msra.mxu0 0.0
        %634 = vmatprep.subr.mxu0 0.0
        %635 = vmatpush1.msra.mxu0 0.0
        %636 = vmatprep.subr.mxu0 0.0
        %637 = vmatpush1.msra.mxu0 0.0
        %638 = vmatprep.subr.mxu0 0.0
        %639 = vmatpush1.msra.mxu0 0.0
        %640 = vmatprep.subr.mxu0 0.0
        %641 = vmatpush1.msra.mxu0 0.0
        %642 = vmatprep.subr.mxu0 0.0
        %643 = vmatpush1.msra.mxu0 0.0
        %644 = vmatprep.subr.mxu0 0.0
        %645 = vmatpush1.msra.mxu0 0.0
        %646 = vmatprep.subr.mxu0 0.0
        %647 = vmatpush1.msra.mxu0 0.0
        %648 = vmatprep.subr.mxu0 0.0
        %649 = vmatpush1.msra.mxu0 0.0
        %650 = vmatprep.subr.mxu0 0.0
        %651 = vmatpush1.msra.mxu0 0.0
        %652 = vmatprep.subr.mxu0 0.0
        %653 = vmatpush1.msra.mxu0 0.0
        %654 = vmatprep.subr.mxu0 0.0
        %655 = vmatpush1.msra.mxu0 0.0
        %656 = vmatprep.subr.mxu0 0.0
        %657 = vmatpush1.msra.mxu0 0.0
        %658 = vmatprep.subr.mxu0 0.0
        %659 = vmatpush1.msra.mxu0 0.0
        %660 = vmatprep.subr.mxu0 0.0
        %661 = vmatpush1.msra.mxu0 0.0
        %662 = vmatprep.subr.mxu0 0.0
        %663 = vmatpush1.msra.mxu0 0.0
        %664 = vmatprep.subr.mxu0 0.0
        %665 = vmatpush1.msra.mxu0 0.0
        %666 = vmatprep.subr.mxu0 0.0
        %667 = vmatpush1.msra.mxu0 0.0
        %668 = vmatprep.subr.mxu0 0.0
        %669 = vmatpush1.msra.mxu0 0.0
        %670 = vmatprep.subr.mxu0 0.0
        %671 = vmatpush1.msra.mxu0 0.0
        %672 = vmatprep.subr.mxu0 0.0
        %673 = vmatpush1.msra.mxu0 0.0
        %674 = vmatprep.subr.mxu0 0.0
        %675 = vmatpush1.msra.mxu0 0.0
        %676 = vmatprep.subr.mxu0 0.0
        %677 = vmatpush1.msra.mxu0 0.0
        %678 = vmatprep.subr.mxu0 0.0
        %679 = vmatpush1.msra.mxu0 0.0
        %680 = vmatprep.subr.mxu0 0.0
        %681 = vmatpush1.msra.mxu0 0.0
        %682 = vmatprep.subr.mxu0 0.0
        %683 = vmatpush1.msra.mxu0 0.0
        %684 = vmatprep.subr.mxu0 0.0
        %685 = vmatpush1.msra.mxu0 0.0
        %686 = vmatprep.mubr.f32.mxu0 0.0
        %v687 = vand.u32 %v573, 4294901760
        %v688 = vsub.f32 %v573, %v687
        %v689 = vand.u32 %v688, 4294901760
        %v690 = vsub.f32 %v688, %v689
        %v691 = vand.u32 %v690, 4294901760
        %692 = vmatmul.mubr.f32.gmra.mrb[0].mxu0 %v691
        %v693 = vpop.f32.mrb[0].mxu0
        %v694 = vadd.f32 0.0, %v693
        %v695 = vpop.f32.mrb[0].mxu0
        %696 = vmatprep.mubr.f32.mxu0 0.0
        %v697 = vand.u32 %v576, 4294901760
        %v698 = vsub.f32 %v576, %v697
        %v699 = vand.u32 %v698, 4294901760
        %v700 = vsub.f32 %v698, %v699
        %v701 = vand.u32 %v700, 4294901760
        %702 = vmatmul.mubr.f32.gmra.mrb[0].mxu0 %v701
        %v703 = vpop.f32.mrb[0].mxu0
        %v704 = vadd.f32 0.0, %v703
        %v705 = vpop.f32.mrb[0].mxu0
        %706 = vmatprep.mubr.f32.mxu0 0.0
        %v707 = vand.u32 %v579, 4294901760
        %v708 = vsub.f32 %v579, %v707
        %v709 = vand.u32 %v708, 4294901760
        %v710 = vsub.f32 %v708, %v709
        %v711 = vand.u32 %v710, 4294901760
        %712 = vmatmul.mubr.f32.gmra.mrb[0].mxu0 %v711
        %v713 = vpop.f32.mrb[0].mxu0
        %v714 = vadd.f32 0.0, %v713
        %v715 = vpop.f32.mrb[0].mxu0
        %716 = vmatprep.mubr.f32.mxu0 0.0
        %v717 = vand.u32 %v582, 4294901760
        %v718 = vsub.f32 %v582, %v717
        %v719 = vand.u32 %v718, 4294901760
        %v720 = vsub.f32 %v718, %v719
        %v721 = vand.u32 %v720, 4294901760
        %722 = vmatmul.mubr.f32.gmra.mrb[0].mxu0 %v721
        %v723 = vpop.f32.mrb[0].mxu0
        %v724 = vadd.f32 0.0, %v723
        %v725 = vpop.f32.mrb[0].mxu0
        %726 = vmatprep.mubr.f32.mxu0 0.0
        %v727 = vand.u32 %v585, 4294901760
        %v728 = vsub.f32 %v585, %v727
        %v729 = vand.u32 %v728, 4294901760
        %v730 = vsub.f32 %v728, %v729
        %v731 = vand.u32 %v730, 4294901760
        %732 = vmatmul.mubr.f32.gmra.mrb[0].mxu0 %v731
        %v733 = vpop.f32.mrb[0].mxu0
        %v734 = vadd.f32 0.0, %v733
        %v735 = vpop.f32.mrb[0].mxu0
        %736 = vmatprep.mubr.f32.mxu0 0.0
        %v737 = vand.u32 %v588, 4294901760
        %v738 = vsub.f32 %v588, %v737
        %v739 = vand.u32 %v738, 4294901760
        %v740 = vsub.f32 %v738, %v739
        %v741 = vand.u32 %v740, 4294901760
        %742 = vmatmul.mubr.f32.gmra.mrb[0].mxu0 %v741
        %v743 = vpop.f32.mrb[0].mxu0
        %v744 = vadd.f32 0.0, %v743
        %v745 = vpop.f32.mrb[0].mxu0
        %746 = vmatprep.mubr.f32.mxu0 0.0
        %v747 = vand.u32 %v591, 4294901760
        %v748 = vsub.f32 %v591, %v747
        %v749 = vand.u32 %v748, 4294901760
        %v750 = vsub.f32 %v748, %v749
        %v751 = vand.u32 %v750, 4294901760
        %752 = vmatmul.mubr.f32.gmra.mrb[0].mxu0 %v751
        %v753 = vpop.f32.mrb[0].mxu0
        %v754 = vadd.f32 0.0, %v753
        %v755 = vpop.f32.mrb[0].mxu0
        %756 = vmatprep.mubr.f32.mxu0 0.0
        %v757 = vand.u32 %v594, 4294901760
        %v758 = vsub.f32 %v594, %v757
        %v759 = vand.u32 %v758, 4294901760
        %v760 = vsub.f32 %v758, %v759
        %v761 = vand.u32 %v760, 4294901760
        %762 = vmatmul.mubr.f32.gmra.mrb[0].mxu0 %v761
        %v763 = vpop.f32.mrb[0].mxu0
        %v764 = vadd.f32 0.0, %v763
        %v765 = vpop.f32.mrb[0].mxu0
        %766 = vmatprep.mubr.f32.mxu0 0.0
        %v767 = vand.u32 %v597, 4294901760
        %v768 = vsub.f32 %v597, %v767
        %v769 = vand.u32 %v768, 4294901760
        %v770 = vsub.f32 %v768, %v769
        %v771 = vand.u32 %v770, 4294901760
        %772 = vmatmul.mubr.f32.gmra.mrb[0].mxu0 %v771
        %v773 = vpop.f32.mrb[0].mxu0
        %v774 = vadd.f32 0.0, %v773
        %v775 = vpop.f32.mrb[0].mxu0
        %776 = vmatprep.mubr.f32.mxu0 0.0
        %v777 = vand.u32 %v600, 4294901760
        %v778 = vsub.f32 %v600, %v777
        %v779 = vand.u32 %v778, 4294901760
        %v780 = vsub.f32 %v778, %v779
        %v781 = vand.u32 %v780, 4294901760
        %782 = vmatmul.mubr.f32.gmra.mrb[0].mxu0 %v781
        %v783 = vpop.f32.mrb[0].mxu0
        %v784 = vadd.f32 0.0, %v783
        %v785 = vpop.f32.mrb[0].mxu0
        %786 = vmatprep.mubr.f32.mxu0 0.0
        %v787 = vand.u32 %v603, 4294901760
        %v788 = vsub.f32 %v603, %v787
        %v789 = vand.u32 %v788, 4294901760
        %v790 = vsub.f32 %v788, %v789
        %v791 = vand.u32 %v790, 4294901760
        %792 = vmatmul.mubr.f32.gmra.mrb[0].mxu0 %v791
        %v793 = vpop.f32.mrb[0].mxu0
        %v794 = vadd.f32 0.0, %v793
        %v795 = vpop.f32.mrb[0].mxu0
        %796 = vmatprep.mubr.f32.mxu0 0.0
        %v797 = vand.u32 %v606, 4294901760
        %v798 = vsub.f32 %v606, %v797
        %v799 = vand.u32 %v798, 4294901760
        %v800 = vsub.f32 %v798, %v799
        %v801 = vand.u32 %v800, 4294901760
        %802 = vmatmul.mubr.f32.gmra.mrb[0].mxu0 %v801
        %v803 = vpop.f32.mrb[0].mxu0
        %v804 = vadd.f32 0.0, %v803
        %v805 = vpop.f32.mrb[0].mxu0
        %806 = vmatprep.mubr.f32.mxu0 0.0
        %v807 = vand.u32 %v609, 4294901760
        %v808 = vsub.f32 %v609, %v807
        %v809 = vand.u32 %v808, 4294901760
        %v810 = vsub.f32 %v808, %v809
        %v811 = vand.u32 %v810, 4294901760
        %812 = vmatmul.mubr.f32.gmra.mrb[0].mxu0 %v811
        %v813 = vpop.f32.mrb[0].mxu0
        %v814 = vadd.f32 0.0, %v813
        %v815 = vpop.f32.mrb[0].mxu0
        %816 = vmatprep.mubr.f32.mxu0 0.0
        %v817 = vand.u32 %v612, 4294901760
        %v818 = vsub.f32 %v612, %v817
        %v819 = vand.u32 %v818, 4294901760
        %v820 = vsub.f32 %v818, %v819
        %v821 = vand.u32 %v820, 4294901760
        %822 = vmatmul.mubr.f32.gmra.mrb[0].mxu0 %v821
        %v823 = vpop.f32.mrb[0].mxu0
        %v824 = vadd.f32 0.0, %v823
        %v825 = vpop.f32.mrb[0].mxu0
        %826 = vmatprep.mubr.f32.mxu0 0.0
        %v827 = vand.u32 %v615, 4294901760
        %v828 = vsub.f32 %v615, %v827
        %v829 = vand.u32 %v828, 4294901760
        %v830 = vsub.f32 %v828, %v829
        %v831 = vand.u32 %v830, 4294901760
        %832 = vmatmul.mubr.f32.gmra.mrb[0].mxu0 %v831
        %v833 = vpop.f32.mrb[0].mxu0
        %v834 = vadd.f32 0.0, %v833
        %v835 = vpop.f32.mrb[0].mxu0
        %836 = vmatprep.mubr.f32.mxu0 0.0
        %v837 = vand.u32 %v618, 4294901760
        %v838 = vsub.f32 %v618, %v837
        %v839 = vand.u32 %v838, 4294901760
        %v840 = vsub.f32 %v838, %v839
        %v841 = vand.u32 %v840, 4294901760
        %842 = vmatmul.mubr.f32.gmra.mrb[0].mxu0 %v841
        %v843 = vpop.f32.mrb[0].mxu0
        %v844 = vadd.f32 0.0, %v843
        %v845 = vpop.f32.mrb[0].mxu0
        %846 = vdwg.mxu0
        %847 = vmatprep.subr.mxu0 0.0
        %v848 = vand.u32 %v335, 4294901760
        %v849 = vsub.f32 %v335, %v848
        %v850 = vand.u32 %v849, 4294901760
        %v851 = vsub.f32 %v849, %v850
        %v852 = vand.u32 %v851, 4294901760
        %853 = vmatpush1.msra.mxu0 %v852
        %854 = vmatprep.subr.mxu0 0.0
        %v855 = vand.u32 %v336, 4294901760
        %v856 = vsub.f32 %v336, %v855
        %v857 = vand.u32 %v856, 4294901760
        %v858 = vsub.f32 %v856, %v857
        %v859 = vand.u32 %v858, 4294901760
        %860 = vmatpush1.msra.mxu0 %v859
        %861 = vmatprep.subr.mxu0 0.0
        %862 = vmatpush1.msra.mxu0 0.0
        %863 = vmatprep.subr.mxu0 0.0
        %864 = vmatpush1.msra.mxu0 0.0
        %865 = vmatprep.subr.mxu0 0.0
        %866 = vmatpush1.msra.mxu0 0.0
        %867 = vmatprep.subr.mxu0 0.0
        %868 = vmatpush1.msra.mxu0 0.0
        %869 = vmatprep.subr.mxu0 0.0
        %870 = vmatpush1.msra.mxu0 0.0
        %871 = vmatprep.subr.mxu0 0.0
        %872 = vmatpush1.msra.mxu0 0.0
        %873 = vmatprep.subr.mxu0 0.0
        %874 = vmatpush1.msra.mxu0 0.0
        %875 = vmatprep.subr.mxu0 0.0
        %876 = vmatpush1.msra.mxu0 0.0
        %877 = vmatprep.subr.mxu0 0.0
        %878 = vmatpush1.msra.mxu0 0.0
        %879 = vmatprep.subr.mxu0 0.0
        %880 = vmatpush1.msra.mxu0 0.0
        %881 = vmatprep.subr.mxu0 0.0
        %882 = vmatpush1.msra.mxu0 0.0
        %883 = vmatprep.subr.mxu0 0.0
        %884 = vmatpush1.msra.mxu0 0.0
        %885 = vmatprep.subr.mxu0 0.0
        %886 = vmatpush1.msra.mxu0 0.0
        %887 = vmatprep.subr.mxu0 0.0
        %888 = vmatpush1.msra.mxu0 0.0
        %889 = vmatprep.subr.mxu0 0.0
        %890 = vmatpush1.msra.mxu0 0.0
        %891 = vmatprep.subr.mxu0 0.0
        %892 = vmatpush1.msra.mxu0 0.0
        %893 = vmatprep.subr.mxu0 0.0
        %894 = vmatpush1.msra.mxu0 0.0
        %895 = vmatprep.subr.mxu0 0.0
        %896 = vmatpush1.msra.mxu0 0.0
        %897 = vmatprep.subr.mxu0 0.0
        %898 = vmatpush1.msra.mxu0 0.0
        %899 = vmatprep.subr.mxu0 0.0
        %900 = vmatpush1.msra.mxu0 0.0
        %901 = vmatprep.subr.mxu0 0.0
        %902 = vmatpush1.msra.mxu0 0.0
        %903 = vmatprep.subr.mxu0 0.0
        %904 = vmatpush1.msra.mxu0 0.0
        %905 = vmatprep.subr.mxu0 0.0
        %906 = vmatpush1.msra.mxu0 0.0
        %907 = vmatprep.subr.mxu0 0.0
        %908 = vmatpush1.msra.mxu0 0.0
        %909 = vmatprep.subr.mxu0 0.0
        %910 = vmatpush1.msra.mxu0 0.0
        %911 = vmatprep.subr.mxu0 0.0
        %912 = vmatpush1.msra.mxu0 0.0
        %913 = vmatprep.subr.mxu0 0.0
        %914 = vmatpush1.msra.mxu0 0.0
        %915 = vmatprep.subr.mxu0 0.0
        %916 = vmatpush1.msra.mxu0 0.0
        %917 = vmatprep.subr.mxu0 0.0
        %918 = vmatpush1.msra.mxu0 0.0
        %919 = vmatprep.subr.mxu0 0.0
        %920 = vmatpush1.msra.mxu0 0.0
        %921 = vmatprep.mubr.f32.mxu0 0.0
        %v922 = vand.u32 %v573, 4294901760
        %923 = vmatmul.mubr.f32.gmra.mrb[0].mxu0 %v922
        %v924 = vpop.f32.mrb[0].mxu0
        %v925 = vadd.f32 %v694, %v924
        %v926 = vpop.f32.mrb[0].mxu0
        %927 = vmatprep.mubr.f32.mxu0 0.0
        %v928 = vand.u32 %v576, 4294901760
        %929 = vmatmul.mubr.f32.gmra.mrb[0].mxu0 %v928
        %v930 = vpop.f32.mrb[0].mxu0
        %v931 = vadd.f32 %v704, %v930
        %v932 = vpop.f32.mrb[0].mxu0
        %933 = vmatprep.mubr.f32.mxu0 0.0
        %v934 = vand.u32 %v579, 4294901760
        %935 = vmatmul.mubr.f32.gmra.mrb[0].mxu0 %v934
        %v936 = vpop.f32.mrb[0].mxu0
        %v937 = vadd.f32 %v714, %v936
        %v938 = vpop.f32.mrb[0].mxu0
        %939 = vmatprep.mubr.f32.mxu0 0.0
        %v940 = vand.u32 %v582, 4294901760
        %941 = vmatmul.mubr.f32.gmra.mrb[0].mxu0 %v940
        %v942 = vpop.f32.mrb[0].mxu0
        %v943 = vadd.f32 %v724, %v942
        %v944 = vpop.f32.mrb[0].mxu0
        %945 = vmatprep.mubr.f32.mxu0 0.0
        %v946 = vand.u32 %v585, 4294901760
        %947 = vmatmul.mubr.f32.gmra.mrb[0].mxu0 %v946
        %v948 = vpop.f32.mrb[0].mxu0
        %v949 = vadd.f32 %v734, %v948
        %v950 = vpop.f32.mrb[0].mxu0
        %951 = vmatprep.mubr.f32.mxu0 0.0
        %v952 = vand.u32 %v588, 4294901760
        %953 = vmatmul.mubr.f32.gmra.mrb[0].mxu0 %v952
        %v954 = vpop.f32.mrb[0].mxu0
        %v955 = vadd.f32 %v744, %v954
        %v956 = vpop.f32.mrb[0].mxu0
        %957 = vmatprep.mubr.f32.mxu0 0.0
        %v958 = vand.u32 %v591, 4294901760
        %959 = vmatmul.mubr.f32.gmra.mrb[0].mxu0 %v958
        %v960 = vpop.f32.mrb[0].mxu0
        %v961 = vadd.f32 %v754, %v960
        %v962 = vpop.f32.mrb[0].mxu0
        %963 = vmatprep.mubr.f32.mxu0 0.0
        %v964 = vand.u32 %v594, 4294901760
        %965 = vmatmul.mubr.f32.gmra.mrb[0].mxu0 %v964
        %v966 = vpop.f32.mrb[0].mxu0
        %v967 = vadd.f32 %v764, %v966
        %v968 = vpop.f32.mrb[0].mxu0
        %969 = vmatprep.mubr.f32.mxu0 0.0
        %v970 = vand.u32 %v597, 4294901760
        %971 = vmatmul.mubr.f32.gmra.mrb[0].mxu0 %v970
        %v972 = vpop.f32.mrb[0].mxu0
        %v973 = vadd.f32 %v774, %v972
        %v974 = vpop.f32.mrb[0].mxu0
        %975 = vmatprep.mubr.f32.mxu0 0.0
        %v976 = vand.u32 %v600, 4294901760
        %977 = vmatmul.mubr.f32.gmra.mrb[0].mxu0 %v976
        %v978 = vpop.f32.mrb[0].mxu0
        %v979 = vadd.f32 %v784, %v978
        %v980 = vpop.f32.mrb[0].mxu0
        %981 = vmatprep.mubr.f32.mxu0 0.0
        %v982 = vand.u32 %v603, 4294901760
        %983 = vmatmul.mubr.f32.gmra.mrb[0].mxu0 %v982
        %v984 = vpop.f32.mrb[0].mxu0
        %v985 = vadd.f32 %v794, %v984
        %v986 = vpop.f32.mrb[0].mxu0
        %987 = vmatprep.mubr.f32.mxu0 0.0
        %v988 = vand.u32 %v606, 4294901760
        %989 = vmatmul.mubr.f32.gmra.mrb[0].mxu0 %v988
        %v990 = vpop.f32.mrb[0].mxu0
        %v991 = vadd.f32 %v804, %v990
        %v992 = vpop.f32.mrb[0].mxu0
        %993 = vmatprep.mubr.f32.mxu0 0.0
        %v994 = vand.u32 %v609, 4294901760
        %995 = vmatmul.mubr.f32.gmra.mrb[0].mxu0 %v994
        %v996 = vpop.f32.mrb[0].mxu0
        %v997 = vadd.f32 %v814, %v996
        %v998 = vpop.f32.mrb[0].mxu0
        %999 = vmatprep.mubr.f32.mxu0 0.0
        %v1000 = vand.u32 %v612, 4294901760
        %1001 = vmatmul.mubr.f32.gmra.mrb[0].mxu0 %v1000
        %v1002 = vpop.f32.mrb[0].mxu0
        %v1003 = vadd.f32 %v824, %v1002
        %v1004 = vpop.f32.mrb[0].mxu0
        %1005 = vmatprep.mubr.f32.mxu0 0.0
        %v1006 = vand.u32 %v615, 4294901760
        %1007 = vmatmul.mubr.f32.gmra.mrb[0].mxu0 %v1006
        %v1008 = vpop.f32.mrb[0].mxu0
        %v1009 = vadd.f32 %v834, %v1008
        %v1010 = vpop.f32.mrb[0].mxu0
        %1011 = vmatprep.mubr.f32.mxu0 0.0
        %v1012 = vand.u32 %v618, 4294901760
        %1013 = vmatmul.mubr.f32.gmra.mrb[0].mxu0 %v1012
        %v1014 = vpop.f32.mrb[0].mxu0
        %v1015 = vadd.f32 %v844, %v1014
        %v1016 = vpop.f32.mrb[0].mxu0
        %1017 = vdwg.mxu0
        %1018 = vmatprep.subr.mxu0 0.0
        %v1019 = vand.u32 %v335, 4294901760
        %v1020 = vsub.f32 %v335, %v1019
        %1021 = vmatpush1.msra.mxu0 %v1020
        %1022 = vmatprep.subr.mxu0 0.0
        %v1023 = vand.u32 %v336, 4294901760
        %v1024 = vsub.f32 %v336, %v1023
        %1025 = vmatpush1.msra.mxu0 %v1024
        %1026 = vmatprep.subr.mxu0 0.0
        %1027 = vmatpush1.msra.mxu0 0.0
        %1028 = vmatprep.subr.mxu0 0.0
        %1029 = vmatpush1.msra.mxu0 0.0
        %1030 = vmatprep.subr.mxu0 0.0
        %1031 = vmatpush1.msra.mxu0 0.0
        %1032 = vmatprep.subr.mxu0 0.0
        %1033 = vmatpush1.msra.mxu0 0.0
        %1034 = vmatprep.subr.mxu0 0.0
        %1035 = vmatpush1.msra.mxu0 0.0
        %1036 = vmatprep.subr.mxu0 0.0
        %1037 = vmatpush1.msra.mxu0 0.0
        %1038 = vmatprep.subr.mxu0 0.0
        %1039 = vmatpush1.msra.mxu0 0.0
        %1040 = vmatprep.subr.mxu0 0.0
        %1041 = vmatpush1.msra.mxu0 0.0
        %1042 = vmatprep.subr.mxu0 0.0
        %1043 = vmatpush1.msra.mxu0 0.0
        %1044 = vmatprep.subr.mxu0 0.0
        %1045 = vmatpush1.msra.mxu0 0.0
        %1046 = vmatprep.subr.mxu0 0.0
        %1047 = vmatpush1.msra.mxu0 0.0
        %1048 = vmatprep.subr.mxu0 0.0
        %1049 = vmatpush1.msra.mxu0 0.0
        %1050 = vmatprep.subr.mxu0 0.0
        %1051 = vmatpush1.msra.mxu0 0.0
        %1052 = vmatprep.subr.mxu0 0.0
        %1053 = vmatpush1.msra.mxu0 0.0
        %1054 = vmatprep.subr.mxu0 0.0
        %1055 = vmatpush1.msra.mxu0 0.0
        %1056 = vmatprep.subr.mxu0 0.0
        %1057 = vmatpush1.msra.mxu0 0.0
        %1058 = vmatprep.subr.mxu0 0.0
        %1059 = vmatpush1.msra.mxu0 0.0
        %1060 = vmatprep.subr.mxu0 0.0
        %1061 = vmatpush1.msra.mxu0 0.0
        %1062 = vmatprep.subr.mxu0 0.0
        %1063 = vmatpush1.msra.mxu0 0.0
        %1064 = vmatprep.subr.mxu0 0.0
        %1065 = vmatpush1.msra.mxu0 0.0
        %1066 = vmatprep.subr.mxu0 0.0
        %1067 = vmatpush1.msra.mxu0 0.0
        %1068 = vmatprep.subr.mxu0 0.0
        %1069 = vmatpush1.msra.mxu0 0.0
        %1070 = vmatprep.subr.mxu0 0.0
        %1071 = vmatpush1.msra.mxu0 0.0
        %1072 = vmatprep.subr.mxu0 0.0
        %1073 = vmatpush1.msra.mxu0 0.0
        %1074 = vmatprep.subr.mxu0 0.0
        %1075 = vmatpush1.msra.mxu0 0.0
        %1076 = vmatprep.subr.mxu0 0.0
        %1077 = vmatpush1.msra.mxu0 0.0
        %1078 = vmatprep.subr.mxu0 0.0
        %1079 = vmatpush1.msra.mxu0 0.0
        %1080 = vmatprep.subr.mxu0 0.0
        %1081 = vmatpush1.msra.mxu0 0.0
        %1082 = vmatprep.subr.mxu0 0.0
        %1083 = vmatpush1.msra.mxu0 0.0
        %1084 = vmatprep.subr.mxu0 0.0
        %1085 = vmatpush1.msra.mxu0 0.0
        %1086 = vmatprep.mubr.f32.mxu0 0.0
        %v1087 = vand.u32 %v573, 4294901760
        %v1088 = vsub.f32 %v573, %v1087
        %1089 = vmatmul.mubr.f32.gmra.mrb[0].mxu0 %v1088
        %v1090 = vpop.f32.mrb[0].mxu0
        %v1091 = vadd.f32 %v925, %v1090
        %v1092 = vpop.f32.mrb[0].mxu0
        %1093 = vmatprep.mubr.f32.mxu0 0.0
        %v1094 = vand.u32 %v576, 4294901760
        %v1095 = vsub.f32 %v576, %v1094
        %1096 = vmatmul.mubr.f32.gmra.mrb[0].mxu0 %v1095
        %v1097 = vpop.f32.mrb[0].mxu0
        %v1098 = vadd.f32 %v931, %v1097
        %v1099 = vpop.f32.mrb[0].mxu0
        %1100 = vmatprep.mubr.f32.mxu0 0.0
        %v1101 = vand.u32 %v579, 4294901760
        %v1102 = vsub.f32 %v579, %v1101
        %1103 = vmatmul.mubr.f32.gmra.mrb[0].mxu0 %v1102
        %v1104 = vpop.f32.mrb[0].mxu0
        %v1105 = vadd.f32 %v937, %v1104
        %v1106 = vpop.f32.mrb[0].mxu0
        %1107 = vmatprep.mubr.f32.mxu0 0.0
        %v1108 = vand.u32 %v582, 4294901760
        %v1109 = vsub.f32 %v582, %v1108
        %1110 = vmatmul.mubr.f32.gmra.mrb[0].mxu0 %v1109
        %v1111 = vpop.f32.mrb[0].mxu0
        %v1112 = vadd.f32 %v943, %v1111
        %v1113 = vpop.f32.mrb[0].mxu0
        %1114 = vmatprep.mubr.f32.mxu0 0.0
        %v1115 = vand.u32 %v585, 4294901760
        %v1116 = vsub.f32 %v585, %v1115
        %1117 = vmatmul.mubr.f32.gmra.mrb[0].mxu0 %v1116
        %v1118 = vpop.f32.mrb[0].mxu0
        %v1119 = vadd.f32 %v949, %v1118
        %v1120 = vpop.f32.mrb[0].mxu0
        %1121 = vmatprep.mubr.f32.mxu0 0.0
        %v1122 = vand.u32 %v588, 4294901760
        %v1123 = vsub.f32 %v588, %v1122
        %1124 = vmatmul.mubr.f32.gmra.mrb[0].mxu0 %v1123
        %v1125 = vpop.f32.mrb[0].mxu0
        %v1126 = vadd.f32 %v955, %v1125
        %v1127 = vpop.f32.mrb[0].mxu0
        %1128 = vmatprep.mubr.f32.mxu0 0.0
        %v1129 = vand.u32 %v591, 4294901760
        %v1130 = vsub.f32 %v591, %v1129
        %1131 = vmatmul.mubr.f32.gmra.mrb[0].mxu0 %v1130
        %v1132 = vpop.f32.mrb[0].mxu0
        %v1133 = vadd.f32 %v961, %v1132
        %v1134 = vpop.f32.mrb[0].mxu0
        %1135 = vmatprep.mubr.f32.mxu0 0.0
        %v1136 = vand.u32 %v594, 4294901760
        %v1137 = vsub.f32 %v594, %v1136
        %1138 = vmatmul.mubr.f32.gmra.mrb[0].mxu0 %v1137
        %v1139 = vpop.f32.mrb[0].mxu0
        %v1140 = vadd.f32 %v967, %v1139
        %v1141 = vpop.f32.mrb[0].mxu0
        %1142 = vmatprep.mubr.f32.mxu0 0.0
        %v1143 = vand.u32 %v597, 4294901760
        %v1144 = vsub.f32 %v597, %v1143
        %1145 = vmatmul.mubr.f32.gmra.mrb[0].mxu0 %v1144
        %v1146 = vpop.f32.mrb[0].mxu0
        %v1147 = vadd.f32 %v973, %v1146
        %v1148 = vpop.f32.mrb[0].mxu0
        %1149 = vmatprep.mubr.f32.mxu0 0.0
        %v1150 = vand.u32 %v600, 4294901760
        %v1151 = vsub.f32 %v600, %v1150
        %1152 = vmatmul.mubr.f32.gmra.mrb[0].mxu0 %v1151
        %v1153 = vpop.f32.mrb[0].mxu0
        %v1154 = vadd.f32 %v979, %v1153
        %v1155 = vpop.f32.mrb[0].mxu0
        %1156 = vmatprep.mubr.f32.mxu0 0.0
        %v1157 = vand.u32 %v603, 4294901760
        %v1158 = vsub.f32 %v603, %v1157
        %1159 = vmatmul.mubr.f32.gmra.mrb[0].mxu0 %v1158
        %v1160 = vpop.f32.mrb[0].mxu0
        %v1161 = vadd.f32 %v985, %v1160
        %v1162 = vpop.f32.mrb[0].mxu0
        %1163 = vmatprep.mubr.f32.mxu0 0.0
        %v1164 = vand.u32 %v606, 4294901760
        %v1165 = vsub.f32 %v606, %v1164
        %1166 = vmatmul.mubr.f32.gmra.mrb[0].mxu0 %v1165
        %v1167 = vpop.f32.mrb[0].mxu0
        %v1168 = vadd.f32 %v991, %v1167
        %v1169 = vpop.f32.mrb[0].mxu0
        %1170 = vmatprep.mubr.f32.mxu0 0.0
        %v1171 = vand.u32 %v609, 4294901760
        %v1172 = vsub.f32 %v609, %v1171
        %1173 = vmatmul.mubr.f32.gmra.mrb[0].mxu0 %v1172
        %v1174 = vpop.f32.mrb[0].mxu0
        %v1175 = vadd.f32 %v997, %v1174
        %v1176 = vpop.f32.mrb[0].mxu0
        %1177 = vmatprep.mubr.f32.mxu0 0.0
        %v1178 = vand.u32 %v612, 4294901760
        %v1179 = vsub.f32 %v612, %v1178
        %1180 = vmatmul.mubr.f32.gmra.mrb[0].mxu0 %v1179
        %v1181 = vpop.f32.mrb[0].mxu0
        %v1182 = vadd.f32 %v1003, %v1181
        %v1183 = vpop.f32.mrb[0].mxu0
        %1184 = vmatprep.mubr.f32.mxu0 0.0
        %v1185 = vand.u32 %v615, 4294901760
        %v1186 = vsub.f32 %v615, %v1185
        %1187 = vmatmul.mubr.f32.gmra.mrb[0].mxu0 %v1186
        %v1188 = vpop.f32.mrb[0].mxu0
        %v1189 = vadd.f32 %v1009, %v1188
        %v1190 = vpop.f32.mrb[0].mxu0
        %1191 = vmatprep.mubr.f32.mxu0 0.0
        %v1192 = vand.u32 %v618, 4294901760
        %v1193 = vsub.f32 %v618, %v1192
        %1194 = vmatmul.mubr.f32.gmra.mrb[0].mxu0 %v1193
        %v1195 = vpop.f32.mrb[0].mxu0
        %v1196 = vadd.f32 %v1015, %v1195
        %v1197 = vpop.f32.mrb[0].mxu0
        %1198 = vdwg.mxu0
        %1199 = vmatprep.subr.mxu0 0.0
        %v1200 = vand.u32 %v335, 4294901760
        %1201 = vmatpush1.msra.mxu0 %v1200
        %1202 = vmatprep.subr.mxu0 0.0
        %v1203 = vand.u32 %v336, 4294901760
        %1204 = vmatpush1.msra.mxu0 %v1203
        %1205 = vmatprep.subr.mxu0 0.0
        %1206 = vmatpush1.msra.mxu0 0.0
        %1207 = vmatprep.subr.mxu0 0.0
        %1208 = vmatpush1.msra.mxu0 0.0
        %1209 = vmatprep.subr.mxu0 0.0
        %1210 = vmatpush1.msra.mxu0 0.0
        %1211 = vmatprep.subr.mxu0 0.0
        %1212 = vmatpush1.msra.mxu0 0.0
        %1213 = vmatprep.subr.mxu0 0.0
        %1214 = vmatpush1.msra.mxu0 0.0
        %1215 = vmatprep.subr.mxu0 0.0
        %1216 = vmatpush1.msra.mxu0 0.0
        %1217 = vmatprep.subr.mxu0 0.0
        %1218 = vmatpush1.msra.mxu0 0.0
        %1219 = vmatprep.subr.mxu0 0.0
        %1220 = vmatpush1.msra.mxu0 0.0
        %1221 = vmatprep.subr.mxu0 0.0
        %1222 = vmatpush1.msra.mxu0 0.0
        %1223 = vmatprep.subr.mxu0 0.0
        %1224 = vmatpush1.msra.mxu0 0.0
        %1225 = vmatprep.subr.mxu0 0.0
        %1226 = vmatpush1.msra.mxu0 0.0
        %1227 = vmatprep.subr.mxu0 0.0
        %1228 = vmatpush1.msra.mxu0 0.0
        %1229 = vmatprep.subr.mxu0 0.0
        %1230 = vmatpush1.msra.mxu0 0.0
        %1231 = vmatprep.subr.mxu0 0.0
        %1232 = vmatpush1.msra.mxu0 0.0
        %1233 = vmatprep.subr.mxu0 0.0
        %1234 = vmatpush1.msra.mxu0 0.0
        %1235 = vmatprep.subr.mxu0 0.0
        %1236 = vmatpush1.msra.mxu0 0.0
        %1237 = vmatprep.subr.mxu0 0.0
        %1238 = vmatpush1.msra.mxu0 0.0
        %1239 = vmatprep.subr.mxu0 0.0
        %1240 = vmatpush1.msra.mxu0 0.0
        %1241 = vmatprep.subr.mxu0 0.0
        %1242 = vmatpush1.msra.mxu0 0.0
        %1243 = vmatprep.subr.mxu0 0.0
        %1244 = vmatpush1.msra.mxu0 0.0
        %1245 = vmatprep.subr.mxu0 0.0
        %1246 = vmatpush1.msra.mxu0 0.0
        %1247 = vmatprep.subr.mxu0 0.0
        %1248 = vmatpush1.msra.mxu0 0.0
        %1249 = vmatprep.subr.mxu0 0.0
        %1250 = vmatpush1.msra.mxu0 0.0
        %1251 = vmatprep.subr.mxu0 0.0
        %1252 = vmatpush1.msra.mxu0 0.0
        %1253 = vmatprep.subr.mxu0 0.0
        %1254 = vmatpush1.msra.mxu0 0.0
        %1255 = vmatprep.subr.mxu0 0.0
        %1256 = vmatpush1.msra.mxu0 0.0
        %1257 = vmatprep.subr.mxu0 0.0
        %1258 = vmatpush1.msra.mxu0 0.0
        %1259 = vmatprep.subr.mxu0 0.0
        %1260 = vmatpush1.msra.mxu0 0.0
        %1261 = vmatprep.subr.mxu0 0.0
        %1262 = vmatpush1.msra.mxu0 0.0
        %1263 = vmatprep.subr.mxu0 0.0
        %1264 = vmatpush1.msra.mxu0 0.0
        %1265 = vmatprep.mubr.f32.mxu0 0.0
        %v1266 = vand.u32 %v573, 4294901760
        %v1267 = vsub.f32 %v573, %v1266
        %v1268 = vand.u32 %v1267, 4294901760
        %1269 = vmatmul.mubr.f32.gmra.mrb[0].mxu0 %v1268
        %v1270 = vpop.f32.mrb[0].mxu0
        %v1271 = vadd.f32 %v1091, %v1270
        %v1272 = vpop.f32.mrb[0].mxu0
        %1273 = vmatprep.mubr.f32.mxu0 0.0
        %v1274 = vand.u32 %v576, 4294901760
        %v1275 = vsub.f32 %v576, %v1274
        %v1276 = vand.u32 %v1275, 4294901760
        %1277 = vmatmul.mubr.f32.gmra.mrb[0].mxu0 %v1276
        %v1278 = vpop.f32.mrb[0].mxu0
        %v1279 = vadd.f32 %v1098, %v1278
        %v1280 = vpop.f32.mrb[0].mxu0
        %1281 = vmatprep.mubr.f32.mxu0 0.0
        %v1282 = vand.u32 %v579, 4294901760
        %v1283 = vsub.f32 %v579, %v1282
        %v1284 = vand.u32 %v1283, 4294901760
        %1285 = vmatmul.mubr.f32.gmra.mrb[0].mxu0 %v1284
        %v1286 = vpop.f32.mrb[0].mxu0
        %v1287 = vadd.f32 %v1105, %v1286
        %v1288 = vpop.f32.mrb[0].mxu0
        %1289 = vmatprep.mubr.f32.mxu0 0.0
        %v1290 = vand.u32 %v582, 4294901760
        %v1291 = vsub.f32 %v582, %v1290
        %v1292 = vand.u32 %v1291, 4294901760
        %1293 = vmatmul.mubr.f32.gmra.mrb[0].mxu0 %v1292
        %v1294 = vpop.f32.mrb[0].mxu0
        %v1295 = vadd.f32 %v1112, %v1294
        %v1296 = vpop.f32.mrb[0].mxu0
        %1297 = vmatprep.mubr.f32.mxu0 0.0
        %v1298 = vand.u32 %v585, 4294901760
        %v1299 = vsub.f32 %v585, %v1298
        %v1300 = vand.u32 %v1299, 4294901760
        %1301 = vmatmul.mubr.f32.gmra.mrb[0].mxu0 %v1300
        %v1302 = vpop.f32.mrb[0].mxu0
        %v1303 = vadd.f32 %v1119, %v1302
        %v1304 = vpop.f32.mrb[0].mxu0
        %1305 = vmatprep.mubr.f32.mxu0 0.0
        %v1306 = vand.u32 %v588, 4294901760
        %v1307 = vsub.f32 %v588, %v1306
        %v1308 = vand.u32 %v1307, 4294901760
        %1309 = vmatmul.mubr.f32.gmra.mrb[0].mxu0 %v1308
        %v1310 = vpop.f32.mrb[0].mxu0
        %v1311 = vadd.f32 %v1126, %v1310
        %v1312 = vpop.f32.mrb[0].mxu0
        %1313 = vmatprep.mubr.f32.mxu0 0.0
        %v1314 = vand.u32 %v591, 4294901760
        %v1315 = vsub.f32 %v591, %v1314
        %v1316 = vand.u32 %v1315, 4294901760
        %1317 = vmatmul.mubr.f32.gmra.mrb[0].mxu0 %v1316
        %v1318 = vpop.f32.mrb[0].mxu0
        %v1319 = vadd.f32 %v1133, %v1318
        %v1320 = vpop.f32.mrb[0].mxu0
        %1321 = vmatprep.mubr.f32.mxu0 0.0
        %v1322 = vand.u32 %v594, 4294901760
        %v1323 = vsub.f32 %v594, %v1322
        %v1324 = vand.u32 %v1323, 4294901760
        %1325 = vmatmul.mubr.f32.gmra.mrb[0].mxu0 %v1324
        %v1326 = vpop.f32.mrb[0].mxu0
        %v1327 = vadd.f32 %v1140, %v1326
        %v1328 = vpop.f32.mrb[0].mxu0
        %1329 = vmatprep.mubr.f32.mxu0 0.0
        %v1330 = vand.u32 %v597, 4294901760
        %v1331 = vsub.f32 %v597, %v1330
        %v1332 = vand.u32 %v1331, 4294901760
        %1333 = vmatmul.mubr.f32.gmra.mrb[0].mxu0 %v1332
        %v1334 = vpop.f32.mrb[0].mxu0
        %v1335 = vadd.f32 %v1147, %v1334
        %v1336 = vpop.f32.mrb[0].mxu0
        %1337 = vmatprep.mubr.f32.mxu0 0.0
        %v1338 = vand.u32 %v600, 4294901760
        %v1339 = vsub.f32 %v600, %v1338
        %v1340 = vand.u32 %v1339, 4294901760
        %1341 = vmatmul.mubr.f32.gmra.mrb[0].mxu0 %v1340
        %v1342 = vpop.f32.mrb[0].mxu0
        %v1343 = vadd.f32 %v1154, %v1342
        %v1344 = vpop.f32.mrb[0].mxu0
        %1345 = vmatprep.mubr.f32.mxu0 0.0
        %v1346 = vand.u32 %v603, 4294901760
        %v1347 = vsub.f32 %v603, %v1346
        %v1348 = vand.u32 %v1347, 4294901760
        %1349 = vmatmul.mubr.f32.gmra.mrb[0].mxu0 %v1348
        %v1350 = vpop.f32.mrb[0].mxu0
        %v1351 = vadd.f32 %v1161, %v1350
        %v1352 = vpop.f32.mrb[0].mxu0
        %1353 = vmatprep.mubr.f32.mxu0 0.0
        %v1354 = vand.u32 %v606, 4294901760
        %v1355 = vsub.f32 %v606, %v1354
        %v1356 = vand.u32 %v1355, 4294901760
        %1357 = vmatmul.mubr.f32.gmra.mrb[0].mxu0 %v1356
        %v1358 = vpop.f32.mrb[0].mxu0
        %v1359 = vadd.f32 %v1168, %v1358
        %v1360 = vpop.f32.mrb[0].mxu0
        %1361 = vmatprep.mubr.f32.mxu0 0.0
        %v1362 = vand.u32 %v609, 4294901760
        %v1363 = vsub.f32 %v609, %v1362
        %v1364 = vand.u32 %v1363, 4294901760
        %1365 = vmatmul.mubr.f32.gmra.mrb[0].mxu0 %v1364
        %v1366 = vpop.f32.mrb[0].mxu0
        %v1367 = vadd.f32 %v1175, %v1366
        %v1368 = vpop.f32.mrb[0].mxu0
        %1369 = vmatprep.mubr.f32.mxu0 0.0
        %v1370 = vand.u32 %v612, 4294901760
        %v1371 = vsub.f32 %v612, %v1370
        %v1372 = vand.u32 %v1371, 4294901760
        %1373 = vmatmul.mubr.f32.gmra.mrb[0].mxu0 %v1372
        %v1374 = vpop.f32.mrb[0].mxu0
        %v1375 = vadd.f32 %v1182, %v1374
        %v1376 = vpop.f32.mrb[0].mxu0
        %1377 = vmatprep.mubr.f32.mxu0 0.0
        %v1378 = vand.u32 %v615, 4294901760
        %v1379 = vsub.f32 %v615, %v1378
        %v1380 = vand.u32 %v1379, 4294901760
        %1381 = vmatmul.mubr.f32.gmra.mrb[0].mxu0 %v1380
        %v1382 = vpop.f32.mrb[0].mxu0
        %v1383 = vadd.f32 %v1189, %v1382
        %v1384 = vpop.f32.mrb[0].mxu0
        %1385 = vmatprep.mubr.f32.mxu0 0.0
        %v1386 = vand.u32 %v618, 4294901760
        %v1387 = vsub.f32 %v618, %v1386
        %v1388 = vand.u32 %v1387, 4294901760
        %1389 = vmatmul.mubr.f32.gmra.mrb[0].mxu0 %v1388
        %v1390 = vpop.f32.mrb[0].mxu0
        %v1391 = vadd.f32 %v1196, %v1390
        %v1392 = vpop.f32.mrb[0].mxu0
        %1393 = vdwg.mxu0
        %1394 = vmatprep.subr.mxu0 0.0
        %v1395 = vand.u32 %v335, 4294901760
        %v1396 = vsub.f32 %v335, %v1395
        %v1397 = vand.u32 %v1396, 4294901760
        %1398 = vmatpush1.msra.mxu0 %v1397
        %1399 = vmatprep.subr.mxu0 0.0
        %v1400 = vand.u32 %v336, 4294901760
        %v1401 = vsub.f32 %v336, %v1400
        %v1402 = vand.u32 %v1401, 4294901760
        %1403 = vmatpush1.msra.mxu0 %v1402
        %1404 = vmatprep.subr.mxu0 0.0
        %1405 = vmatpush1.msra.mxu0 0.0
        %1406 = vmatprep.subr.mxu0 0.0
        %1407 = vmatpush1.msra.mxu0 0.0
        %1408 = vmatprep.subr.mxu0 0.0
        %1409 = vmatpush1.msra.mxu0 0.0
        %1410 = vmatprep.subr.mxu0 0.0
        %1411 = vmatpush1.msra.mxu0 0.0
        %1412 = vmatprep.subr.mxu0 0.0
        %1413 = vmatpush1.msra.mxu0 0.0
        %1414 = vmatprep.subr.mxu0 0.0
        %1415 = vmatpush1.msra.mxu0 0.0
        %1416 = vmatprep.subr.mxu0 0.0
        %1417 = vmatpush1.msra.mxu0 0.0
        %1418 = vmatprep.subr.mxu0 0.0
        %1419 = vmatpush1.msra.mxu0 0.0
        %1420 = vmatprep.subr.mxu0 0.0
        %1421 = vmatpush1.msra.mxu0 0.0
        %1422 = vmatprep.subr.mxu0 0.0
        %1423 = vmatpush1.msra.mxu0 0.0
        %1424 = vmatprep.subr.mxu0 0.0
        %1425 = vmatpush1.msra.mxu0 0.0
        %1426 = vmatprep.subr.mxu0 0.0
        %1427 = vmatpush1.msra.mxu0 0.0
        %1428 = vmatprep.subr.mxu0 0.0
        %1429 = vmatpush1.msra.mxu0 0.0
        %1430 = vmatprep.subr.mxu0 0.0
        %1431 = vmatpush1.msra.mxu0 0.0
        %1432 = vmatprep.subr.mxu0 0.0
        %1433 = vmatpush1.msra.mxu0 0.0
        %1434 = vmatprep.subr.mxu0 0.0
        %1435 = vmatpush1.msra.mxu0 0.0
        %1436 = vmatprep.subr.mxu0 0.0
        %1437 = vmatpush1.msra.mxu0 0.0
        %1438 = vmatprep.subr.mxu0 0.0
        %1439 = vmatpush1.msra.mxu0 0.0
        %1440 = vmatprep.subr.mxu0 0.0
        %1441 = vmatpush1.msra.mxu0 0.0
        %1442 = vmatprep.subr.mxu0 0.0
        %1443 = vmatpush1.msra.mxu0 0.0
        %1444 = vmatprep.subr.mxu0 0.0
        %1445 = vmatpush1.msra.mxu0 0.0
        %1446 = vmatprep.subr.mxu0 0.0
        %1447 = vmatpush1.msra.mxu0 0.0
        %1448 = vmatprep.subr.mxu0 0.0
        %1449 = vmatpush1.msra.mxu0 0.0
        %1450 = vmatprep.subr.mxu0 0.0
        %1451 = vmatpush1.msra.mxu0 0.0
        %1452 = vmatprep.subr.mxu0 0.0
        %1453 = vmatpush1.msra.mxu0 0.0
        %1454 = vmatprep.subr.mxu0 0.0
        %1455 = vmatpush1.msra.mxu0 0.0
        %1456 = vmatprep.subr.mxu0 0.0
        %1457 = vmatpush1.msra.mxu0 0.0
        %1458 = vmatprep.subr.mxu0 0.0
        %1459 = vmatpush1.msra.mxu0 0.0
        %1460 = vmatprep.subr.mxu0 0.0
        %1461 = vmatpush1.msra.mxu0 0.0
        %1462 = vmatprep.subr.mxu0 0.0
        %1463 = vmatpush1.msra.mxu0 0.0
        %1464 = vmatprep.mubr.f32.mxu0 0.0
        %v1465 = vand.u32 %v573, 4294901760
        %1466 = vmatmul.mubr.f32.gmra.mrb[0].mxu0 %v1465
        %v1467 = vpop.f32.mrb[0].mxu0
        %v1468 = vadd.f32 %v1271, %v1467
        %v1469 = vpop.f32.mrb[0].mxu0
        %1470 = vmatprep.mubr.f32.mxu0 0.0
        %v1471 = vand.u32 %v576, 4294901760
        %1472 = vmatmul.mubr.f32.gmra.mrb[0].mxu0 %v1471
        %v1473 = vpop.f32.mrb[0].mxu0
        %v1474 = vadd.f32 %v1279, %v1473
        %v1475 = vpop.f32.mrb[0].mxu0
        %1476 = vmatprep.mubr.f32.mxu0 0.0
        %v1477 = vand.u32 %v579, 4294901760
        %1478 = vmatmul.mubr.f32.gmra.mrb[0].mxu0 %v1477
        %v1479 = vpop.f32.mrb[0].mxu0
        %v1480 = vadd.f32 %v1287, %v1479
        %v1481 = vpop.f32.mrb[0].mxu0
        %1482 = vmatprep.mubr.f32.mxu0 0.0
        %v1483 = vand.u32 %v582, 4294901760
        %1484 = vmatmul.mubr.f32.gmra.mrb[0].mxu0 %v1483
        %v1485 = vpop.f32.mrb[0].mxu0
        %v1486 = vadd.f32 %v1295, %v1485
        %v1487 = vpop.f32.mrb[0].mxu0
        %1488 = vmatprep.mubr.f32.mxu0 0.0
        %v1489 = vand.u32 %v585, 4294901760
        %1490 = vmatmul.mubr.f32.gmra.mrb[0].mxu0 %v1489
        %v1491 = vpop.f32.mrb[0].mxu0
        %v1492 = vadd.f32 %v1303, %v1491
        %v1493 = vpop.f32.mrb[0].mxu0
        %1494 = vmatprep.mubr.f32.mxu0 0.0
        %v1495 = vand.u32 %v588, 4294901760
        %1496 = vmatmul.mubr.f32.gmra.mrb[0].mxu0 %v1495
        %v1497 = vpop.f32.mrb[0].mxu0
        %v1498 = vadd.f32 %v1311, %v1497
        %v1499 = vpop.f32.mrb[0].mxu0
        %1500 = vmatprep.mubr.f32.mxu0 0.0
        %v1501 = vand.u32 %v591, 4294901760
        %1502 = vmatmul.mubr.f32.gmra.mrb[0].mxu0 %v1501
        %v1503 = vpop.f32.mrb[0].mxu0
        %v1504 = vadd.f32 %v1319, %v1503
        %v1505 = vpop.f32.mrb[0].mxu0
        %1506 = vmatprep.mubr.f32.mxu0 0.0
        %v1507 = vand.u32 %v594, 4294901760
        %1508 = vmatmul.mubr.f32.gmra.mrb[0].mxu0 %v1507
        %v1509 = vpop.f32.mrb[0].mxu0
        %v1510 = vadd.f32 %v1327, %v1509
        %v1511 = vpop.f32.mrb[0].mxu0
        %1512 = vmatprep.mubr.f32.mxu0 0.0
        %v1513 = vand.u32 %v597, 4294901760
        %1514 = vmatmul.mubr.f32.gmra.mrb[0].mxu0 %v1513
        %v1515 = vpop.f32.mrb[0].mxu0
        %v1516 = vadd.f32 %v1335, %v1515
        %v1517 = vpop.f32.mrb[0].mxu0
        %1518 = vmatprep.mubr.f32.mxu0 0.0
        %v1519 = vand.u32 %v600, 4294901760
        %1520 = vmatmul.mubr.f32.gmra.mrb[0].mxu0 %v1519
        %v1521 = vpop.f32.mrb[0].mxu0
        %v1522 = vadd.f32 %v1343, %v1521
        %v1523 = vpop.f32.mrb[0].mxu0
        %1524 = vmatprep.mubr.f32.mxu0 0.0
        %v1525 = vand.u32 %v603, 4294901760
        %1526 = vmatmul.mubr.f32.gmra.mrb[0].mxu0 %v1525
        %v1527 = vpop.f32.mrb[0].mxu0
        %v1528 = vadd.f32 %v1351, %v1527
        %v1529 = vpop.f32.mrb[0].mxu0
        %1530 = vmatprep.mubr.f32.mxu0 0.0
        %v1531 = vand.u32 %v606, 4294901760
        %1532 = vmatmul.mubr.f32.gmra.mrb[0].mxu0 %v1531
        %v1533 = vpop.f32.mrb[0].mxu0
        %v1534 = vadd.f32 %v1359, %v1533
        %v1535 = vpop.f32.mrb[0].mxu0
        %1536 = vmatprep.mubr.f32.mxu0 0.0
        %v1537 = vand.u32 %v609, 4294901760
        %1538 = vmatmul.mubr.f32.gmra.mrb[0].mxu0 %v1537
        %v1539 = vpop.f32.mrb[0].mxu0
        %v1540 = vadd.f32 %v1367, %v1539
        %v1541 = vpop.f32.mrb[0].mxu0
        %1542 = vmatprep.mubr.f32.mxu0 0.0
        %v1543 = vand.u32 %v612, 4294901760
        %1544 = vmatmul.mubr.f32.gmra.mrb[0].mxu0 %v1543
        %v1545 = vpop.f32.mrb[0].mxu0
        %v1546 = vadd.f32 %v1375, %v1545
        %v1547 = vpop.f32.mrb[0].mxu0
        %1548 = vmatprep.mubr.f32.mxu0 0.0
        %v1549 = vand.u32 %v615, 4294901760
        %1550 = vmatmul.mubr.f32.gmra.mrb[0].mxu0 %v1549
        %v1551 = vpop.f32.mrb[0].mxu0
        %v1552 = vadd.f32 %v1383, %v1551
        %v1553 = vpop.f32.mrb[0].mxu0
        %1554 = vmatprep.mubr.f32.mxu0 0.0
        %v1555 = vand.u32 %v618, 4294901760
        %1556 = vmatmul.mubr.f32.gmra.mrb[0].mxu0 %v1555
        %v1557 = vpop.f32.mrb[0].mxu0
        %v1558 = vadd.f32 %v1391, %v1557
        %v1559 = vpop.f32.mrb[0].mxu0
        %1560 = vdwg.mxu0
        %1561 = vmatprep.subr.mxu0 0.0
        %v1562 = vand.u32 %v335, 4294901760
        %1563 = vmatpush1.msra.mxu0 %v1562
        %1564 = vmatprep.subr.mxu0 0.0
        %v1565 = vand.u32 %v336, 4294901760
        %1566 = vmatpush1.msra.mxu0 %v1565
        %1567 = vmatprep.subr.mxu0 0.0
        %1568 = vmatpush1.msra.mxu0 0.0
        %1569 = vmatprep.subr.mxu0 0.0
        %1570 = vmatpush1.msra.mxu0 0.0
        %1571 = vmatprep.subr.mxu0 0.0
        %1572 = vmatpush1.msra.mxu0 0.0
        %1573 = vmatprep.subr.mxu0 0.0
        %1574 = vmatpush1.msra.mxu0 0.0
        %1575 = vmatprep.subr.mxu0 0.0
        %1576 = vmatpush1.msra.mxu0 0.0
        %1577 = vmatprep.subr.mxu0 0.0
        %1578 = vmatpush1.msra.mxu0 0.0
        %1579 = vmatprep.subr.mxu0 0.0
        %1580 = vmatpush1.msra.mxu0 0.0
        %1581 = vmatprep.subr.mxu0 0.0
        %1582 = vmatpush1.msra.mxu0 0.0
        %1583 = vmatprep.subr.mxu0 0.0
        %1584 = vmatpush1.msra.mxu0 0.0
        %1585 = vmatprep.subr.mxu0 0.0
        %1586 = vmatpush1.msra.mxu0 0.0
        %1587 = vmatprep.subr.mxu0 0.0
        %1588 = vmatpush1.msra.mxu0 0.0
        %1589 = vmatprep.subr.mxu0 0.0
        %1590 = vmatpush1.msra.mxu0 0.0
        %1591 = vmatprep.subr.mxu0 0.0
        %1592 = vmatpush1.msra.mxu0 0.0
        %1593 = vmatprep.subr.mxu0 0.0
        %1594 = vmatpush1.msra.mxu0 0.0
        %1595 = vmatprep.subr.mxu0 0.0
        %1596 = vmatpush1.msra.mxu0 0.0
        %1597 = vmatprep.subr.mxu0 0.0
        %1598 = vmatpush1.msra.mxu0 0.0
        %1599 = vmatprep.subr.mxu0 0.0
        %1600 = vmatpush1.msra.mxu0 0.0
        %1601 = vmatprep.subr.mxu0 0.0
        %1602 = vmatpush1.msra.mxu0 0.0
        %1603 = vmatprep.subr.mxu0 0.0
        %1604 = vmatpush1.msra.mxu0 0.0
        %1605 = vmatprep.subr.mxu0 0.0
        %1606 = vmatpush1.msra.mxu0 0.0
        %1607 = vmatprep.subr.mxu0 0.0
        %1608 = vmatpush1.msra.mxu0 0.0
        %1609 = vmatprep.subr.mxu0 0.0
        %1610 = vmatpush1.msra.mxu0 0.0
        %1611 = vmatprep.subr.mxu0 0.0
        %1612 = vmatpush1.msra.mxu0 0.0
        %1613 = vmatprep.subr.mxu0 0.0
        %1614 = vmatpush1.msra.mxu0 0.0
        %1615 = vmatprep.subr.mxu0 0.0
        %1616 = vmatpush1.msra.mxu0 0.0
        %1617 = vmatprep.subr.mxu0 0.0
        %1618 = vmatpush1.msra.mxu0 0.0
        %1619 = vmatprep.subr.mxu0 0.0
        %1620 = vmatpush1.msra.mxu0 0.0
        %1621 = vmatprep.subr.mxu0 0.0
        %1622 = vmatpush1.msra.mxu0 0.0
        %1623 = vmatprep.subr.mxu0 0.0
        %1624 = vmatpush1.msra.mxu0 0.0
        %1625 = vmatprep.subr.mxu0 0.0
        %1626 = vmatpush1.msra.mxu0 0.0
        %1627 = vmatprep.mubr.f32.mxu0 0.0
        %v1628 = vand.u32 %v573, 4294901760
        %1629 = vmatmul.mubr.f32.gmra.mrb[0].mxu0 %v1628
        %v1630 = vpop.f32.mrb[0].mxu0
        %v1631 = vadd.f32 %v1468, %v1630
        %v1632 = vpop.f32.mrb[0].mxu0
        %1633 = vmatprep.mubr.f32.mxu0 0.0
        %v1634 = vand.u32 %v576, 4294901760
        %1635 = vmatmul.mubr.f32.gmra.mrb[0].mxu0 %v1634
        %v1636 = vpop.f32.mrb[0].mxu0
        %v1637 = vadd.f32 %v1474, %v1636
        %v1638 = vpop.f32.mrb[0].mxu0
        %1639 = vmatprep.mubr.f32.mxu0 0.0
        %v1640 = vand.u32 %v579, 4294901760
        %1641 = vmatmul.mubr.f32.gmra.mrb[0].mxu0 %v1640
        %v1642 = vpop.f32.mrb[0].mxu0
        %v1643 = vadd.f32 %v1480, %v1642
        %v1644 = vpop.f32.mrb[0].mxu0
        %1645 = vmatprep.mubr.f32.mxu0 0.0
        %v1646 = vand.u32 %v582, 4294901760
        %1647 = vmatmul.mubr.f32.gmra.mrb[0].mxu0 %v1646
        %v1648 = vpop.f32.mrb[0].mxu0
        %v1649 = vadd.f32 %v1486, %v1648
        %v1650 = vpop.f32.mrb[0].mxu0
        %1651 = vmatprep.mubr.f32.mxu0 0.0
        %v1652 = vand.u32 %v585, 4294901760
        %1653 = vmatmul.mubr.f32.gmra.mrb[0].mxu0 %v1652
        %v1654 = vpop.f32.mrb[0].mxu0
        %v1655 = vadd.f32 %v1492, %v1654
        %v1656 = vpop.f32.mrb[0].mxu0
        %1657 = vmatprep.mubr.f32.mxu0 0.0
        %v1658 = vand.u32 %v588, 4294901760
        %1659 = vmatmul.mubr.f32.gmra.mrb[0].mxu0 %v1658
        %v1660 = vpop.f32.mrb[0].mxu0
        %v1661 = vadd.f32 %v1498, %v1660
        %v1662 = vpop.f32.mrb[0].mxu0
        %1663 = vmatprep.mubr.f32.mxu0 0.0
        %v1664 = vand.u32 %v591, 4294901760
        %1665 = vmatmul.mubr.f32.gmra.mrb[0].mxu0 %v1664
        %v1666 = vpop.f32.mrb[0].mxu0
        %v1667 = vadd.f32 %v1504, %v1666
        %v1668 = vpop.f32.mrb[0].mxu0
        %1669 = vmatprep.mubr.f32.mxu0 0.0
        %v1670 = vand.u32 %v594, 4294901760
        %1671 = vmatmul.mubr.f32.gmra.mrb[0].mxu0 %v1670
        %v1672 = vpop.f32.mrb[0].mxu0
        %v1673 = vadd.f32 %v1510, %v1672
        %v1674 = vpop.f32.mrb[0].mxu0
        %1675 = vmatprep.mubr.f32.mxu0 0.0
        %v1676 = vand.u32 %v597, 4294901760
        %1677 = vmatmul.mubr.f32.gmra.mrb[0].mxu0 %v1676
        %v1678 = vpop.f32.mrb[0].mxu0
        %v1679 = vadd.f32 %v1516, %v1678
        %v1680 = vpop.f32.mrb[0].mxu0
        %1681 = vmatprep.mubr.f32.mxu0 0.0
        %v1682 = vand.u32 %v600, 4294901760
        %1683 = vmatmul.mubr.f32.gmra.mrb[0].mxu0 %v1682
        %v1684 = vpop.f32.mrb[0].mxu0
        %v1685 = vadd.f32 %v1522, %v1684
        %v1686 = vpop.f32.mrb[0].mxu0
        %1687 = vmatprep.mubr.f32.mxu0 0.0
        %v1688 = vand.u32 %v603, 4294901760
        %1689 = vmatmul.mubr.f32.gmra.mrb[0].mxu0 %v1688
        %v1690 = vpop.f32.mrb[0].mxu0
        %v1691 = vadd.f32 %v1528, %v1690
        %v1692 = vpop.f32.mrb[0].mxu0
        %1693 = vmatprep.mubr.f32.mxu0 0.0
        %v1694 = vand.u32 %v606, 4294901760
        %1695 = vmatmul.mubr.f32.gmra.mrb[0].mxu0 %v1694
        %v1696 = vpop.f32.mrb[0].mxu0
        %v1697 = vadd.f32 %v1534, %v1696
        %v1698 = vpop.f32.mrb[0].mxu0
        %1699 = vmatprep.mubr.f32.mxu0 0.0
        %v1700 = vand.u32 %v609, 4294901760
        %1701 = vmatmul.mubr.f32.gmra.mrb[0].mxu0 %v1700
        %v1702 = vpop.f32.mrb[0].mxu0
        %v1703 = vadd.f32 %v1540, %v1702
        %v1704 = vpop.f32.mrb[0].mxu0
        %1705 = vmatprep.mubr.f32.mxu0 0.0
        %v1706 = vand.u32 %v612, 4294901760
        %1707 = vmatmul.mubr.f32.gmra.mrb[0].mxu0 %v1706
        %v1708 = vpop.f32.mrb[0].mxu0
        %v1709 = vadd.f32 %v1546, %v1708
        %v1710 = vpop.f32.mrb[0].mxu0
        %1711 = vmatprep.mubr.f32.mxu0 0.0
        %v1712 = vand.u32 %v615, 4294901760
        %1713 = vmatmul.mubr.f32.gmra.mrb[0].mxu0 %v1712
        %v1714 = vpop.f32.mrb[0].mxu0
        %v1715 = vadd.f32 %v1552, %v1714
        %v1716 = vpop.f32.mrb[0].mxu0
        %1717 = vmatprep.mubr.f32.mxu0 0.0
        %v1718 = vand.u32 %v618, 4294901760
        %1719 = vmatmul.mubr.f32.gmra.mrb[0].mxu0 %v1718
        %v1720 = vpop.f32.mrb[0].mxu0
        %v1721 = vadd.f32 %v1558, %v1720
        %v1722 = vpop.f32.mrb[0].mxu0
        %1723 = vdwg.mxu0
        %v1725 = vsel %vm571, %v555, 0
        %v1728 = vsel %vm571, %v556, 0
        %v1731 = vsel %vm571, %v557, 0
        %v1734 = vsel %vm571, %v558, 0
        %v1737 = vsel %vm571, %v559, 0
        %v1740 = vsel %vm571, %v560, 0
        %v1743 = vsel %vm571, %v561, 0
        %v1746 = vsel %vm571, %v562, 0
        %v1749 = vsel %vm571, %v563, 0
        %v1752 = vsel %vm571, %v564, 0
        %v1755 = vsel %vm571, %v565, 0
        %v1758 = vsel %vm571, %v566, 0
        %v1761 = vsel %vm571, %v567, 0
        %v1764 = vsel %vm571, %v568, 0
        %v1767 = vsel %vm571, %v569, 0
        %v1770 = vsel %vm571, %v570, 0
        %1772 = vmatprep.subr.mxu0 0.0
        %v1773 = vand.u32 %v335, 4294901760
        %1774 = vmatpush1.msra.mxu0 %v1773
        %1775 = vmatprep.subr.mxu0 0.0
        %v1776 = vand.u32 %v336, 4294901760
        %1777 = vmatpush1.msra.mxu0 %v1776
        %1778 = vmatprep.subr.mxu0 0.0
        %1779 = vmatpush1.msra.mxu0 0.0
        %1780 = vmatprep.subr.mxu0 0.0
        %1781 = vmatpush1.msra.mxu0 0.0
        %1782 = vmatprep.subr.mxu0 0.0
        %1783 = vmatpush1.msra.mxu0 0.0
        %1784 = vmatprep.subr.mxu0 0.0
        %1785 = vmatpush1.msra.mxu0 0.0
        %1786 = vmatprep.subr.mxu0 0.0
        %1787 = vmatpush1.msra.mxu0 0.0
        %1788 = vmatprep.subr.mxu0 0.0
        %1789 = vmatpush1.msra.mxu0 0.0
        %1790 = vmatprep.subr.mxu0 0.0
        %1791 = vmatpush1.msra.mxu0 0.0
        %1792 = vmatprep.subr.mxu0 0.0
        %1793 = vmatpush1.msra.mxu0 0.0
        %1794 = vmatprep.subr.mxu0 0.0
        %1795 = vmatpush1.msra.mxu0 0.0
        %1796 = vmatprep.subr.mxu0 0.0
        %1797 = vmatpush1.msra.mxu0 0.0
        %1798 = vmatprep.subr.mxu0 0.0
        %1799 = vmatpush1.msra.mxu0 0.0
        %1800 = vmatprep.subr.mxu0 0.0
        %1801 = vmatpush1.msra.mxu0 0.0
        %1802 = vmatprep.subr.mxu0 0.0
        %1803 = vmatpush1.msra.mxu0 0.0
        %1804 = vmatprep.subr.mxu0 0.0
        %1805 = vmatpush1.msra.mxu0 0.0
        %1806 = vmatprep.subr.mxu0 0.0
        %1807 = vmatpush1.msra.mxu0 0.0
        %1808 = vmatprep.subr.mxu0 0.0
        %1809 = vmatpush1.msra.mxu0 0.0
        %1810 = vmatprep.subr.mxu0 0.0
        %1811 = vmatpush1.msra.mxu0 0.0
        %1812 = vmatprep.subr.mxu0 0.0
        %1813 = vmatpush1.msra.mxu0 0.0
        %1814 = vmatprep.subr.mxu0 0.0
        %1815 = vmatpush1.msra.mxu0 0.0
        %1816 = vmatprep.subr.mxu0 0.0
        %1817 = vmatpush1.msra.mxu0 0.0
        %1818 = vmatprep.subr.mxu0 0.0
        %1819 = vmatpush1.msra.mxu0 0.0
        %1820 = vmatprep.subr.mxu0 0.0
        %1821 = vmatpush1.msra.mxu0 0.0
        %1822 = vmatprep.subr.mxu0 0.0
        %1823 = vmatpush1.msra.mxu0 0.0
        %1824 = vmatprep.subr.mxu0 0.0
        %1825 = vmatpush1.msra.mxu0 0.0
        %1826 = vmatprep.subr.mxu0 0.0
        %1827 = vmatpush1.msra.mxu0 0.0
        %1828 = vmatprep.subr.mxu0 0.0
        %1829 = vmatpush1.msra.mxu0 0.0
        %1830 = vmatprep.subr.mxu0 0.0
        %1831 = vmatpush1.msra.mxu0 0.0
        %1832 = vmatprep.subr.mxu0 0.0
        %1833 = vmatpush1.msra.mxu0 0.0
        %1834 = vmatprep.subr.mxu0 0.0
        %1835 = vmatpush1.msra.mxu0 0.0
        %1836 = vmatprep.subr.mxu0 0.0
        %1837 = vmatpush1.msra.mxu0 0.0
        %1838 = vmatprep.mubr.f32.mxu0 0.0
        %v1839 = vand.u32 %v1725, 4294901760
        %v1840 = vsub.f32 %v1725, %v1839
        %v1841 = vand.u32 %v1840, 4294901760
        %v1842 = vsub.f32 %v1840, %v1841
        %v1843 = vand.u32 %v1842, 4294901760
        %1844 = vmatmul.mubr.f32.gmra.mrb[0].mxu0 %v1843
        %v1845 = vpop.f32.mrb[0].mxu0
        %v1846 = vadd.f32 0.0, %v1845
        %v1847 = vpop.f32.mrb[0].mxu0
        %1848 = vmatprep.mubr.f32.mxu0 0.0
        %v1849 = vand.u32 %v1728, 4294901760
        %v1850 = vsub.f32 %v1728, %v1849
        %v1851 = vand.u32 %v1850, 4294901760
        %v1852 = vsub.f32 %v1850, %v1851
        %v1853 = vand.u32 %v1852, 4294901760
        %1854 = vmatmul.mubr.f32.gmra.mrb[0].mxu0 %v1853
        %v1855 = vpop.f32.mrb[0].mxu0
        %v1856 = vadd.f32 0.0, %v1855
        %v1857 = vpop.f32.mrb[0].mxu0
        %1858 = vmatprep.mubr.f32.mxu0 0.0
        %v1859 = vand.u32 %v1731, 4294901760
        %v1860 = vsub.f32 %v1731, %v1859
        %v1861 = vand.u32 %v1860, 4294901760
        %v1862 = vsub.f32 %v1860, %v1861
        %v1863 = vand.u32 %v1862, 4294901760
        %1864 = vmatmul.mubr.f32.gmra.mrb[0].mxu0 %v1863
        %v1865 = vpop.f32.mrb[0].mxu0
        %v1866 = vadd.f32 0.0, %v1865
        %v1867 = vpop.f32.mrb[0].mxu0
        %1868 = vmatprep.mubr.f32.mxu0 0.0
        %v1869 = vand.u32 %v1734, 4294901760
        %v1870 = vsub.f32 %v1734, %v1869
        %v1871 = vand.u32 %v1870, 4294901760
        %v1872 = vsub.f32 %v1870, %v1871
        %v1873 = vand.u32 %v1872, 4294901760
        %1874 = vmatmul.mubr.f32.gmra.mrb[0].mxu0 %v1873
        %v1875 = vpop.f32.mrb[0].mxu0
        %v1876 = vadd.f32 0.0, %v1875
        %v1877 = vpop.f32.mrb[0].mxu0
        %1878 = vmatprep.mubr.f32.mxu0 0.0
        %v1879 = vand.u32 %v1737, 4294901760
        %v1880 = vsub.f32 %v1737, %v1879
        %v1881 = vand.u32 %v1880, 4294901760
        %v1882 = vsub.f32 %v1880, %v1881
        %v1883 = vand.u32 %v1882, 4294901760
        %1884 = vmatmul.mubr.f32.gmra.mrb[0].mxu0 %v1883
        %v1885 = vpop.f32.mrb[0].mxu0
        %v1886 = vadd.f32 0.0, %v1885
        %v1887 = vpop.f32.mrb[0].mxu0
        %1888 = vmatprep.mubr.f32.mxu0 0.0
        %v1889 = vand.u32 %v1740, 4294901760
        %v1890 = vsub.f32 %v1740, %v1889
        %v1891 = vand.u32 %v1890, 4294901760
        %v1892 = vsub.f32 %v1890, %v1891
        %v1893 = vand.u32 %v1892, 4294901760
        %1894 = vmatmul.mubr.f32.gmra.mrb[0].mxu0 %v1893
        %v1895 = vpop.f32.mrb[0].mxu0
        %v1896 = vadd.f32 0.0, %v1895
        %v1897 = vpop.f32.mrb[0].mxu0
        %1898 = vmatprep.mubr.f32.mxu0 0.0
        %v1899 = vand.u32 %v1743, 4294901760
        %v1900 = vsub.f32 %v1743, %v1899
        %v1901 = vand.u32 %v1900, 4294901760
        %v1902 = vsub.f32 %v1900, %v1901
        %v1903 = vand.u32 %v1902, 4294901760
        %1904 = vmatmul.mubr.f32.gmra.mrb[0].mxu0 %v1903
        %v1905 = vpop.f32.mrb[0].mxu0
        %v1906 = vadd.f32 0.0, %v1905
        %v1907 = vpop.f32.mrb[0].mxu0
        %1908 = vmatprep.mubr.f32.mxu0 0.0
        %v1909 = vand.u32 %v1746, 4294901760
        %v1910 = vsub.f32 %v1746, %v1909
        %v1911 = vand.u32 %v1910, 4294901760
        %v1912 = vsub.f32 %v1910, %v1911
        %v1913 = vand.u32 %v1912, 4294901760
        %1914 = vmatmul.mubr.f32.gmra.mrb[0].mxu0 %v1913
        %v1915 = vpop.f32.mrb[0].mxu0
        %v1916 = vadd.f32 0.0, %v1915
        %v1917 = vpop.f32.mrb[0].mxu0
        %1918 = vmatprep.mubr.f32.mxu0 0.0
        %v1919 = vand.u32 %v1749, 4294901760
        %v1920 = vsub.f32 %v1749, %v1919
        %v1921 = vand.u32 %v1920, 4294901760
        %v1922 = vsub.f32 %v1920, %v1921
        %v1923 = vand.u32 %v1922, 4294901760
        %1924 = vmatmul.mubr.f32.gmra.mrb[0].mxu0 %v1923
        %v1925 = vpop.f32.mrb[0].mxu0
        %v1926 = vadd.f32 0.0, %v1925
        %v1927 = vpop.f32.mrb[0].mxu0
        %1928 = vmatprep.mubr.f32.mxu0 0.0
        %v1929 = vand.u32 %v1752, 4294901760
        %v1930 = vsub.f32 %v1752, %v1929
        %v1931 = vand.u32 %v1930, 4294901760
        %v1932 = vsub.f32 %v1930, %v1931
        %v1933 = vand.u32 %v1932, 4294901760
        %1934 = vmatmul.mubr.f32.gmra.mrb[0].mxu0 %v1933
        %v1935 = vpop.f32.mrb[0].mxu0
        %v1936 = vadd.f32 0.0, %v1935
        %v1937 = vpop.f32.mrb[0].mxu0
        %1938 = vmatprep.mubr.f32.mxu0 0.0
        %v1939 = vand.u32 %v1755, 4294901760
        %v1940 = vsub.f32 %v1755, %v1939
        %v1941 = vand.u32 %v1940, 4294901760
        %v1942 = vsub.f32 %v1940, %v1941
        %v1943 = vand.u32 %v1942, 4294901760
        %1944 = vmatmul.mubr.f32.gmra.mrb[0].mxu0 %v1943
        %v1945 = vpop.f32.mrb[0].mxu0
        %v1946 = vadd.f32 0.0, %v1945
        %v1947 = vpop.f32.mrb[0].mxu0
        %1948 = vmatprep.mubr.f32.mxu0 0.0
        %v1949 = vand.u32 %v1758, 4294901760
        %v1950 = vsub.f32 %v1758, %v1949
        %v1951 = vand.u32 %v1950, 4294901760
        %v1952 = vsub.f32 %v1950, %v1951
        %v1953 = vand.u32 %v1952, 4294901760
        %1954 = vmatmul.mubr.f32.gmra.mrb[0].mxu0 %v1953
        %v1955 = vpop.f32.mrb[0].mxu0
        %v1956 = vadd.f32 0.0, %v1955
        %v1957 = vpop.f32.mrb[0].mxu0
        %1958 = vmatprep.mubr.f32.mxu0 0.0
        %v1959 = vand.u32 %v1761, 4294901760
        %v1960 = vsub.f32 %v1761, %v1959
        %v1961 = vand.u32 %v1960, 4294901760
        %v1962 = vsub.f32 %v1960, %v1961
        %v1963 = vand.u32 %v1962, 4294901760
        %1964 = vmatmul.mubr.f32.gmra.mrb[0].mxu0 %v1963
        %v1965 = vpop.f32.mrb[0].mxu0
        %v1966 = vadd.f32 0.0, %v1965
        %v1967 = vpop.f32.mrb[0].mxu0
        %1968 = vmatprep.mubr.f32.mxu0 0.0
        %v1969 = vand.u32 %v1764, 4294901760
        %v1970 = vsub.f32 %v1764, %v1969
        %v1971 = vand.u32 %v1970, 4294901760
        %v1972 = vsub.f32 %v1970, %v1971
        %v1973 = vand.u32 %v1972, 4294901760
        %1974 = vmatmul.mubr.f32.gmra.mrb[0].mxu0 %v1973
        %v1975 = vpop.f32.mrb[0].mxu0
        %v1976 = vadd.f32 0.0, %v1975
        %v1977 = vpop.f32.mrb[0].mxu0
        %1978 = vmatprep.mubr.f32.mxu0 0.0
        %v1979 = vand.u32 %v1767, 4294901760
        %v1980 = vsub.f32 %v1767, %v1979
        %v1981 = vand.u32 %v1980, 4294901760
        %v1982 = vsub.f32 %v1980, %v1981
        %v1983 = vand.u32 %v1982, 4294901760
        %1984 = vmatmul.mubr.f32.gmra.mrb[0].mxu0 %v1983
        %v1985 = vpop.f32.mrb[0].mxu0
        %v1986 = vadd.f32 0.0, %v1985
        %v1987 = vpop.f32.mrb[0].mxu0
        %1988 = vmatprep.mubr.f32.mxu0 0.0
        %v1989 = vand.u32 %v1770, 4294901760
        %v1990 = vsub.f32 %v1770, %v1989
        %v1991 = vand.u32 %v1990, 4294901760
        %v1992 = vsub.f32 %v1990, %v1991
        %v1993 = vand.u32 %v1992, 4294901760
        %1994 = vmatmul.mubr.f32.gmra.mrb[0].mxu0 %v1993
        %v1995 = vpop.f32.mrb[0].mxu0
        %v1996 = vadd.f32 0.0, %v1995
        %v1997 = vpop.f32.mrb[0].mxu0
        %1998 = vdwg.mxu0
        %1999 = vmatprep.subr.mxu0 0.0
        %v2000 = vand.u32 %v335, 4294901760
        %v2001 = vsub.f32 %v335, %v2000
        %v2002 = vand.u32 %v2001, 4294901760
        %v2003 = vsub.f32 %v2001, %v2002
        %v2004 = vand.u32 %v2003, 4294901760
        %2005 = vmatpush1.msra.mxu0 %v2004
        %2006 = vmatprep.subr.mxu0 0.0
        %v2007 = vand.u32 %v336, 4294901760
        %v2008 = vsub.f32 %v336, %v2007
        %v2009 = vand.u32 %v2008, 4294901760
        %v2010 = vsub.f32 %v2008, %v2009
        %v2011 = vand.u32 %v2010, 4294901760
        %2012 = vmatpush1.msra.mxu0 %v2011
        %2013 = vmatprep.subr.mxu0 0.0
        %2014 = vmatpush1.msra.mxu0 0.0
        %2015 = vmatprep.subr.mxu0 0.0
        %2016 = vmatpush1.msra.mxu0 0.0
        %2017 = vmatprep.subr.mxu0 0.0
        %2018 = vmatpush1.msra.mxu0 0.0
        %2019 = vmatprep.subr.mxu0 0.0
        %2020 = vmatpush1.msra.mxu0 0.0
        %2021 = vmatprep.subr.mxu0 0.0
        %2022 = vmatpush1.msra.mxu0 0.0
        %2023 = vmatprep.subr.mxu0 0.0
        %2024 = vmatpush1.msra.mxu0 0.0
        %2025 = vmatprep.subr.mxu0 0.0
        %2026 = vmatpush1.msra.mxu0 0.0
        %2027 = vmatprep.subr.mxu0 0.0
        %2028 = vmatpush1.msra.mxu0 0.0
        %2029 = vmatprep.subr.mxu0 0.0
        %2030 = vmatpush1.msra.mxu0 0.0
        %2031 = vmatprep.subr.mxu0 0.0
        %2032 = vmatpush1.msra.mxu0 0.0
        %2033 = vmatprep.subr.mxu0 0.0
        %2034 = vmatpush1.msra.mxu0 0.0
        %2035 = vmatprep.subr.mxu0 0.0
        %2036 = vmatpush1.msra.mxu0 0.0
        %2037 = vmatprep.subr.mxu0 0.0
        %2038 = vmatpush1.msra.mxu0 0.0
        %2039 = vmatprep.subr.mxu0 0.0
        %2040 = vmatpush1.msra.mxu0 0.0
        %2041 = vmatprep.subr.mxu0 0.0
        %2042 = vmatpush1.msra.mxu0 0.0
        %2043 = vmatprep.subr.mxu0 0.0
        %2044 = vmatpush1.msra.mxu0 0.0
        %2045 = vmatprep.subr.mxu0 0.0
        %2046 = vmatpush1.msra.mxu0 0.0
        %2047 = vmatprep.subr.mxu0 0.0
        %2048 = vmatpush1.msra.mxu0 0.0
        %2049 = vmatprep.subr.mxu0 0.0
        %2050 = vmatpush1.msra.mxu0 0.0
        %2051 = vmatprep.subr.mxu0 0.0
        %2052 = vmatpush1.msra.mxu0 0.0
        %2053 = vmatprep.subr.mxu0 0.0
        %2054 = vmatpush1.msra.mxu0 0.0
        %2055 = vmatprep.subr.mxu0 0.0
        %2056 = vmatpush1.msra.mxu0 0.0
        %2057 = vmatprep.subr.mxu0 0.0
        %2058 = vmatpush1.msra.mxu0 0.0
        %2059 = vmatprep.subr.mxu0 0.0
        %2060 = vmatpush1.msra.mxu0 0.0
        %2061 = vmatprep.subr.mxu0 0.0
        %2062 = vmatpush1.msra.mxu0 0.0
        %2063 = vmatprep.subr.mxu0 0.0
        %2064 = vmatpush1.msra.mxu0 0.0
        %2065 = vmatprep.subr.mxu0 0.0
        %2066 = vmatpush1.msra.mxu0 0.0
        %2067 = vmatprep.subr.mxu0 0.0
        %2068 = vmatpush1.msra.mxu0 0.0
        %2069 = vmatprep.subr.mxu0 0.0
        %2070 = vmatpush1.msra.mxu0 0.0
        %2071 = vmatprep.subr.mxu0 0.0
        %2072 = vmatpush1.msra.mxu0 0.0
        %2073 = vmatprep.mubr.f32.mxu0 0.0
        %v2074 = vand.u32 %v1725, 4294901760
        %2075 = vmatmul.mubr.f32.gmra.mrb[0].mxu0 %v2074
        %v2076 = vpop.f32.mrb[0].mxu0
        %v2077 = vadd.f32 %v1846, %v2076
        %v2078 = vpop.f32.mrb[0].mxu0
        %2079 = vmatprep.mubr.f32.mxu0 0.0
        %v2080 = vand.u32 %v1728, 4294901760
        %2081 = vmatmul.mubr.f32.gmra.mrb[0].mxu0 %v2080
        %v2082 = vpop.f32.mrb[0].mxu0
        %v2083 = vadd.f32 %v1856, %v2082
        %v2084 = vpop.f32.mrb[0].mxu0
        %2085 = vmatprep.mubr.f32.mxu0 0.0
        %v2086 = vand.u32 %v1731, 4294901760
        %2087 = vmatmul.mubr.f32.gmra.mrb[0].mxu0 %v2086
        %v2088 = vpop.f32.mrb[0].mxu0
        %v2089 = vadd.f32 %v1866, %v2088
        %v2090 = vpop.f32.mrb[0].mxu0
        %2091 = vmatprep.mubr.f32.mxu0 0.0
        %v2092 = vand.u32 %v1734, 4294901760
        %2093 = vmatmul.mubr.f32.gmra.mrb[0].mxu0 %v2092
        %v2094 = vpop.f32.mrb[0].mxu0
        %v2095 = vadd.f32 %v1876, %v2094
        %v2096 = vpop.f32.mrb[0].mxu0
        %2097 = vmatprep.mubr.f32.mxu0 0.0
        %v2098 = vand.u32 %v1737, 4294901760
        %2099 = vmatmul.mubr.f32.gmra.mrb[0].mxu0 %v2098
        %v2100 = vpop.f32.mrb[0].mxu0
        %v2101 = vadd.f32 %v1886, %v2100
        %v2102 = vpop.f32.mrb[0].mxu0
        %2103 = vmatprep.mubr.f32.mxu0 0.0
        %v2104 = vand.u32 %v1740, 4294901760
        %2105 = vmatmul.mubr.f32.gmra.mrb[0].mxu0 %v2104
        %v2106 = vpop.f32.mrb[0].mxu0
        %v2107 = vadd.f32 %v1896, %v2106
        %v2108 = vpop.f32.mrb[0].mxu0
        %2109 = vmatprep.mubr.f32.mxu0 0.0
        %v2110 = vand.u32 %v1743, 4294901760
        %2111 = vmatmul.mubr.f32.gmra.mrb[0].mxu0 %v2110
        %v2112 = vpop.f32.mrb[0].mxu0
        %v2113 = vadd.f32 %v1906, %v2112
        %v2114 = vpop.f32.mrb[0].mxu0
        %2115 = vmatprep.mubr.f32.mxu0 0.0
        %v2116 = vand.u32 %v1746, 4294901760
        %2117 = vmatmul.mubr.f32.gmra.mrb[0].mxu0 %v2116
        %v2118 = vpop.f32.mrb[0].mxu0
        %v2119 = vadd.f32 %v1916, %v2118
        %v2120 = vpop.f32.mrb[0].mxu0
        %2121 = vmatprep.mubr.f32.mxu0 0.0
        %v2122 = vand.u32 %v1749, 4294901760
        %2123 = vmatmul.mubr.f32.gmra.mrb[0].mxu0 %v2122
        %v2124 = vpop.f32.mrb[0].mxu0
        %v2125 = vadd.f32 %v1926, %v2124
        %v2126 = vpop.f32.mrb[0].mxu0
        %2127 = vmatprep.mubr.f32.mxu0 0.0
        %v2128 = vand.u32 %v1752, 4294901760
        %2129 = vmatmul.mubr.f32.gmra.mrb[0].mxu0 %v2128
        %v2130 = vpop.f32.mrb[0].mxu0
        %v2131 = vadd.f32 %v1936, %v2130
        %v2132 = vpop.f32.mrb[0].mxu0
        %2133 = vmatprep.mubr.f32.mxu0 0.0
        %v2134 = vand.u32 %v1755, 4294901760
        %2135 = vmatmul.mubr.f32.gmra.mrb[0].mxu0 %v2134
        %v2136 = vpop.f32.mrb[0].mxu0
        %v2137 = vadd.f32 %v1946, %v2136
        %v2138 = vpop.f32.mrb[0].mxu0
        %2139 = vmatprep.mubr.f32.mxu0 0.0
        %v2140 = vand.u32 %v1758, 4294901760
        %2141 = vmatmul.mubr.f32.gmra.mrb[0].mxu0 %v2140
        %v2142 = vpop.f32.mrb[0].mxu0
        %v2143 = vadd.f32 %v1956, %v2142
        %v2144 = vpop.f32.mrb[0].mxu0
        %2145 = vmatprep.mubr.f32.mxu0 0.0
        %v2146 = vand.u32 %v1761, 4294901760
        %2147 = vmatmul.mubr.f32.gmra.mrb[0].mxu0 %v2146
        %v2148 = vpop.f32.mrb[0].mxu0
        %v2149 = vadd.f32 %v1966, %v2148
        %v2150 = vpop.f32.mrb[0].mxu0
        %2151 = vmatprep.mubr.f32.mxu0 0.0
        %v2152 = vand.u32 %v1764, 4294901760
        %2153 = vmatmul.mubr.f32.gmra.mrb[0].mxu0 %v2152
        %v2154 = vpop.f32.mrb[0].mxu0
        %v2155 = vadd.f32 %v1976, %v2154
        %v2156 = vpop.f32.mrb[0].mxu0
        %2157 = vmatprep.mubr.f32.mxu0 0.0
        %v2158 = vand.u32 %v1767, 4294901760
        %2159 = vmatmul.mubr.f32.gmra.mrb[0].mxu0 %v2158
        %v2160 = vpop.f32.mrb[0].mxu0
        %v2161 = vadd.f32 %v1986, %v2160
        %v2162 = vpop.f32.mrb[0].mxu0
        %2163 = vmatprep.mubr.f32.mxu0 0.0
        %v2164 = vand.u32 %v1770, 4294901760
        %2165 = vmatmul.mubr.f32.gmra.mrb[0].mxu0 %v2164
        %v2166 = vpop.f32.mrb[0].mxu0
        %v2167 = vadd.f32 %v1996, %v2166
        %v2168 = vpop.f32.mrb[0].mxu0
        %2169 = vdwg.mxu0
        %2170 = vmatprep.subr.mxu0 0.0
        %v2171 = vand.u32 %v335, 4294901760
        %v2172 = vsub.f32 %v335, %v2171
        %2173 = vmatpush1.msra.mxu0 %v2172
        %2174 = vmatprep.subr.mxu0 0.0
        %v2175 = vand.u32 %v336, 4294901760
        %v2176 = vsub.f32 %v336, %v2175
        %2177 = vmatpush1.msra.mxu0 %v2176
        %2178 = vmatprep.subr.mxu0 0.0
        %2179 = vmatpush1.msra.mxu0 0.0
        %2180 = vmatprep.subr.mxu0 0.0
        %2181 = vmatpush1.msra.mxu0 0.0
        %2182 = vmatprep.subr.mxu0 0.0
        %2183 = vmatpush1.msra.mxu0 0.0
        %2184 = vmatprep.subr.mxu0 0.0
        %2185 = vmatpush1.msra.mxu0 0.0
        %2186 = vmatprep.subr.mxu0 0.0
        %2187 = vmatpush1.msra.mxu0 0.0
        %2188 = vmatprep.subr.mxu0 0.0
        %2189 = vmatpush1.msra.mxu0 0.0
        %2190 = vmatprep.subr.mxu0 0.0
        %2191 = vmatpush1.msra.mxu0 0.0
        %2192 = vmatprep.subr.mxu0 0.0
        %2193 = vmatpush1.msra.mxu0 0.0
        %2194 = vmatprep.subr.mxu0 0.0
        %2195 = vmatpush1.msra.mxu0 0.0
        %2196 = vmatprep.subr.mxu0 0.0
        %2197 = vmatpush1.msra.mxu0 0.0
        %2198 = vmatprep.subr.mxu0 0.0
        %2199 = vmatpush1.msra.mxu0 0.0
        %2200 = vmatprep.subr.mxu0 0.0
        %2201 = vmatpush1.msra.mxu0 0.0
        %2202 = vmatprep.subr.mxu0 0.0
        %2203 = vmatpush1.msra.mxu0 0.0
        %2204 = vmatprep.subr.mxu0 0.0
        %2205 = vmatpush1.msra.mxu0 0.0
        %2206 = vmatprep.subr.mxu0 0.0
        %2207 = vmatpush1.msra.mxu0 0.0
        %2208 = vmatprep.subr.mxu0 0.0
        %2209 = vmatpush1.msra.mxu0 0.0
        %2210 = vmatprep.subr.mxu0 0.0
        %2211 = vmatpush1.msra.mxu0 0.0
        %2212 = vmatprep.subr.mxu0 0.0
        %2213 = vmatpush1.msra.mxu0 0.0
        %2214 = vmatprep.subr.mxu0 0.0
        %2215 = vmatpush1.msra.mxu0 0.0
        %2216 = vmatprep.subr.mxu0 0.0
        %2217 = vmatpush1.msra.mxu0 0.0
        %2218 = vmatprep.subr.mxu0 0.0
        %2219 = vmatpush1.msra.mxu0 0.0
        %2220 = vmatprep.subr.mxu0 0.0
        %2221 = vmatpush1.msra.mxu0 0.0
        %2222 = vmatprep.subr.mxu0 0.0
        %2223 = vmatpush1.msra.mxu0 0.0
        %2224 = vmatprep.subr.mxu0 0.0
        %2225 = vmatpush1.msra.mxu0 0.0
        %2226 = vmatprep.subr.mxu0 0.0
        %2227 = vmatpush1.msra.mxu0 0.0
        %2228 = vmatprep.subr.mxu0 0.0
        %2229 = vmatpush1.msra.mxu0 0.0
        %2230 = vmatprep.subr.mxu0 0.0
        %2231 = vmatpush1.msra.mxu0 0.0
        %2232 = vmatprep.subr.mxu0 0.0
        %2233 = vmatpush1.msra.mxu0 0.0
        %2234 = vmatprep.subr.mxu0 0.0
        %2235 = vmatpush1.msra.mxu0 0.0
        %2236 = vmatprep.subr.mxu0 0.0
        %2237 = vmatpush1.msra.mxu0 0.0
        %2238 = vmatprep.mubr.f32.mxu0 0.0
        %v2239 = vand.u32 %v1725, 4294901760
        %v2240 = vsub.f32 %v1725, %v2239
        %2241 = vmatmul.mubr.f32.gmra.mrb[0].mxu0 %v2240
        %v2242 = vpop.f32.mrb[0].mxu0
        %v2243 = vadd.f32 %v2077, %v2242
        %v2244 = vpop.f32.mrb[0].mxu0
        %2245 = vmatprep.mubr.f32.mxu0 0.0
        %v2246 = vand.u32 %v1728, 4294901760
        %v2247 = vsub.f32 %v1728, %v2246
        %2248 = vmatmul.mubr.f32.gmra.mrb[0].mxu0 %v2247
        %v2249 = vpop.f32.mrb[0].mxu0
        %v2250 = vadd.f32 %v2083, %v2249
        %v2251 = vpop.f32.mrb[0].mxu0
        %2252 = vmatprep.mubr.f32.mxu0 0.0
        %v2253 = vand.u32 %v1731, 4294901760
        %v2254 = vsub.f32 %v1731, %v2253
        %2255 = vmatmul.mubr.f32.gmra.mrb[0].mxu0 %v2254
        %v2256 = vpop.f32.mrb[0].mxu0
        %v2257 = vadd.f32 %v2089, %v2256
        %v2258 = vpop.f32.mrb[0].mxu0
        %2259 = vmatprep.mubr.f32.mxu0 0.0
        %v2260 = vand.u32 %v1734, 4294901760
        %v2261 = vsub.f32 %v1734, %v2260
        %2262 = vmatmul.mubr.f32.gmra.mrb[0].mxu0 %v2261
        %v2263 = vpop.f32.mrb[0].mxu0
        %v2264 = vadd.f32 %v2095, %v2263
        %v2265 = vpop.f32.mrb[0].mxu0
        %2266 = vmatprep.mubr.f32.mxu0 0.0
        %v2267 = vand.u32 %v1737, 4294901760
        %v2268 = vsub.f32 %v1737, %v2267
        %2269 = vmatmul.mubr.f32.gmra.mrb[0].mxu0 %v2268
        %v2270 = vpop.f32.mrb[0].mxu0
        %v2271 = vadd.f32 %v2101, %v2270
        %v2272 = vpop.f32.mrb[0].mxu0
        %2273 = vmatprep.mubr.f32.mxu0 0.0
        %v2274 = vand.u32 %v1740, 4294901760
        %v2275 = vsub.f32 %v1740, %v2274
        %2276 = vmatmul.mubr.f32.gmra.mrb[0].mxu0 %v2275
        %v2277 = vpop.f32.mrb[0].mxu0
        %v2278 = vadd.f32 %v2107, %v2277
        %v2279 = vpop.f32.mrb[0].mxu0
        %2280 = vmatprep.mubr.f32.mxu0 0.0
        %v2281 = vand.u32 %v1743, 4294901760
        %v2282 = vsub.f32 %v1743, %v2281
        %2283 = vmatmul.mubr.f32.gmra.mrb[0].mxu0 %v2282
        %v2284 = vpop.f32.mrb[0].mxu0
        %v2285 = vadd.f32 %v2113, %v2284
        %v2286 = vpop.f32.mrb[0].mxu0
        %2287 = vmatprep.mubr.f32.mxu0 0.0
        %v2288 = vand.u32 %v1746, 4294901760
        %v2289 = vsub.f32 %v1746, %v2288
        %2290 = vmatmul.mubr.f32.gmra.mrb[0].mxu0 %v2289
        %v2291 = vpop.f32.mrb[0].mxu0
        %v2292 = vadd.f32 %v2119, %v2291
        %v2293 = vpop.f32.mrb[0].mxu0
        %2294 = vmatprep.mubr.f32.mxu0 0.0
        %v2295 = vand.u32 %v1749, 4294901760
        %v2296 = vsub.f32 %v1749, %v2295
        %2297 = vmatmul.mubr.f32.gmra.mrb[0].mxu0 %v2296
        %v2298 = vpop.f32.mrb[0].mxu0
        %v2299 = vadd.f32 %v2125, %v2298
        %v2300 = vpop.f32.mrb[0].mxu0
        %2301 = vmatprep.mubr.f32.mxu0 0.0
        %v2302 = vand.u32 %v1752, 4294901760
        %v2303 = vsub.f32 %v1752, %v2302
        %2304 = vmatmul.mubr.f32.gmra.mrb[0].mxu0 %v2303
        %v2305 = vpop.f32.mrb[0].mxu0
        %v2306 = vadd.f32 %v2131, %v2305
        %v2307 = vpop.f32.mrb[0].mxu0
        %2308 = vmatprep.mubr.f32.mxu0 0.0
        %v2309 = vand.u32 %v1755, 4294901760
        %v2310 = vsub.f32 %v1755, %v2309
        %2311 = vmatmul.mubr.f32.gmra.mrb[0].mxu0 %v2310
        %v2312 = vpop.f32.mrb[0].mxu0
        %v2313 = vadd.f32 %v2137, %v2312
        %v2314 = vpop.f32.mrb[0].mxu0
        %2315 = vmatprep.mubr.f32.mxu0 0.0
        %v2316 = vand.u32 %v1758, 4294901760
        %v2317 = vsub.f32 %v1758, %v2316
        %2318 = vmatmul.mubr.f32.gmra.mrb[0].mxu0 %v2317
        %v2319 = vpop.f32.mrb[0].mxu0
        %v2320 = vadd.f32 %v2143, %v2319
        %v2321 = vpop.f32.mrb[0].mxu0
        %2322 = vmatprep.mubr.f32.mxu0 0.0
        %v2323 = vand.u32 %v1761, 4294901760
        %v2324 = vsub.f32 %v1761, %v2323
        %2325 = vmatmul.mubr.f32.gmra.mrb[0].mxu0 %v2324
        %v2326 = vpop.f32.mrb[0].mxu0
        %v2327 = vadd.f32 %v2149, %v2326
        %v2328 = vpop.f32.mrb[0].mxu0
        %2329 = vmatprep.mubr.f32.mxu0 0.0
        %v2330 = vand.u32 %v1764, 4294901760
        %v2331 = vsub.f32 %v1764, %v2330
        %2332 = vmatmul.mubr.f32.gmra.mrb[0].mxu0 %v2331
        %v2333 = vpop.f32.mrb[0].mxu0
        %v2334 = vadd.f32 %v2155, %v2333
        %v2335 = vpop.f32.mrb[0].mxu0
        %2336 = vmatprep.mubr.f32.mxu0 0.0
        %v2337 = vand.u32 %v1767, 4294901760
        %v2338 = vsub.f32 %v1767, %v2337
        %2339 = vmatmul.mubr.f32.gmra.mrb[0].mxu0 %v2338
        %v2340 = vpop.f32.mrb[0].mxu0
        %v2341 = vadd.f32 %v2161, %v2340
        %v2342 = vpop.f32.mrb[0].mxu0
        %2343 = vmatprep.mubr.f32.mxu0 0.0
        %v2344 = vand.u32 %v1770, 4294901760
        %v2345 = vsub.f32 %v1770, %v2344
        %2346 = vmatmul.mubr.f32.gmra.mrb[0].mxu0 %v2345
        %v2347 = vpop.f32.mrb[0].mxu0
        %v2348 = vadd.f32 %v2167, %v2347
        %v2349 = vpop.f32.mrb[0].mxu0
        %2350 = vdwg.mxu0
        %2351 = vmatprep.subr.mxu0 0.0
        %v2352 = vand.u32 %v335, 4294901760
        %2353 = vmatpush1.msra.mxu0 %v2352
        %2354 = vmatprep.subr.mxu0 0.0
        %v2355 = vand.u32 %v336, 4294901760
        %2356 = vmatpush1.msra.mxu0 %v2355
        %2357 = vmatprep.subr.mxu0 0.0
        %2358 = vmatpush1.msra.mxu0 0.0
        %2359 = vmatprep.subr.mxu0 0.0
        %2360 = vmatpush1.msra.mxu0 0.0
        %2361 = vmatprep.subr.mxu0 0.0
        %2362 = vmatpush1.msra.mxu0 0.0
        %2363 = vmatprep.subr.mxu0 0.0
        %2364 = vmatpush1.msra.mxu0 0.0
        %2365 = vmatprep.subr.mxu0 0.0
        %2366 = vmatpush1.msra.mxu0 0.0
        %2367 = vmatprep.subr.mxu0 0.0
        %2368 = vmatpush1.msra.mxu0 0.0
        %2369 = vmatprep.subr.mxu0 0.0
        %2370 = vmatpush1.msra.mxu0 0.0
        %2371 = vmatprep.subr.mxu0 0.0
        %2372 = vmatpush1.msra.mxu0 0.0
        %2373 = vmatprep.subr.mxu0 0.0
        %2374 = vmatpush1.msra.mxu0 0.0
        %2375 = vmatprep.subr.mxu0 0.0
        %2376 = vmatpush1.msra.mxu0 0.0
        %2377 = vmatprep.subr.mxu0 0.0
        %2378 = vmatpush1.msra.mxu0 0.0
        %2379 = vmatprep.subr.mxu0 0.0
        %2380 = vmatpush1.msra.mxu0 0.0
        %2381 = vmatprep.subr.mxu0 0.0
        %2382 = vmatpush1.msra.mxu0 0.0
        %2383 = vmatprep.subr.mxu0 0.0
        %2384 = vmatpush1.msra.mxu0 0.0
        %2385 = vmatprep.subr.mxu0 0.0
        %2386 = vmatpush1.msra.mxu0 0.0
        %2387 = vmatprep.subr.mxu0 0.0
        %2388 = vmatpush1.msra.mxu0 0.0
        %2389 = vmatprep.subr.mxu0 0.0
        %2390 = vmatpush1.msra.mxu0 0.0
        %2391 = vmatprep.subr.mxu0 0.0
        %2392 = vmatpush1.msra.mxu0 0.0
        %2393 = vmatprep.subr.mxu0 0.0
        %2394 = vmatpush1.msra.mxu0 0.0
        %2395 = vmatprep.subr.mxu0 0.0
        %2396 = vmatpush1.msra.mxu0 0.0
        %2397 = vmatprep.subr.mxu0 0.0
        %2398 = vmatpush1.msra.mxu0 0.0
        %2399 = vmatprep.subr.mxu0 0.0
        %2400 = vmatpush1.msra.mxu0 0.0
        %2401 = vmatprep.subr.mxu0 0.0
        %2402 = vmatpush1.msra.mxu0 0.0
        %2403 = vmatprep.subr.mxu0 0.0
        %2404 = vmatpush1.msra.mxu0 0.0
        %2405 = vmatprep.subr.mxu0 0.0
        %2406 = vmatpush1.msra.mxu0 0.0
        %2407 = vmatprep.subr.mxu0 0.0
        %2408 = vmatpush1.msra.mxu0 0.0
        %2409 = vmatprep.subr.mxu0 0.0
        %2410 = vmatpush1.msra.mxu0 0.0
        %2411 = vmatprep.subr.mxu0 0.0
        %2412 = vmatpush1.msra.mxu0 0.0
        %2413 = vmatprep.subr.mxu0 0.0
        %2414 = vmatpush1.msra.mxu0 0.0
        %2415 = vmatprep.subr.mxu0 0.0
        %2416 = vmatpush1.msra.mxu0 0.0
        %2417 = vmatprep.mubr.f32.mxu0 0.0
        %v2418 = vand.u32 %v1725, 4294901760
        %v2419 = vsub.f32 %v1725, %v2418
        %v2420 = vand.u32 %v2419, 4294901760
        %2421 = vmatmul.mubr.f32.gmra.mrb[0].mxu0 %v2420
        %v2422 = vpop.f32.mrb[0].mxu0
        %v2423 = vadd.f32 %v2243, %v2422
        %v2424 = vpop.f32.mrb[0].mxu0
        %2425 = vmatprep.mubr.f32.mxu0 0.0
        %v2426 = vand.u32 %v1728, 4294901760
        %v2427 = vsub.f32 %v1728, %v2426
        %v2428 = vand.u32 %v2427, 4294901760
        %2429 = vmatmul.mubr.f32.gmra.mrb[0].mxu0 %v2428
        %v2430 = vpop.f32.mrb[0].mxu0
        %v2431 = vadd.f32 %v2250, %v2430
        %v2432 = vpop.f32.mrb[0].mxu0
        %2433 = vmatprep.mubr.f32.mxu0 0.0
        %v2434 = vand.u32 %v1731, 4294901760
        %v2435 = vsub.f32 %v1731, %v2434
        %v2436 = vand.u32 %v2435, 4294901760
        %2437 = vmatmul.mubr.f32.gmra.mrb[0].mxu0 %v2436
        %v2438 = vpop.f32.mrb[0].mxu0
        %v2439 = vadd.f32 %v2257, %v2438
        %v2440 = vpop.f32.mrb[0].mxu0
        %2441 = vmatprep.mubr.f32.mxu0 0.0
        %v2442 = vand.u32 %v1734, 4294901760
        %v2443 = vsub.f32 %v1734, %v2442
        %v2444 = vand.u32 %v2443, 4294901760
        %2445 = vmatmul.mubr.f32.gmra.mrb[0].mxu0 %v2444
        %v2446 = vpop.f32.mrb[0].mxu0
        %v2447 = vadd.f32 %v2264, %v2446
        %v2448 = vpop.f32.mrb[0].mxu0
        %2449 = vmatprep.mubr.f32.mxu0 0.0
        %v2450 = vand.u32 %v1737, 4294901760
        %v2451 = vsub.f32 %v1737, %v2450
        %v2452 = vand.u32 %v2451, 4294901760
        %2453 = vmatmul.mubr.f32.gmra.mrb[0].mxu0 %v2452
        %v2454 = vpop.f32.mrb[0].mxu0
        %v2455 = vadd.f32 %v2271, %v2454
        %v2456 = vpop.f32.mrb[0].mxu0
        %2457 = vmatprep.mubr.f32.mxu0 0.0
        %v2458 = vand.u32 %v1740, 4294901760
        %v2459 = vsub.f32 %v1740, %v2458
        %v2460 = vand.u32 %v2459, 4294901760
        %2461 = vmatmul.mubr.f32.gmra.mrb[0].mxu0 %v2460
        %v2462 = vpop.f32.mrb[0].mxu0
        %v2463 = vadd.f32 %v2278, %v2462
        %v2464 = vpop.f32.mrb[0].mxu0
        %2465 = vmatprep.mubr.f32.mxu0 0.0
        %v2466 = vand.u32 %v1743, 4294901760
        %v2467 = vsub.f32 %v1743, %v2466
        %v2468 = vand.u32 %v2467, 4294901760
        %2469 = vmatmul.mubr.f32.gmra.mrb[0].mxu0 %v2468
        %v2470 = vpop.f32.mrb[0].mxu0
        %v2471 = vadd.f32 %v2285, %v2470
        %v2472 = vpop.f32.mrb[0].mxu0
        %2473 = vmatprep.mubr.f32.mxu0 0.0
        %v2474 = vand.u32 %v1746, 4294901760
        %v2475 = vsub.f32 %v1746, %v2474
        %v2476 = vand.u32 %v2475, 4294901760
        %2477 = vmatmul.mubr.f32.gmra.mrb[0].mxu0 %v2476
        %v2478 = vpop.f32.mrb[0].mxu0
        %v2479 = vadd.f32 %v2292, %v2478
        %v2480 = vpop.f32.mrb[0].mxu0
        %2481 = vmatprep.mubr.f32.mxu0 0.0
        %v2482 = vand.u32 %v1749, 4294901760
        %v2483 = vsub.f32 %v1749, %v2482
        %v2484 = vand.u32 %v2483, 4294901760
        %2485 = vmatmul.mubr.f32.gmra.mrb[0].mxu0 %v2484
        %v2486 = vpop.f32.mrb[0].mxu0
        %v2487 = vadd.f32 %v2299, %v2486
        %v2488 = vpop.f32.mrb[0].mxu0
        %2489 = vmatprep.mubr.f32.mxu0 0.0
        %v2490 = vand.u32 %v1752, 4294901760
        %v2491 = vsub.f32 %v1752, %v2490
        %v2492 = vand.u32 %v2491, 4294901760
        %2493 = vmatmul.mubr.f32.gmra.mrb[0].mxu0 %v2492
        %v2494 = vpop.f32.mrb[0].mxu0
        %v2495 = vadd.f32 %v2306, %v2494
        %v2496 = vpop.f32.mrb[0].mxu0
        %2497 = vmatprep.mubr.f32.mxu0 0.0
        %v2498 = vand.u32 %v1755, 4294901760
        %v2499 = vsub.f32 %v1755, %v2498
        %v2500 = vand.u32 %v2499, 4294901760
        %2501 = vmatmul.mubr.f32.gmra.mrb[0].mxu0 %v2500
        %v2502 = vpop.f32.mrb[0].mxu0
        %v2503 = vadd.f32 %v2313, %v2502
        %v2504 = vpop.f32.mrb[0].mxu0
        %2505 = vmatprep.mubr.f32.mxu0 0.0
        %v2506 = vand.u32 %v1758, 4294901760
        %v2507 = vsub.f32 %v1758, %v2506
        %v2508 = vand.u32 %v2507, 4294901760
        %2509 = vmatmul.mubr.f32.gmra.mrb[0].mxu0 %v2508
        %v2510 = vpop.f32.mrb[0].mxu0
        %v2511 = vadd.f32 %v2320, %v2510
        %v2512 = vpop.f32.mrb[0].mxu0
        %2513 = vmatprep.mubr.f32.mxu0 0.0
        %v2514 = vand.u32 %v1761, 4294901760
        %v2515 = vsub.f32 %v1761, %v2514
        %v2516 = vand.u32 %v2515, 4294901760
        %2517 = vmatmul.mubr.f32.gmra.mrb[0].mxu0 %v2516
        %v2518 = vpop.f32.mrb[0].mxu0
        %v2519 = vadd.f32 %v2327, %v2518
        %v2520 = vpop.f32.mrb[0].mxu0
        %2521 = vmatprep.mubr.f32.mxu0 0.0
        %v2522 = vand.u32 %v1764, 4294901760
        %v2523 = vsub.f32 %v1764, %v2522
        %v2524 = vand.u32 %v2523, 4294901760
        %2525 = vmatmul.mubr.f32.gmra.mrb[0].mxu0 %v2524
        %v2526 = vpop.f32.mrb[0].mxu0
        %v2527 = vadd.f32 %v2334, %v2526
        %v2528 = vpop.f32.mrb[0].mxu0
        %2529 = vmatprep.mubr.f32.mxu0 0.0
        %v2530 = vand.u32 %v1767, 4294901760
        %v2531 = vsub.f32 %v1767, %v2530
        %v2532 = vand.u32 %v2531, 4294901760
        %2533 = vmatmul.mubr.f32.gmra.mrb[0].mxu0 %v2532
        %v2534 = vpop.f32.mrb[0].mxu0
        %v2535 = vadd.f32 %v2341, %v2534
        %v2536 = vpop.f32.mrb[0].mxu0
        %2537 = vmatprep.mubr.f32.mxu0 0.0
        %v2538 = vand.u32 %v1770, 4294901760
        %v2539 = vsub.f32 %v1770, %v2538
        %v2540 = vand.u32 %v2539, 4294901760
        %2541 = vmatmul.mubr.f32.gmra.mrb[0].mxu0 %v2540
        %v2542 = vpop.f32.mrb[0].mxu0
        %v2543 = vadd.f32 %v2348, %v2542
        %v2544 = vpop.f32.mrb[0].mxu0
        %2545 = vdwg.mxu0
        %2546 = vmatprep.subr.mxu0 0.0
        %v2547 = vand.u32 %v335, 4294901760
        %v2548 = vsub.f32 %v335, %v2547
        %v2549 = vand.u32 %v2548, 4294901760
        %2550 = vmatpush1.msra.mxu0 %v2549
        %2551 = vmatprep.subr.mxu0 0.0
        %v2552 = vand.u32 %v336, 4294901760
        %v2553 = vsub.f32 %v336, %v2552
        %v2554 = vand.u32 %v2553, 4294901760
        %2555 = vmatpush1.msra.mxu0 %v2554
        %2556 = vmatprep.subr.mxu0 0.0
        %2557 = vmatpush1.msra.mxu0 0.0
        %2558 = vmatprep.subr.mxu0 0.0
        %2559 = vmatpush1.msra.mxu0 0.0
        %2560 = vmatprep.subr.mxu0 0.0
        %2561 = vmatpush1.msra.mxu0 0.0
        %2562 = vmatprep.subr.mxu0 0.0
        %2563 = vmatpush1.msra.mxu0 0.0
        %2564 = vmatprep.subr.mxu0 0.0
        %2565 = vmatpush1.msra.mxu0 0.0
        %2566 = vmatprep.subr.mxu0 0.0
        %2567 = vmatpush1.msra.mxu0 0.0
        %2568 = vmatprep.subr.mxu0 0.0
        %2569 = vmatpush1.msra.mxu0 0.0
        %2570 = vmatprep.subr.mxu0 0.0
        %2571 = vmatpush1.msra.mxu0 0.0
        %2572 = vmatprep.subr.mxu0 0.0
        %2573 = vmatpush1.msra.mxu0 0.0
        %2574 = vmatprep.subr.mxu0 0.0
        %2575 = vmatpush1.msra.mxu0 0.0
        %2576 = vmatprep.subr.mxu0 0.0
        %2577 = vmatpush1.msra.mxu0 0.0
        %2578 = vmatprep.subr.mxu0 0.0
        %2579 = vmatpush1.msra.mxu0 0.0
        %2580 = vmatprep.subr.mxu0 0.0
        %2581 = vmatpush1.msra.mxu0 0.0
        %2582 = vmatprep.subr.mxu0 0.0
        %2583 = vmatpush1.msra.mxu0 0.0
        %2584 = vmatprep.subr.mxu0 0.0
        %2585 = vmatpush1.msra.mxu0 0.0
        %2586 = vmatprep.subr.mxu0 0.0
        %2587 = vmatpush1.msra.mxu0 0.0
        %2588 = vmatprep.subr.mxu0 0.0
        %2589 = vmatpush1.msra.mxu0 0.0
        %2590 = vmatprep.subr.mxu0 0.0
        %2591 = vmatpush1.msra.mxu0 0.0
        %2592 = vmatprep.subr.mxu0 0.0
        %2593 = vmatpush1.msra.mxu0 0.0
        %2594 = vmatprep.subr.mxu0 0.0
        %2595 = vmatpush1.msra.mxu0 0.0
        %2596 = vmatprep.subr.mxu0 0.0
        %2597 = vmatpush1.msra.mxu0 0.0
        %2598 = vmatprep.subr.mxu0 0.0
        %2599 = vmatpush1.msra.mxu0 0.0
        %2600 = vmatprep.subr.mxu0 0.0
        %2601 = vmatpush1.msra.mxu0 0.0
        %2602 = vmatprep.subr.mxu0 0.0
        %2603 = vmatpush1.msra.mxu0 0.0
        %2604 = vmatprep.subr.mxu0 0.0
        %2605 = vmatpush1.msra.mxu0 0.0
        %2606 = vmatprep.subr.mxu0 0.0
        %2607 = vmatpush1.msra.mxu0 0.0
        %2608 = vmatprep.subr.mxu0 0.0
        %2609 = vmatpush1.msra.mxu0 0.0
        %2610 = vmatprep.subr.mxu0 0.0
        %2611 = vmatpush1.msra.mxu0 0.0
        %2612 = vmatprep.subr.mxu0 0.0
        %2613 = vmatpush1.msra.mxu0 0.0
        %2614 = vmatprep.subr.mxu0 0.0
        %2615 = vmatpush1.msra.mxu0 0.0
        %2616 = vmatprep.mubr.f32.mxu0 0.0
        %v2617 = vand.u32 %v1725, 4294901760
        %2618 = vmatmul.mubr.f32.gmra.mrb[0].mxu0 %v2617
        %v2619 = vpop.f32.mrb[0].mxu0
        %v2620 = vadd.f32 %v2423, %v2619
        %v2621 = vpop.f32.mrb[0].mxu0
        %2622 = vmatprep.mubr.f32.mxu0 0.0
        %v2623 = vand.u32 %v1728, 4294901760
        %2624 = vmatmul.mubr.f32.gmra.mrb[0].mxu0 %v2623
        %v2625 = vpop.f32.mrb[0].mxu0
        %v2626 = vadd.f32 %v2431, %v2625
        %v2627 = vpop.f32.mrb[0].mxu0
        %2628 = vmatprep.mubr.f32.mxu0 0.0
        %v2629 = vand.u32 %v1731, 4294901760
        %2630 = vmatmul.mubr.f32.gmra.mrb[0].mxu0 %v2629
        %v2631 = vpop.f32.mrb[0].mxu0
        %v2632 = vadd.f32 %v2439, %v2631
        %v2633 = vpop.f32.mrb[0].mxu0
        %2634 = vmatprep.mubr.f32.mxu0 0.0
        %v2635 = vand.u32 %v1734, 4294901760
        %2636 = vmatmul.mubr.f32.gmra.mrb[0].mxu0 %v2635
        %v2637 = vpop.f32.mrb[0].mxu0
        %v2638 = vadd.f32 %v2447, %v2637
        %v2639 = vpop.f32.mrb[0].mxu0
        %2640 = vmatprep.mubr.f32.mxu0 0.0
        %v2641 = vand.u32 %v1737, 4294901760
        %2642 = vmatmul.mubr.f32.gmra.mrb[0].mxu0 %v2641
        %v2643 = vpop.f32.mrb[0].mxu0
        %v2644 = vadd.f32 %v2455, %v2643
        %v2645 = vpop.f32.mrb[0].mxu0
        %2646 = vmatprep.mubr.f32.mxu0 0.0
        %v2647 = vand.u32 %v1740, 4294901760
        %2648 = vmatmul.mubr.f32.gmra.mrb[0].mxu0 %v2647
        %v2649 = vpop.f32.mrb[0].mxu0
        %v2650 = vadd.f32 %v2463, %v2649
        %v2651 = vpop.f32.mrb[0].mxu0
        %2652 = vmatprep.mubr.f32.mxu0 0.0
        %v2653 = vand.u32 %v1743, 4294901760
        %2654 = vmatmul.mubr.f32.gmra.mrb[0].mxu0 %v2653
        %v2655 = vpop.f32.mrb[0].mxu0
        %v2656 = vadd.f32 %v2471, %v2655
        %v2657 = vpop.f32.mrb[0].mxu0
        %2658 = vmatprep.mubr.f32.mxu0 0.0
        %v2659 = vand.u32 %v1746, 4294901760
        %2660 = vmatmul.mubr.f32.gmra.mrb[0].mxu0 %v2659
        %v2661 = vpop.f32.mrb[0].mxu0
        %v2662 = vadd.f32 %v2479, %v2661
        %v2663 = vpop.f32.mrb[0].mxu0
        %2664 = vmatprep.mubr.f32.mxu0 0.0
        %v2665 = vand.u32 %v1749, 4294901760
        %2666 = vmatmul.mubr.f32.gmra.mrb[0].mxu0 %v2665
        %v2667 = vpop.f32.mrb[0].mxu0
        %v2668 = vadd.f32 %v2487, %v2667
        %v2669 = vpop.f32.mrb[0].mxu0
        %2670 = vmatprep.mubr.f32.mxu0 0.0
        %v2671 = vand.u32 %v1752, 4294901760
        %2672 = vmatmul.mubr.f32.gmra.mrb[0].mxu0 %v2671
        %v2673 = vpop.f32.mrb[0].mxu0
        %v2674 = vadd.f32 %v2495, %v2673
        %v2675 = vpop.f32.mrb[0].mxu0
        %2676 = vmatprep.mubr.f32.mxu0 0.0
        %v2677 = vand.u32 %v1755, 4294901760
        %2678 = vmatmul.mubr.f32.gmra.mrb[0].mxu0 %v2677
        %v2679 = vpop.f32.mrb[0].mxu0
        %v2680 = vadd.f32 %v2503, %v2679
        %v2681 = vpop.f32.mrb[0].mxu0
        %2682 = vmatprep.mubr.f32.mxu0 0.0
        %v2683 = vand.u32 %v1758, 4294901760
        %2684 = vmatmul.mubr.f32.gmra.mrb[0].mxu0 %v2683
        %v2685 = vpop.f32.mrb[0].mxu0
        %v2686 = vadd.f32 %v2511, %v2685
        %v2687 = vpop.f32.mrb[0].mxu0
        %2688 = vmatprep.mubr.f32.mxu0 0.0
        %v2689 = vand.u32 %v1761, 4294901760
        %2690 = vmatmul.mubr.f32.gmra.mrb[0].mxu0 %v2689
        %v2691 = vpop.f32.mrb[0].mxu0
        %v2692 = vadd.f32 %v2519, %v2691
        %v2693 = vpop.f32.mrb[0].mxu0
        %2694 = vmatprep.mubr.f32.mxu0 0.0
        %v2695 = vand.u32 %v1764, 4294901760
        %2696 = vmatmul.mubr.f32.gmra.mrb[0].mxu0 %v2695
        %v2697 = vpop.f32.mrb[0].mxu0
        %v2698 = vadd.f32 %v2527, %v2697
        %v2699 = vpop.f32.mrb[0].mxu0
        %2700 = vmatprep.mubr.f32.mxu0 0.0
        %v2701 = vand.u32 %v1767, 4294901760
        %2702 = vmatmul.mubr.f32.gmra.mrb[0].mxu0 %v2701
        %v2703 = vpop.f32.mrb[0].mxu0
        %v2704 = vadd.f32 %v2535, %v2703
        %v2705 = vpop.f32.mrb[0].mxu0
        %2706 = vmatprep.mubr.f32.mxu0 0.0
        %v2707 = vand.u32 %v1770, 4294901760
        %2708 = vmatmul.mubr.f32.gmra.mrb[0].mxu0 %v2707
        %v2709 = vpop.f32.mrb[0].mxu0
        %v2710 = vadd.f32 %v2543, %v2709
        %v2711 = vpop.f32.mrb[0].mxu0
        %2712 = vdwg.mxu0
        %2713 = vmatprep.subr.mxu0 0.0
        %v2714 = vand.u32 %v335, 4294901760
        %2715 = vmatpush1.msra.mxu0 %v2714
        %2716 = vmatprep.subr.mxu0 0.0
        %v2717 = vand.u32 %v336, 4294901760
        %2718 = vmatpush1.msra.mxu0 %v2717
        %2719 = vmatprep.subr.mxu0 0.0
        %2720 = vmatpush1.msra.mxu0 0.0
        %2721 = vmatprep.subr.mxu0 0.0
        %2722 = vmatpush1.msra.mxu0 0.0
        %2723 = vmatprep.subr.mxu0 0.0
        %2724 = vmatpush1.msra.mxu0 0.0
        %2725 = vmatprep.subr.mxu0 0.0
        %2726 = vmatpush1.msra.mxu0 0.0
        %2727 = vmatprep.subr.mxu0 0.0
        %2728 = vmatpush1.msra.mxu0 0.0
        %2729 = vmatprep.subr.mxu0 0.0
        %2730 = vmatpush1.msra.mxu0 0.0
        %2731 = vmatprep.subr.mxu0 0.0
        %2732 = vmatpush1.msra.mxu0 0.0
        %2733 = vmatprep.subr.mxu0 0.0
        %2734 = vmatpush1.msra.mxu0 0.0
        %2735 = vmatprep.subr.mxu0 0.0
        %2736 = vmatpush1.msra.mxu0 0.0
        %2737 = vmatprep.subr.mxu0 0.0
        %2738 = vmatpush1.msra.mxu0 0.0
        %2739 = vmatprep.subr.mxu0 0.0
        %2740 = vmatpush1.msra.mxu0 0.0
        %2741 = vmatprep.subr.mxu0 0.0
        %2742 = vmatpush1.msra.mxu0 0.0
        %2743 = vmatprep.subr.mxu0 0.0
        %2744 = vmatpush1.msra.mxu0 0.0
        %2745 = vmatprep.subr.mxu0 0.0
        %2746 = vmatpush1.msra.mxu0 0.0
        %2747 = vmatprep.subr.mxu0 0.0
        %2748 = vmatpush1.msra.mxu0 0.0
        %2749 = vmatprep.subr.mxu0 0.0
        %2750 = vmatpush1.msra.mxu0 0.0
        %2751 = vmatprep.subr.mxu0 0.0
        %2752 = vmatpush1.msra.mxu0 0.0
        %2753 = vmatprep.subr.mxu0 0.0
        %2754 = vmatpush1.msra.mxu0 0.0
        %2755 = vmatprep.subr.mxu0 0.0
        %2756 = vmatpush1.msra.mxu0 0.0
        %2757 = vmatprep.subr.mxu0 0.0
        %2758 = vmatpush1.msra.mxu0 0.0
        %2759 = vmatprep.subr.mxu0 0.0
        %2760 = vmatpush1.msra.mxu0 0.0
        %2761 = vmatprep.subr.mxu0 0.0
        %2762 = vmatpush1.msra.mxu0 0.0
        %2763 = vmatprep.subr.mxu0 0.0
        %2764 = vmatpush1.msra.mxu0 0.0
        %2765 = vmatprep.subr.mxu0 0.0
        %2766 = vmatpush1.msra.mxu0 0.0
        %2767 = vmatprep.subr.mxu0 0.0
        %2768 = vmatpush1.msra.mxu0 0.0
        %2769 = vmatprep.subr.mxu0 0.0
        %2770 = vmatpush1.msra.mxu0 0.0
        %2771 = vmatprep.subr.mxu0 0.0
        %2772 = vmatpush1.msra.mxu0 0.0
        %2773 = vmatprep.subr.mxu0 0.0
        %2774 = vmatpush1.msra.mxu0 0.0
        %2775 = vmatprep.subr.mxu0 0.0
        %2776 = vmatpush1.msra.mxu0 0.0
        %2777 = vmatprep.subr.mxu0 0.0
        %2778 = vmatpush1.msra.mxu0 0.0
        %2779 = vmatprep.mubr.f32.mxu0 0.0
        %v2780 = vand.u32 %v1725, 4294901760
        %2781 = vmatmul.mubr.f32.gmra.mrb[0].mxu0 %v2780
        %v2782 = vpop.f32.mrb[0].mxu0
        %v2783 = vadd.f32 %v2620, %v2782
        %v2784 = vpop.f32.mrb[0].mxu0
        %2785 = vmatprep.mubr.f32.mxu0 0.0
        %v2786 = vand.u32 %v1728, 4294901760
        %2787 = vmatmul.mubr.f32.gmra.mrb[0].mxu0 %v2786
        %v2788 = vpop.f32.mrb[0].mxu0
        %v2789 = vadd.f32 %v2626, %v2788
        %v2790 = vpop.f32.mrb[0].mxu0
        %2791 = vmatprep.mubr.f32.mxu0 0.0
        %v2792 = vand.u32 %v1731, 4294901760
        %2793 = vmatmul.mubr.f32.gmra.mrb[0].mxu0 %v2792
        %v2794 = vpop.f32.mrb[0].mxu0
        %v2795 = vadd.f32 %v2632, %v2794
        %v2796 = vpop.f32.mrb[0].mxu0
        %2797 = vmatprep.mubr.f32.mxu0 0.0
        %v2798 = vand.u32 %v1734, 4294901760
        %2799 = vmatmul.mubr.f32.gmra.mrb[0].mxu0 %v2798
        %v2800 = vpop.f32.mrb[0].mxu0
        %v2801 = vadd.f32 %v2638, %v2800
        %v2802 = vpop.f32.mrb[0].mxu0
        %2803 = vmatprep.mubr.f32.mxu0 0.0
        %v2804 = vand.u32 %v1737, 4294901760
        %2805 = vmatmul.mubr.f32.gmra.mrb[0].mxu0 %v2804
        %v2806 = vpop.f32.mrb[0].mxu0
        %v2807 = vadd.f32 %v2644, %v2806
        %v2808 = vpop.f32.mrb[0].mxu0
        %2809 = vmatprep.mubr.f32.mxu0 0.0
        %v2810 = vand.u32 %v1740, 4294901760
        %2811 = vmatmul.mubr.f32.gmra.mrb[0].mxu0 %v2810
        %v2812 = vpop.f32.mrb[0].mxu0
        %v2813 = vadd.f32 %v2650, %v2812
        %v2814 = vpop.f32.mrb[0].mxu0
        %2815 = vmatprep.mubr.f32.mxu0 0.0
        %v2816 = vand.u32 %v1743, 4294901760
        %2817 = vmatmul.mubr.f32.gmra.mrb[0].mxu0 %v2816
        %v2818 = vpop.f32.mrb[0].mxu0
        %v2819 = vadd.f32 %v2656, %v2818
        %v2820 = vpop.f32.mrb[0].mxu0
        %2821 = vmatprep.mubr.f32.mxu0 0.0
        %v2822 = vand.u32 %v1746, 4294901760
        %2823 = vmatmul.mubr.f32.gmra.mrb[0].mxu0 %v2822
        %v2824 = vpop.f32.mrb[0].mxu0
        %v2825 = vadd.f32 %v2662, %v2824
        %v2826 = vpop.f32.mrb[0].mxu0
        %2827 = vmatprep.mubr.f32.mxu0 0.0
        %v2828 = vand.u32 %v1749, 4294901760
        %2829 = vmatmul.mubr.f32.gmra.mrb[0].mxu0 %v2828
        %v2830 = vpop.f32.mrb[0].mxu0
        %v2831 = vadd.f32 %v2668, %v2830
        %v2832 = vpop.f32.mrb[0].mxu0
        %2833 = vmatprep.mubr.f32.mxu0 0.0
        %v2834 = vand.u32 %v1752, 4294901760
        %2835 = vmatmul.mubr.f32.gmra.mrb[0].mxu0 %v2834
        %v2836 = vpop.f32.mrb[0].mxu0
        %v2837 = vadd.f32 %v2674, %v2836
        %v2838 = vpop.f32.mrb[0].mxu0
        %2839 = vmatprep.mubr.f32.mxu0 0.0
        %v2840 = vand.u32 %v1755, 4294901760
        %2841 = vmatmul.mubr.f32.gmra.mrb[0].mxu0 %v2840
        %v2842 = vpop.f32.mrb[0].mxu0
        %v2843 = vadd.f32 %v2680, %v2842
        %v2844 = vpop.f32.mrb[0].mxu0
        %2845 = vmatprep.mubr.f32.mxu0 0.0
        %v2846 = vand.u32 %v1758, 4294901760
        %2847 = vmatmul.mubr.f32.gmra.mrb[0].mxu0 %v2846
        %v2848 = vpop.f32.mrb[0].mxu0
        %v2849 = vadd.f32 %v2686, %v2848
        %v2850 = vpop.f32.mrb[0].mxu0
        %2851 = vmatprep.mubr.f32.mxu0 0.0
        %v2852 = vand.u32 %v1761, 4294901760
        %2853 = vmatmul.mubr.f32.gmra.mrb[0].mxu0 %v2852
        %v2854 = vpop.f32.mrb[0].mxu0
        %v2855 = vadd.f32 %v2692, %v2854
        %v2856 = vpop.f32.mrb[0].mxu0
        %2857 = vmatprep.mubr.f32.mxu0 0.0
        %v2858 = vand.u32 %v1764, 4294901760
        %2859 = vmatmul.mubr.f32.gmra.mrb[0].mxu0 %v2858
        %v2860 = vpop.f32.mrb[0].mxu0
        %v2861 = vadd.f32 %v2698, %v2860
        %v2862 = vpop.f32.mrb[0].mxu0
        %2863 = vmatprep.mubr.f32.mxu0 0.0
        %v2864 = vand.u32 %v1767, 4294901760
        %2865 = vmatmul.mubr.f32.gmra.mrb[0].mxu0 %v2864
        %v2866 = vpop.f32.mrb[0].mxu0
        %v2867 = vadd.f32 %v2704, %v2866
        %v2868 = vpop.f32.mrb[0].mxu0
        %2869 = vmatprep.mubr.f32.mxu0 0.0
        %v2870 = vand.u32 %v1770, 4294901760
        %2871 = vmatmul.mubr.f32.gmra.mrb[0].mxu0 %v2870
        %v2872 = vpop.f32.mrb[0].mxu0
        %v2873 = vadd.f32 %v2710, %v2872
        %v2874 = vpop.f32.mrb[0].mxu0
        %2875 = vdwg.mxu0
        %v2876 = vld [vmem:[%s320] sm:$0x1]
        %s2877 = sld [smem:[#allocation2]]
        %v2878 = vmul.f32 %v1631, %v2783
        %v2879 = vmul.f32 %v1637, %v2789
        %v2880 = vmul.f32 %v1643, %v2795
        %v2881 = vmul.f32 %v1649, %v2801
        %v2882 = vmul.f32 %v1655, %v2807
        %v2883 = vmul.f32 %v1661, %v2813
        %v2884 = vmul.f32 %v1667, %v2819
        %v2885 = vmul.f32 %v1673, %v2825
        %v2886 = vmul.f32 %v1679, %v2831
        %v2887 = vmul.f32 %v1685, %v2837
        %v2888 = vmul.f32 %v1691, %v2843
        %v2889 = vmul.f32 %v1697, %v2849
        %v2890 = vmul.f32 %v1703, %v2855
        %v2891 = vmul.f32 %v1709, %v2861
        %v2892 = vmul.f32 %v1715, %v2867
        %v2893 = vmul.f32 %v1721, %v2873
        %vm2894 = vcmask 261120
        %v2895 = vsel %vm2894, %v2878, 0.0
        %2896 = vadd.xlane.f32.xlu0 %v2895
        %v2897 = vpop.xlane.xlu0 %2896
        %v2898 = vsel %vm2894, %v2879, 0.0
        %2899 = vadd.xlane.f32.xlu0 %v2898
        %v2900 = vpop.xlane.xlu0 %2899
        %v2901 = vsel %vm2894, %v2880, 0.0
        %2902 = vadd.xlane.f32.xlu0 %v2901
        %v2903 = vpop.xlane.xlu0 %2902
        %v2904 = vsel %vm2894, %v2881, 0.0
        %2905 = vadd.xlane.f32.xlu0 %v2904
        %v2906 = vpop.xlane.xlu0 %2905
        %v2907 = vsel %vm2894, %v2882, 0.0
        %2908 = vadd.xlane.f32.xlu0 %v2907
        %v2909 = vpop.xlane.xlu0 %2908
        %v2910 = vsel %vm2894, %v2883, 0.0
        %2911 = vadd.xlane.f32.xlu0 %v2910
        %v2912 = vpop.xlane.xlu0 %2911
        %v2913 = vsel %vm2894, %v2884, 0.0
        %2914 = vadd.xlane.f32.xlu0 %v2913
        %v2915 = vpop.xlane.xlu0 %2914
        %v2916 = vsel %vm2894, %v2885, 0.0
        %2917 = vadd.xlane.f32.xlu0 %v2916
        %v2918 = vpop.xlane.xlu0 %2917
        %v2919 = vsel %vm2894, %v2886, 0.0
        %2920 = vadd.xlane.f32.xlu0 %v2919
        %v2921 = vpop.xlane.xlu0 %2920
        %v2922 = vsel %vm2894, %v2887, 0.0
        %2923 = vadd.xlane.f32.xlu0 %v2922
        %v2924 = vpop.xlane.xlu0 %2923
        %v2925 = vsel %vm2894, %v2888, 0.0
        %2926 = vadd.xlane.f32.xlu0 %v2925
        %v2927 = vpop.xlane.xlu0 %2926
        %v2928 = vsel %vm2894, %v2889, 0.0
        %2929 = vadd.xlane.f32.xlu0 %v2928
        %v2930 = vpop.xlane.xlu0 %2929
        %v2931 = vsel %vm2894, %v2890, 0.0
        %2932 = vadd.xlane.f32.xlu0 %v2931
        %v2933 = vpop.xlane.xlu0 %2932
        %v2934 = vsel %vm2894, %v2891, 0.0
        %2935 = vadd.xlane.f32.xlu0 %v2934
        %v2936 = vpop.xlane.xlu0 %2935
        %v2937 = vsel %vm2894, %v2892, 0.0
        %2938 = vadd.xlane.f32.xlu0 %v2937
        %v2939 = vpop.xlane.xlu0 %2938
        %v2940 = vsel %vm2894, %v2893, 0.0
        %2941 = vadd.xlane.f32.xlu0 %v2940
        %v2942 = vpop.xlane.xlu0 %2941
        %v2943 = vmul.f32 %v1631, %v1631
        %v2944 = vmul.f32 %v1637, %v1637
        %v2945 = vmul.f32 %v1643, %v1643
        %v2946 = vmul.f32 %v1649, %v1649
        %v2947 = vmul.f32 %v1655, %v1655
        %v2948 = vmul.f32 %v1661, %v1661
        %v2949 = vmul.f32 %v1667, %v1667
        %v2950 = vmul.f32 %v1673, %v1673
        %v2951 = vmul.f32 %v1679, %v1679
        %v2952 = vmul.f32 %v1685, %v1685
        %v2953 = vmul.f32 %v1691, %v1691
        %v2954 = vmul.f32 %v1697, %v1697
        %v2955 = vmul.f32 %v1703, %v1703
        %v2956 = vmul.f32 %v1709, %v1709
        %v2957 = vmul.f32 %v1715, %v1715
        %v2958 = vmul.f32 %v1721, %v1721
        %v2959 = vsel %vm2894, %v2943, 0.0
        %2960 = vadd.xlane.f32.xlu0 %v2959
        %v2961 = vpop.xlane.xlu0 %2960
        %v2962 = vsel %vm2894, %v2944, 0.0
        %2963 = vadd.xlane.f32.xlu0 %v2962
        %v2964 = vpop.xlane.xlu0 %2963
        %v2965 = vsel %vm2894, %v2945, 0.0
        %2966 = vadd.xlane.f32.xlu0 %v2965
        %v2967 = vpop.xlane.xlu0 %2966
        %v2968 = vsel %vm2894, %v2946, 0.0
        %2969 = vadd.xlane.f32.xlu0 %v2968
        %v2970 = vpop.xlane.xlu0 %2969
        %v2971 = vsel %vm2894, %v2947, 0.0
        %2972 = vadd.xlane.f32.xlu0 %v2971
        %v2973 = vpop.xlane.xlu0 %2972
        %v2974 = vsel %vm2894, %v2948, 0.0
        %2975 = vadd.xlane.f32.xlu0 %v2974
        %v2976 = vpop.xlane.xlu0 %2975
        %v2977 = vsel %vm2894, %v2949, 0.0
        %2978 = vadd.xlane.f32.xlu0 %v2977
        %v2979 = vpop.xlane.xlu0 %2978
        %v2980 = vsel %vm2894, %v2950, 0.0
        %2981 = vadd.xlane.f32.xlu0 %v2980
        %v2982 = vpop.xlane.xlu0 %2981
        %v2983 = vsel %vm2894, %v2951, 0.0
        %2984 = vadd.xlane.f32.xlu0 %v2983
        %v2985 = vpop.xlane.xlu0 %2984
        %v2986 = vsel %vm2894, %v2952, 0.0
        %2987 = vadd.xlane.f32.xlu0 %v2986
        %v2988 = vpop.xlane.xlu0 %2987
        %v2989 = vsel %vm2894, %v2953, 0.0
        %2990 = vadd.xlane.f32.xlu0 %v2989
        %v2991 = vpop.xlane.xlu0 %2990
        %v2992 = vsel %vm2894, %v2954, 0.0
        %2993 = vadd.xlane.f32.xlu0 %v2992
        %v2994 = vpop.xlane.xlu0 %2993
        %v2995 = vsel %vm2894, %v2955, 0.0
        %2996 = vadd.xlane.f32.xlu0 %v2995
        %v2997 = vpop.xlane.xlu0 %2996
        %v2998 = vsel %vm2894, %v2956, 0.0
        %2999 = vadd.xlane.f32.xlu0 %v2998
        %v3000 = vpop.xlane.xlu0 %2999
        %v3001 = vsel %vm2894, %v2957, 0.0
        %3002 = vadd.xlane.f32.xlu0 %v3001
        %v3003 = vpop.xlane.xlu0 %3002
        %v3004 = vsel %vm2894, %v2958, 0.0
        %3005 = vadd.xlane.f32.xlu0 %v3004
        %v3006 = vpop.xlane.xlu0 %3005
        %v3007 = vmul.f32 %v2783, %v2783
        %v3008 = vmul.f32 %v2789, %v2789
        %v3009 = vmul.f32 %v2795, %v2795
        %v3010 = vmul.f32 %v2801, %v2801
        %v3011 = vmul.f32 %v2807, %v2807
        %v3012 = vmul.f32 %v2813, %v2813
        %v3013 = vmul.f32 %v2819, %v2819
        %v3014 = vmul.f32 %v2825, %v2825
        %v3015 = vmul.f32 %v2831, %v2831
        %v3016 = vmul.f32 %v2837, %v2837
        %v3017 = vmul.f32 %v2843, %v2843
        %v3018 = vmul.f32 %v2849, %v2849
        %v3019 = vmul.f32 %v2855, %v2855
        %v3020 = vmul.f32 %v2861, %v2861
        %v3021 = vmul.f32 %v2867, %v2867
        %v3022 = vmul.f32 %v2873, %v2873
        %v3023 = vsel %vm2894, %v3007, 0.0
        %3024 = vadd.xlane.f32.xlu0 %v3023
        %v3025 = vpop.xlane.xlu0 %3024
        %v3026 = vsel %vm2894, %v3008, 0.0
        %3027 = vadd.xlane.f32.xlu0 %v3026
        %v3028 = vpop.xlane.xlu0 %3027
        %v3029 = vsel %vm2894, %v3009, 0.0
        %3030 = vadd.xlane.f32.xlu0 %v3029
        %v3031 = vpop.xlane.xlu0 %3030
        %v3032 = vsel %vm2894, %v3010, 0.0
        %3033 = vadd.xlane.f32.xlu0 %v3032
        %v3034 = vpop.xlane.xlu0 %3033
        %v3035 = vsel %vm2894, %v3011, 0.0
        %3036 = vadd.xlane.f32.xlu0 %v3035
        %v3037 = vpop.xlane.xlu0 %3036
        %v3038 = vsel %vm2894, %v3012, 0.0
        %3039 = vadd.xlane.f32.xlu0 %v3038
        %v3040 = vpop.xlane.xlu0 %3039
        %v3041 = vsel %vm2894, %v3013, 0.0
        %3042 = vadd.xlane.f32.xlu0 %v3041
        %v3043 = vpop.xlane.xlu0 %3042
        %v3044 = vsel %vm2894, %v3014, 0.0
        %3045 = vadd.xlane.f32.xlu0 %v3044
        %v3046 = vpop.xlane.xlu0 %3045
        %v3047 = vsel %vm2894, %v3015, 0.0
        %3048 = vadd.xlane.f32.xlu0 %v3047
        %v3049 = vpop.xlane.xlu0 %3048
        %v3050 = vsel %vm2894, %v3016, 0.0
        %3051 = vadd.xlane.f32.xlu0 %v3050
        %v3052 = vpop.xlane.xlu0 %3051
        %v3053 = vsel %vm2894, %v3017, 0.0
        %3054 = vadd.xlane.f32.xlu0 %v3053
        %v3055 = vpop.xlane.xlu0 %3054
        %v3056 = vsel %vm2894, %v3018, 0.0
        %3057 = vadd.xlane.f32.xlu0 %v3056
        %v3058 = vpop.xlane.xlu0 %3057
        %v3059 = vsel %vm2894, %v3019, 0.0
        %3060 = vadd.xlane.f32.xlu0 %v3059
        %v3061 = vpop.xlane.xlu0 %3060
        %v3062 = vsel %vm2894, %v3020, 0.0
        %3063 = vadd.xlane.f32.xlu0 %v3062
        %v3064 = vpop.xlane.xlu0 %3063
        %v3065 = vsel %vm2894, %v3021, 0.0
        %3066 = vadd.xlane.f32.xlu0 %v3065
        %v3067 = vpop.xlane.xlu0 %3066
        %v3068 = vsel %vm2894, %v3022, 0.0
        %3069 = vadd.xlane.f32.xlu0 %v3068
        %v3070 = vpop.xlane.xlu0 %3069
        %v3071 = vmul.f32 %v2961, %v3025
        %v3072 = vmul.f32 %v2964, %v3028
        %v3073 = vmul.f32 %v2967, %v3031
        %v3074 = vmul.f32 %v2970, %v3034
        %v3075 = vmul.f32 %v2973, %v3037
        %v3076 = vmul.f32 %v2976, %v3040
        %v3077 = vmul.f32 %v2979, %v3043
        %v3078 = vmul.f32 %v2982, %v3046
        %v3079 = vmul.f32 %v2985, %v3049
        %v3080 = vmul.f32 %v2988, %v3052
        %v3081 = vmul.f32 %v2991, %v3055
        %v3082 = vmul.f32 %v2994, %v3058
        %v3083 = vmul.f32 %v2997, %v3061
        %v3084 = vmul.f32 %v3000, %v3064
        %v3085 = vmul.f32 %v3003, %v3067
        %v3086 = vmul.f32 %v3006, %v3070
        %v3087 = vmax.f32 %v3071, 1e-16
        %v3088 = vmax.f32 %v3072, 1e-16
        %v3089 = vmax.f32 %v3073, 1e-16
        %v3090 = vmax.f32 %v3074, 1e-16
        %v3091 = vmax.f32 %v3075, 1e-16
        %v3092 = vmax.f32 %v3076, 1e-16
        %v3093 = vmax.f32 %v3077, 1e-16
        %v3094 = vmax.f32 %v3078, 1e-16
        %v3095 = vmax.f32 %v3079, 1e-16
        %v3096 = vmax.f32 %v3080, 1e-16
        %v3097 = vmax.f32 %v3081, 1e-16
        %v3098 = vmax.f32 %v3082, 1e-16
        %v3099 = vmax.f32 %v3083, 1e-16
        %v3100 = vmax.f32 %v3084, 1e-16
        %v3101 = vmax.f32 %v3085, 1e-16
        %v3102 = vmax.f32 %v3086, 1e-16
        %v3103 = vrsqrt.pop %v3087
        %v3104 = vrsqrt.pop %v3088
        %v3105 = vrsqrt.pop %v3089
        %v3106 = vrsqrt.pop %v3090
        %v3107 = vrsqrt.pop %v3091
        %v3108 = vrsqrt.pop %v3092
        %v3109 = vrsqrt.pop %v3093
        %v3110 = vrsqrt.pop %v3094
        %v3111 = vrsqrt.pop %v3095
        %v3112 = vrsqrt.pop %v3096
        %v3113 = vrsqrt.pop %v3097
        %v3114 = vrsqrt.pop %v3098
        %v3115 = vrsqrt.pop %v3099
        %v3116 = vrsqrt.pop %v3100
        %v3117 = vrsqrt.pop %v3101
        %v3118 = vrsqrt.pop %v3102
        %v3119 = vmul.f32 %v2897, %v3103
        %v3120 = vmul.f32 %v2900, %v3104
        %v3121 = vmul.f32 %v2903, %v3105
        %v3122 = vmul.f32 %v2906, %v3106
        %v3123 = vmul.f32 %v2909, %v3107
        %v3124 = vmul.f32 %v2912, %v3108
        %v3125 = vmul.f32 %v2915, %v3109
        %v3126 = vmul.f32 %v2918, %v3110
        %v3127 = vmul.f32 %v2921, %v3111
        %v3128 = vmul.f32 %v2924, %v3112
        %v3129 = vmul.f32 %v2927, %v3113
        %v3130 = vmul.f32 %v2930, %v3114
        %v3131 = vmul.f32 %v2933, %v3115
        %v3132 = vmul.f32 %v2936, %v3116
        %v3133 = vmul.f32 %v2939, %v3117
        %v3134 = vmul.f32 %v2942, %v3118
        %v3135 = vstv %s2877
        %v3136 = vsub.f32 %v3135, %v3119
        %v3137 = vsub.f32 %v3135, %v3120
        %v3138 = vsub.f32 %v3135, %v3121
        %v3139 = vsub.f32 %v3135, %v3122
        %v3140 = vsub.f32 %v3135, %v3123
        %v3141 = vsub.f32 %v3135, %v3124
        %v3142 = vsub.f32 %v3135, %v3125
        %v3143 = vsub.f32 %v3135, %v3126
        %v3144 = vsub.f32 %v3135, %v3127
        %v3145 = vsub.f32 %v3135, %v3128
        %v3146 = vsub.f32 %v3135, %v3129
        %v3147 = vsub.f32 %v3135, %v3130
        %v3148 = vsub.f32 %v3135, %v3131
        %v3149 = vsub.f32 %v3135, %v3132
        %v3150 = vsub.f32 %v3135, %v3133
        %v3151 = vsub.f32 %v3135, %v3134
        %v3152 = vmax.f32 %v3136, 0.0
        %v3153 = vmax.f32 %v3137, 0.0
        %v3154 = vmax.f32 %v3138, 0.0
        %v3155 = vmax.f32 %v3139, 0.0
        %v3156 = vmax.f32 %v3140, 0.0
        %v3157 = vmax.f32 %v3141, 0.0
        %v3158 = vmax.f32 %v3142, 0.0
        %v3159 = vmax.f32 %v3143, 0.0
        %v3160 = vmax.f32 %v3144, 0.0
        %v3161 = vmax.f32 %v3145, 0.0
        %v3162 = vmax.f32 %v3146, 0.0
        %v3163 = vmax.f32 %v3147, 0.0
        %v3164 = vmax.f32 %v3148, 0.0
        %v3165 = vmax.f32 %v3149, 0.0
        %v3166 = vmax.f32 %v3150, 0.0
        %v3167 = vmax.f32 %v3151, 0.0
        %vm3168 = vcmp.gt.f32.partialorder %v2876, 0.0
        %v3169 = vsel %vm3168, 1, 0
        %v3170 = vcvt.s32.f32 %v3169
        %3171 = vmatprep.subr.mxu0 0.0
        %v3172 = vand.u32 %v3152, 4294901760
        %3173 = vmatpush1.msra.mxu0 %v3172
        %3174 = vmatprep.subr.mxu0 0.0
        %v3175 = vand.u32 %v3153, 4294901760
        %3176 = vmatpush1.msra.mxu0 %v3175
        %3177 = vmatprep.subr.mxu0 0.0
        %v3178 = vand.u32 %v3154, 4294901760
        %3179 = vmatpush1.msra.mxu0 %v3178
        %3180 = vmatprep.subr.mxu0 0.0
        %v3181 = vand.u32 %v3155, 4294901760
        %3182 = vmatpush1.msra.mxu0 %v3181
        %3183 = vmatprep.subr.mxu0 0.0
        %v3184 = vand.u32 %v3156, 4294901760
        %3185 = vmatpush1.msra.mxu0 %v3184
        %3186 = vmatprep.subr.mxu0 0.0
        %v3187 = vand.u32 %v3157, 4294901760
        %3188 = vmatpush1.msra.mxu0 %v3187
        %3189 = vmatprep.subr.mxu0 0.0
        %v3190 = vand.u32 %v3158, 4294901760
        %3191 = vmatpush1.msra.mxu0 %v3190
        %3192 = vmatprep.subr.mxu0 0.0
        %v3193 = vand.u32 %v3159, 4294901760
        %3194 = vmatpush1.msra.mxu0 %v3193
        %3195 = vmatprep.subr.mxu0 0.0
        %v3196 = vand.u32 %v3160, 4294901760
        %3197 = vmatpush1.msra.mxu0 %v3196
        %3198 = vmatprep.subr.mxu0 0.0
        %v3199 = vand.u32 %v3161, 4294901760
        %3200 = vmatpush1.msra.mxu0 %v3199
        %3201 = vmatprep.subr.mxu0 0.0
        %v3202 = vand.u32 %v3162, 4294901760
        %3203 = vmatpush1.msra.mxu0 %v3202
        %3204 = vmatprep.subr.mxu0 0.0
        %v3205 = vand.u32 %v3163, 4294901760
        %3206 = vmatpush1.msra.mxu0 %v3205
        %3207 = vmatprep.subr.mxu0 0.0
        %v3208 = vand.u32 %v3164, 4294901760
        %3209 = vmatpush1.msra.mxu0 %v3208
        %3210 = vmatprep.subr.mxu0 0.0
        %v3211 = vand.u32 %v3165, 4294901760
        %3212 = vmatpush1.msra.mxu0 %v3211
        %3213 = vmatprep.subr.mxu0 0.0
        %v3214 = vand.u32 %v3166, 4294901760
        %3215 = vmatpush1.msra.mxu0 %v3214
        %3216 = vmatprep.subr.mxu0 0.0
        %v3217 = vand.u32 %v3167, 4294901760
        %3218 = vmatpush1.msra.mxu0 %v3217
        %3219 = vmatprep.subr.mxu0 0.0
        %3220 = vmatpush1.msra.mxu0 0.0
        %3221 = vmatprep.subr.mxu0 0.0
        %3222 = vmatpush1.msra.mxu0 0.0
        %3223 = vmatprep.subr.mxu0 0.0
        %3224 = vmatpush1.msra.mxu0 0.0
        %3225 = vmatprep.subr.mxu0 0.0
        %3226 = vmatpush1.msra.mxu0 0.0
        %3227 = vmatprep.subr.mxu0 0.0
        %3228 = vmatpush1.msra.mxu0 0.0
        %3229 = vmatprep.subr.mxu0 0.0
        %3230 = vmatpush1.msra.mxu0 0.0
        %3231 = vmatprep.subr.mxu0 0.0
        %3232 = vmatpush1.msra.mxu0 0.0
        %3233 = vmatprep.subr.mxu0 0.0
        %3234 = vmatpush1.msra.mxu0 0.0
        %3235 = vmatprep.subr.mxu0 0.0
        %3236 = vmatpush1.msra.mxu0 0.0
        %3237 = vmatprep.subr.mxu0 0.0
        %3238 = vmatpush1.msra.mxu0 0.0
        %3239 = vmatprep.subr.mxu0 0.0
        %3240 = vmatpush1.msra.mxu0 0.0
        %3241 = vmatprep.subr.mxu0 0.0
        %3242 = vmatpush1.msra.mxu0 0.0
        %3243 = vmatprep.subr.mxu0 0.0
        %3244 = vmatpush1.msra.mxu0 0.0
        %3245 = vmatprep.subr.mxu0 0.0
        %3246 = vmatpush1.msra.mxu0 0.0
        %3247 = vmatprep.subr.mxu0 0.0
        %3248 = vmatpush1.msra.mxu0 0.0
        %3249 = vmatprep.subr.mxu0 0.0
        %3250 = vmatpush1.msra.mxu0 0.0
        %3251 = vmatprep.mubr.f32.mxu0 0.0
        %v3252 = vand.u32 %v3170, 4294901760
        %v3253 = vsub.f32 %v3170, %v3252
        %v3254 = vand.u32 %v3253, 4294901760
        %v3255 = vsub.f32 %v3253, %v3254
        %v3256 = vand.u32 %v3255, 4294901760
        %3257 = vmatmul.mubr.f32.gmra.mrb[0].mxu0 %v3256
        %v3258 = vpop.f32.mrb[0].mxu0
        %v3259 = vadd.f32 0.0, %v3258
        %v3260 = vpop.f32.mrb[0].mxu0
        %3261 = vdwg.mxu0
        %3262 = vmatprep.subr.mxu0 0.0
        %v3263 = vand.u32 %v3152, 4294901760
        %v3264 = vsub.f32 %v3152, %v3263
        %v3265 = vand.u32 %v3264, 4294901760
        %v3266 = vsub.f32 %v3264, %v3265
        %v3267 = vand.u32 %v3266, 4294901760
        %3268 = vmatpush1.msra.mxu0 %v3267
        %3269 = vmatprep.subr.mxu0 0.0
        %v3270 = vand.u32 %v3153, 4294901760
        %v3271 = vsub.f32 %v3153, %v3270
        %v3272 = vand.u32 %v3271, 4294901760
        %v3273 = vsub.f32 %v3271, %v3272
        %v3274 = vand.u32 %v3273, 4294901760
        %3275 = vmatpush1.msra.mxu0 %v3274
        %3276 = vmatprep.subr.mxu0 0.0
        %v3277 = vand.u32 %v3154, 4294901760
        %v3278 = vsub.f32 %v3154, %v3277
        %v3279 = vand.u32 %v3278, 4294901760
        %v3280 = vsub.f32 %v3278, %v3279
        %v3281 = vand.u32 %v3280, 4294901760
        %3282 = vmatpush1.msra.mxu0 %v3281
        %3283 = vmatprep.subr.mxu0 0.0
        %v3284 = vand.u32 %v3155, 4294901760
        %v3285 = vsub.f32 %v3155, %v3284
        %v3286 = vand.u32 %v3285, 4294901760
        %v3287 = vsub.f32 %v3285, %v3286
        %v3288 = vand.u32 %v3287, 4294901760
        %3289 = vmatpush1.msra.mxu0 %v3288
        %3290 = vmatprep.subr.mxu0 0.0
        %v3291 = vand.u32 %v3156, 4294901760
        %v3292 = vsub.f32 %v3156, %v3291
        %v3293 = vand.u32 %v3292, 4294901760
        %v3294 = vsub.f32 %v3292, %v3293
        %v3295 = vand.u32 %v3294, 4294901760
        %3296 = vmatpush1.msra.mxu0 %v3295
        %3297 = vmatprep.subr.mxu0 0.0
        %v3298 = vand.u32 %v3157, 4294901760
        %v3299 = vsub.f32 %v3157, %v3298
        %v3300 = vand.u32 %v3299, 4294901760
        %v3301 = vsub.f32 %v3299, %v3300
        %v3302 = vand.u32 %v3301, 4294901760
        %3303 = vmatpush1.msra.mxu0 %v3302
        %3304 = vmatprep.subr.mxu0 0.0
        %v3305 = vand.u32 %v3158, 4294901760
        %v3306 = vsub.f32 %v3158, %v3305
        %v3307 = vand.u32 %v3306, 4294901760
        %v3308 = vsub.f32 %v3306, %v3307
        %v3309 = vand.u32 %v3308, 4294901760
        %3310 = vmatpush1.msra.mxu0 %v3309
        %3311 = vmatprep.subr.mxu0 0.0
        %v3312 = vand.u32 %v3159, 4294901760
        %v3313 = vsub.f32 %v3159, %v3312
        %v3314 = vand.u32 %v3313, 4294901760
        %v3315 = vsub.f32 %v3313, %v3314
        %v3316 = vand.u32 %v3315, 4294901760
        %3317 = vmatpush1.msra.mxu0 %v3316
        %3318 = vmatprep.subr.mxu0 0.0
        %v3319 = vand.u32 %v3160, 4294901760
        %v3320 = vsub.f32 %v3160, %v3319
        %v3321 = vand.u32 %v3320, 4294901760
        %v3322 = vsub.f32 %v3320, %v3321
        %v3323 = vand.u32 %v3322, 4294901760
        %3324 = vmatpush1.msra.mxu0 %v3323
        %3325 = vmatprep.subr.mxu0 0.0
        %v3326 = vand.u32 %v3161, 4294901760
        %v3327 = vsub.f32 %v3161, %v3326
        %v3328 = vand.u32 %v3327, 4294901760
        %v3329 = vsub.f32 %v3327, %v3328
        %v3330 = vand.u32 %v3329, 4294901760
        %3331 = vmatpush1.msra.mxu0 %v3330
        %3332 = vmatprep.subr.mxu0 0.0
        %v3333 = vand.u32 %v3162, 4294901760
        %v3334 = vsub.f32 %v3162, %v3333
        %v3335 = vand.u32 %v3334, 4294901760
        %v3336 = vsub.f32 %v3334, %v3335
        %v3337 = vand.u32 %v3336, 4294901760
        %3338 = vmatpush1.msra.mxu0 %v3337
        %3339 = vmatprep.subr.mxu0 0.0
        %v3340 = vand.u32 %v3163, 4294901760
        %v3341 = vsub.f32 %v3163, %v3340
        %v3342 = vand.u32 %v3341, 4294901760
        %v3343 = vsub.f32 %v3341, %v3342
        %v3344 = vand.u32 %v3343, 4294901760
        %3345 = vmatpush1.msra.mxu0 %v3344
        %3346 = vmatprep.subr.mxu0 0.0
        %v3347 = vand.u32 %v3164, 4294901760
        %v3348 = vsub.f32 %v3164, %v3347
        %v3349 = vand.u32 %v3348, 4294901760
        %v3350 = vsub.f32 %v3348, %v3349
        %v3351 = vand.u32 %v3350, 4294901760
        %3352 = vmatpush1.msra.mxu0 %v3351
        %3353 = vmatprep.subr.mxu0 0.0
        %v3354 = vand.u32 %v3165, 4294901760
        %v3355 = vsub.f32 %v3165, %v3354
        %v3356 = vand.u32 %v3355, 4294901760
        %v3357 = vsub.f32 %v3355, %v3356
        %v3358 = vand.u32 %v3357, 4294901760
        %3359 = vmatpush1.msra.mxu0 %v3358
        %3360 = vmatprep.subr.mxu0 0.0
        %v3361 = vand.u32 %v3166, 4294901760
        %v3362 = vsub.f32 %v3166, %v3361
        %v3363 = vand.u32 %v3362, 4294901760
        %v3364 = vsub.f32 %v3362, %v3363
        %v3365 = vand.u32 %v3364, 4294901760
        %3366 = vmatpush1.msra.mxu0 %v3365
        %3367 = vmatprep.subr.mxu0 0.0
        %v3368 = vand.u32 %v3167, 4294901760
        %v3369 = vsub.f32 %v3167, %v3368
        %v3370 = vand.u32 %v3369, 4294901760
        %v3371 = vsub.f32 %v3369, %v3370
        %v3372 = vand.u32 %v3371, 4294901760
        %3373 = vmatpush1.msra.mxu0 %v3372
        %3374 = vmatprep.subr.mxu0 0.0
        %3375 = vmatpush1.msra.mxu0 0.0
        %3376 = vmatprep.subr.mxu0 0.0
        %3377 = vmatpush1.msra.mxu0 0.0
        %3378 = vmatprep.subr.mxu0 0.0
        %3379 = vmatpush1.msra.mxu0 0.0
        %3380 = vmatprep.subr.mxu0 0.0
        %3381 = vmatpush1.msra.mxu0 0.0
        %3382 = vmatprep.subr.mxu0 0.0
        %3383 = vmatpush1.msra.mxu0 0.0
        %3384 = vmatprep.subr.mxu0 0.0
        %3385 = vmatpush1.msra.mxu0 0.0
        %3386 = vmatprep.subr.mxu0 0.0
        %3387 = vmatpush1.msra.mxu0 0.0
        %3388 = vmatprep.subr.mxu0 0.0
        %3389 = vmatpush1.msra.mxu0 0.0
        %3390 = vmatprep.subr.mxu0 0.0
        %3391 = vmatpush1.msra.mxu0 0.0
        %3392 = vmatprep.subr.mxu0 0.0
        %3393 = vmatpush1.msra.mxu0 0.0
        %3394 = vmatprep.subr.mxu0 0.0
        %3395 = vmatpush1.msra.mxu0 0.0
        %3396 = vmatprep.subr.mxu0 0.0
        %3397 = vmatpush1.msra.mxu0 0.0
        %3398 = vmatprep.subr.mxu0 0.0
        %3399 = vmatpush1.msra.mxu0 0.0
        %3400 = vmatprep.subr.mxu0 0.0
        %3401 = vmatpush1.msra.mxu0 0.0
        %3402 = vmatprep.subr.mxu0 0.0
        %3403 = vmatpush1.msra.mxu0 0.0
        %3404 = vmatprep.subr.mxu0 0.0
        %3405 = vmatpush1.msra.mxu0 0.0
        %3406 = vmatprep.mubr.f32.mxu0 0.0
        %v3407 = vand.u32 %v3170, 4294901760
        %3408 = vmatmul.mubr.f32.gmra.mrb[0].mxu0 %v3407
        %v3409 = vpop.f32.mrb[0].mxu0
        %v3410 = vadd.f32 %v3259, %v3409
        %v3411 = vpop.f32.mrb[0].mxu0
        %3412 = vdwg.mxu0
        %3413 = vmatprep.subr.mxu0 0.0
        %v3414 = vand.u32 %v3152, 4294901760
        %v3415 = vsub.f32 %v3152, %v3414
        %3416 = vmatpush1.msra.mxu0 %v3415
        %3417 = vmatprep.subr.mxu0 0.0
        %v3418 = vand.u32 %v3153, 4294901760
        %v3419 = vsub.f32 %v3153, %v3418
        %3420 = vmatpush1.msra.mxu0 %v3419
        %3421 = vmatprep.subr.mxu0 0.0
        %v3422 = vand.u32 %v3154, 4294901760
        %v3423 = vsub.f32 %v3154, %v3422
        %3424 = vmatpush1.msra.mxu0 %v3423
        %3425 = vmatprep.subr.mxu0 0.0
        %v3426 = vand.u32 %v3155, 4294901760
        %v3427 = vsub.f32 %v3155, %v3426
        %3428 = vmatpush1.msra.mxu0 %v3427
        %3429 = vmatprep.subr.mxu0 0.0
        %v3430 = vand.u32 %v3156, 4294901760
        %v3431 = vsub.f32 %v3156, %v3430
        %3432 = vmatpush1.msra.mxu0 %v3431
        %3433 = vmatprep.subr.mxu0 0.0
        %v3434 = vand.u32 %v3157, 4294901760
        %v3435 = vsub.f32 %v3157, %v3434
        %3436 = vmatpush1.msra.mxu0 %v3435
        %3437 = vmatprep.subr.mxu0 0.0
        %v3438 = vand.u32 %v3158, 4294901760
        %v3439 = vsub.f32 %v3158, %v3438
        %3440 = vmatpush1.msra.mxu0 %v3439
        %3441 = vmatprep.subr.mxu0 0.0
        %v3442 = vand.u32 %v3159, 4294901760
        %v3443 = vsub.f32 %v3159, %v3442
        %3444 = vmatpush1.msra.mxu0 %v3443
        %3445 = vmatprep.subr.mxu0 0.0
        %v3446 = vand.u32 %v3160, 4294901760
        %v3447 = vsub.f32 %v3160, %v3446
        %3448 = vmatpush1.msra.mxu0 %v3447
        %3449 = vmatprep.subr.mxu0 0.0
        %v3450 = vand.u32 %v3161, 4294901760
        %v3451 = vsub.f32 %v3161, %v3450
        %3452 = vmatpush1.msra.mxu0 %v3451
        %3453 = vmatprep.subr.mxu0 0.0
        %v3454 = vand.u32 %v3162, 4294901760
        %v3455 = vsub.f32 %v3162, %v3454
        %3456 = vmatpush1.msra.mxu0 %v3455
        %3457 = vmatprep.subr.mxu0 0.0
        %v3458 = vand.u32 %v3163, 4294901760
        %v3459 = vsub.f32 %v3163, %v3458
        %3460 = vmatpush1.msra.mxu0 %v3459
        %3461 = vmatprep.subr.mxu0 0.0
        %v3462 = vand.u32 %v3164, 4294901760
        %v3463 = vsub.f32 %v3164, %v3462
        %3464 = vmatpush1.msra.mxu0 %v3463
        %3465 = vmatprep.subr.mxu0 0.0
        %v3466 = vand.u32 %v3165, 4294901760
        %v3467 = vsub.f32 %v3165, %v3466
        %3468 = vmatpush1.msra.mxu0 %v3467
        %3469 = vmatprep.subr.mxu0 0.0
        %v3470 = vand.u32 %v3166, 4294901760
        %v3471 = vsub.f32 %v3166, %v3470
        %3472 = vmatpush1.msra.mxu0 %v3471
        %3473 = vmatprep.subr.mxu0 0.0
        %v3474 = vand.u32 %v3167, 4294901760
        %v3475 = vsub.f32 %v3167, %v3474
        %3476 = vmatpush1.msra.mxu0 %v3475
        %3477 = vmatprep.subr.mxu0 0.0
        %3478 = vmatpush1.msra.mxu0 0.0
        %3479 = vmatprep.subr.mxu0 0.0
        %3480 = vmatpush1.msra.mxu0 0.0
        %3481 = vmatprep.subr.mxu0 0.0
        %3482 = vmatpush1.msra.mxu0 0.0
        %3483 = vmatprep.subr.mxu0 0.0
        %3484 = vmatpush1.msra.mxu0 0.0
        %3485 = vmatprep.subr.mxu0 0.0
        %3486 = vmatpush1.msra.mxu0 0.0
        %3487 = vmatprep.subr.mxu0 0.0
        %3488 = vmatpush1.msra.mxu0 0.0
        %3489 = vmatprep.subr.mxu0 0.0
        %3490 = vmatpush1.msra.mxu0 0.0
        %3491 = vmatprep.subr.mxu0 0.0
        %3492 = vmatpush1.msra.mxu0 0.0
        %3493 = vmatprep.subr.mxu0 0.0
        %3494 = vmatpush1.msra.mxu0 0.0
        %3495 = vmatprep.subr.mxu0 0.0
        %3496 = vmatpush1.msra.mxu0 0.0
        %3497 = vmatprep.subr.mxu0 0.0
        %3498 = vmatpush1.msra.mxu0 0.0
        %3499 = vmatprep.subr.mxu0 0.0
        %3500 = vmatpush1.msra.mxu0 0.0
        %3501 = vmatprep.subr.mxu0 0.0
        %3502 = vmatpush1.msra.mxu0 0.0
        %3503 = vmatprep.subr.mxu0 0.0
        %3504 = vmatpush1.msra.mxu0 0.0
        %3505 = vmatprep.subr.mxu0 0.0
        %3506 = vmatpush1.msra.mxu0 0.0
        %3507 = vmatprep.subr.mxu0 0.0
        %3508 = vmatpush1.msra.mxu0 0.0
        %3509 = vmatprep.mubr.f32.mxu0 0.0
        %v3510 = vand.u32 %v3170, 4294901760
        %v3511 = vsub.f32 %v3170, %v3510
        %3512 = vmatmul.mubr.f32.gmra.mrb[0].mxu0 %v3511
        %v3513 = vpop.f32.mrb[0].mxu0
        %v3514 = vadd.f32 %v3410, %v3513
        %v3515 = vpop.f32.mrb[0].mxu0
        %3516 = vdwg.mxu0
        %3517 = vmatprep.subr.mxu0 0.0
        %v3518 = vand.u32 %v3152, 4294901760
        %3519 = vmatpush1.msra.mxu0 %v3518
        %3520 = vmatprep.subr.mxu0 0.0
        %v3521 = vand.u32 %v3153, 4294901760
        %3522 = vmatpush1.msra.mxu0 %v3521
        %3523 = vmatprep.subr.mxu0 0.0
        %v3524 = vand.u32 %v3154, 4294901760
        %3525 = vmatpush1.msra.mxu0 %v3524
        %3526 = vmatprep.subr.mxu0 0.0
        %v3527 = vand.u32 %v3155, 4294901760
        %3528 = vmatpush1.msra.mxu0 %v3527
        %3529 = vmatprep.subr.mxu0 0.0
        %v3530 = vand.u32 %v3156, 4294901760
        %3531 = vmatpush1.msra.mxu0 %v3530
        %3532 = vmatprep.subr.mxu0 0.0
        %v3533 = vand.u32 %v3157, 4294901760
        %3534 = vmatpush1.msra.mxu0 %v3533
        %3535 = vmatprep.subr.mxu0 0.0
        %v3536 = vand.u32 %v3158, 4294901760
        %3537 = vmatpush1.msra.mxu0 %v3536
        %3538 = vmatprep.subr.mxu0 0.0
        %v3539 = vand.u32 %v3159, 4294901760
        %3540 = vmatpush1.msra.mxu0 %v3539
        %3541 = vmatprep.subr.mxu0 0.0
        %v3542 = vand.u32 %v3160, 4294901760
        %3543 = vmatpush1.msra.mxu0 %v3542
        %3544 = vmatprep.subr.mxu0 0.0
        %v3545 = vand.u32 %v3161, 4294901760
        %3546 = vmatpush1.msra.mxu0 %v3545
        %3547 = vmatprep.subr.mxu0 0.0
        %v3548 = vand.u32 %v3162, 4294901760
        %3549 = vmatpush1.msra.mxu0 %v3548
        %3550 = vmatprep.subr.mxu0 0.0
        %v3551 = vand.u32 %v3163, 4294901760
        %3552 = vmatpush1.msra.mxu0 %v3551
        %3553 = vmatprep.subr.mxu0 0.0
        %v3554 = vand.u32 %v3164, 4294901760
        %3555 = vmatpush1.msra.mxu0 %v3554
        %3556 = vmatprep.subr.mxu0 0.0
        %v3557 = vand.u32 %v3165, 4294901760
        %3558 = vmatpush1.msra.mxu0 %v3557
        %3559 = vmatprep.subr.mxu0 0.0
        %v3560 = vand.u32 %v3166, 4294901760
        %3561 = vmatpush1.msra.mxu0 %v3560
        %3562 = vmatprep.subr.mxu0 0.0
        %v3563 = vand.u32 %v3167, 4294901760
        %3564 = vmatpush1.msra.mxu0 %v3563
        %3565 = vmatprep.subr.mxu0 0.0
        %3566 = vmatpush1.msra.mxu0 0.0
        %3567 = vmatprep.subr.mxu0 0.0
        %3568 = vmatpush1.msra.mxu0 0.0
        %3569 = vmatprep.subr.mxu0 0.0
        %3570 = vmatpush1.msra.mxu0 0.0
        %3571 = vmatprep.subr.mxu0 0.0
        %3572 = vmatpush1.msra.mxu0 0.0
        %3573 = vmatprep.subr.mxu0 0.0
        %3574 = vmatpush1.msra.mxu0 0.0
        %3575 = vmatprep.subr.mxu0 0.0
        %3576 = vmatpush1.msra.mxu0 0.0
        %3577 = vmatprep.subr.mxu0 0.0
        %3578 = vmatpush1.msra.mxu0 0.0
        %3579 = vmatprep.subr.mxu0 0.0
        %3580 = vmatpush1.msra.mxu0 0.0
        %3581 = vmatprep.subr.mxu0 0.0
        %3582 = vmatpush1.msra.mxu0 0.0
        %3583 = vmatprep.subr.mxu0 0.0
        %3584 = vmatpush1.msra.mxu0 0.0
        %3585 = vmatprep.subr.mxu0 0.0
        %3586 = vmatpush1.msra.mxu0 0.0
        %3587 = vmatprep.subr.mxu0 0.0
        %3588 = vmatpush1.msra.mxu0 0.0
        %3589 = vmatprep.subr.mxu0 0.0
        %3590 = vmatpush1.msra.mxu0 0.0
        %3591 = vmatprep.subr.mxu0 0.0
        %3592 = vmatpush1.msra.mxu0 0.0
        %3593 = vmatprep.subr.mxu0 0.0
        %3594 = vmatpush1.msra.mxu0 0.0
        %3595 = vmatprep.subr.mxu0 0.0
        %3596 = vmatpush1.msra.mxu0 0.0
        %3597 = vmatprep.mubr.f32.mxu0 0.0
        %v3598 = vand.u32 %v3170, 4294901760
        %v3599 = vsub.f32 %v3170, %v3598
        %v3600 = vand.u32 %v3599, 4294901760
        %3601 = vmatmul.mubr.f32.gmra.mrb[0].mxu0 %v3600
        %v3602 = vpop.f32.mrb[0].mxu0
        %v3603 = vadd.f32 %v3514, %v3602
        %v3604 = vpop.f32.mrb[0].mxu0
        %3605 = vdwg.mxu0
        %3606 = vmatprep.subr.mxu0 0.0
        %v3607 = vand.u32 %v3152, 4294901760
        %v3608 = vsub.f32 %v3152, %v3607
        %v3609 = vand.u32 %v3608, 4294901760
        %3610 = vmatpush1.msra.mxu0 %v3609
        %3611 = vmatprep.subr.mxu0 0.0
        %v3612 = vand.u32 %v3153, 4294901760
        %v3613 = vsub.f32 %v3153, %v3612
        %v3614 = vand.u32 %v3613, 4294901760
        %3615 = vmatpush1.msra.mxu0 %v3614
        %3616 = vmatprep.subr.mxu0 0.0
        %v3617 = vand.u32 %v3154, 4294901760
        %v3618 = vsub.f32 %v3154, %v3617
        %v3619 = vand.u32 %v3618, 4294901760
        %3620 = vmatpush1.msra.mxu0 %v3619
        %3621 = vmatprep.subr.mxu0 0.0
        %v3622 = vand.u32 %v3155, 4294901760
        %v3623 = vsub.f32 %v3155, %v3622
        %v3624 = vand.u32 %v3623, 4294901760
        %3625 = vmatpush1.msra.mxu0 %v3624
        %3626 = vmatprep.subr.mxu0 0.0
        %v3627 = vand.u32 %v3156, 4294901760
        %v3628 = vsub.f32 %v3156, %v3627
        %v3629 = vand.u32 %v3628, 4294901760
        %3630 = vmatpush1.msra.mxu0 %v3629
        %3631 = vmatprep.subr.mxu0 0.0
        %v3632 = vand.u32 %v3157, 4294901760
        %v3633 = vsub.f32 %v3157, %v3632
        %v3634 = vand.u32 %v3633, 4294901760
        %3635 = vmatpush1.msra.mxu0 %v3634
        %3636 = vmatprep.subr.mxu0 0.0
        %v3637 = vand.u32 %v3158, 4294901760
        %v3638 = vsub.f32 %v3158, %v3637
        %v3639 = vand.u32 %v3638, 4294901760
        %3640 = vmatpush1.msra.mxu0 %v3639
        %3641 = vmatprep.subr.mxu0 0.0
        %v3642 = vand.u32 %v3159, 4294901760
        %v3643 = vsub.f32 %v3159, %v3642
        %v3644 = vand.u32 %v3643, 4294901760
        %3645 = vmatpush1.msra.mxu0 %v3644
        %3646 = vmatprep.subr.mxu0 0.0
        %v3647 = vand.u32 %v3160, 4294901760
        %v3648 = vsub.f32 %v3160, %v3647
        %v3649 = vand.u32 %v3648, 4294901760
        %3650 = vmatpush1.msra.mxu0 %v3649
        %3651 = vmatprep.subr.mxu0 0.0
        %v3652 = vand.u32 %v3161, 4294901760
        %v3653 = vsub.f32 %v3161, %v3652
        %v3654 = vand.u32 %v3653, 4294901760
        %3655 = vmatpush1.msra.mxu0 %v3654
        %3656 = vmatprep.subr.mxu0 0.0
        %v3657 = vand.u32 %v3162, 4294901760
        %v3658 = vsub.f32 %v3162, %v3657
        %v3659 = vand.u32 %v3658, 4294901760
        %3660 = vmatpush1.msra.mxu0 %v3659
        %3661 = vmatprep.subr.mxu0 0.0
        %v3662 = vand.u32 %v3163, 4294901760
        %v3663 = vsub.f32 %v3163, %v3662
        %v3664 = vand.u32 %v3663, 4294901760
        %3665 = vmatpush1.msra.mxu0 %v3664
        %3666 = vmatprep.subr.mxu0 0.0
        %v3667 = vand.u32 %v3164, 4294901760
        %v3668 = vsub.f32 %v3164, %v3667
        %v3669 = vand.u32 %v3668, 4294901760
        %3670 = vmatpush1.msra.mxu0 %v3669
        %3671 = vmatprep.subr.mxu0 0.0
        %v3672 = vand.u32 %v3165, 4294901760
        %v3673 = vsub.f32 %v3165, %v3672
        %v3674 = vand.u32 %v3673, 4294901760
        %3675 = vmatpush1.msra.mxu0 %v3674
        %3676 = vmatprep.subr.mxu0 0.0
        %v3677 = vand.u32 %v3166, 4294901760
        %v3678 = vsub.f32 %v3166, %v3677
        %v3679 = vand.u32 %v3678, 4294901760
        %3680 = vmatpush1.msra.mxu0 %v3679
        %3681 = vmatprep.subr.mxu0 0.0
        %v3682 = vand.u32 %v3167, 4294901760
        %v3683 = vsub.f32 %v3167, %v3682
        %v3684 = vand.u32 %v3683, 4294901760
        %3685 = vmatpush1.msra.mxu0 %v3684
        %3686 = vmatprep.subr.mxu0 0.0
        %3687 = vmatpush1.msra.mxu0 0.0
        %3688 = vmatprep.subr.mxu0 0.0
        %3689 = vmatpush1.msra.mxu0 0.0
        %3690 = vmatprep.subr.mxu0 0.0
        %3691 = vmatpush1.msra.mxu0 0.0
        %3692 = vmatprep.subr.mxu0 0.0
        %3693 = vmatpush1.msra.mxu0 0.0
        %3694 = vmatprep.subr.mxu0 0.0
        %3695 = vmatpush1.msra.mxu0 0.0
        %3696 = vmatprep.subr.mxu0 0.0
        %3697 = vmatpush1.msra.mxu0 0.0
        %3698 = vmatprep.subr.mxu0 0.0
        %3699 = vmatpush1.msra.mxu0 0.0
        %3700 = vmatprep.subr.mxu0 0.0
        %3701 = vmatpush1.msra.mxu0 0.0
        %3702 = vmatprep.subr.mxu0 0.0
        %3703 = vmatpush1.msra.mxu0 0.0
        %3704 = vmatprep.subr.mxu0 0.0
        %3705 = vmatpush1.msra.mxu0 0.0
        %3706 = vmatprep.subr.mxu0 0.0
        %3707 = vmatpush1.msra.mxu0 0.0
        %3708 = vmatprep.subr.mxu0 0.0
        %3709 = vmatpush1.msra.mxu0 0.0
        %3710 = vmatprep.subr.mxu0 0.0
        %3711 = vmatpush1.msra.mxu0 0.0
        %3712 = vmatprep.subr.mxu0 0.0
        %3713 = vmatpush1.msra.mxu0 0.0
        %3714 = vmatprep.subr.mxu0 0.0
        %3715 = vmatpush1.msra.mxu0 0.0
        %3716 = vmatprep.subr.mxu0 0.0
        %3717 = vmatpush1.msra.mxu0 0.0
        %3718 = vmatprep.mubr.f32.mxu0 0.0
        %v3719 = vand.u32 %v3170, 4294901760
        %3720 = vmatmul.mubr.f32.gmra.mrb[0].mxu0 %v3719
        %v3721 = vpop.f32.mrb[0].mxu0
        %v3722 = vadd.f32 %v3603, %v3721
        %v3723 = vpop.f32.mrb[0].mxu0
        %3724 = vdwg.mxu0
        %3725 = vmatprep.subr.mxu0 0.0
        %v3726 = vand.u32 %v3152, 4294901760
        %3727 = vmatpush1.msra.mxu0 %v3726
        %3728 = vmatprep.subr.mxu0 0.0
        %v3729 = vand.u32 %v3153, 4294901760
        %3730 = vmatpush1.msra.mxu0 %v3729
        %3731 = vmatprep.subr.mxu0 0.0
        %v3732 = vand.u32 %v3154, 4294901760
        %3733 = vmatpush1.msra.mxu0 %v3732
        %3734 = vmatprep.subr.mxu0 0.0
        %v3735 = vand.u32 %v3155, 4294901760
        %3736 = vmatpush1.msra.mxu0 %v3735
        %3737 = vmatprep.subr.mxu0 0.0
        %v3738 = vand.u32 %v3156, 4294901760
        %3739 = vmatpush1.msra.mxu0 %v3738
        %3740 = vmatprep.subr.mxu0 0.0
        %v3741 = vand.u32 %v3157, 4294901760
        %3742 = vmatpush1.msra.mxu0 %v3741
        %3743 = vmatprep.subr.mxu0 0.0
        %v3744 = vand.u32 %v3158, 4294901760
        %3745 = vmatpush1.msra.mxu0 %v3744
        %3746 = vmatprep.subr.mxu0 0.0
        %v3747 = vand.u32 %v3159, 4294901760
        %3748 = vmatpush1.msra.mxu0 %v3747
        %3749 = vmatprep.subr.mxu0 0.0
        %v3750 = vand.u32 %v3160, 4294901760
        %3751 = vmatpush1.msra.mxu0 %v3750
        %3752 = vmatprep.subr.mxu0 0.0
        %v3753 = vand.u32 %v3161, 4294901760
        %3754 = vmatpush1.msra.mxu0 %v3753
        %3755 = vmatprep.subr.mxu0 0.0
        %v3756 = vand.u32 %v3162, 4294901760
        %3757 = vmatpush1.msra.mxu0 %v3756
        %3758 = vmatprep.subr.mxu0 0.0
        %v3759 = vand.u32 %v3163, 4294901760
        %3760 = vmatpush1.msra.mxu0 %v3759
        %3761 = vmatprep.subr.mxu0 0.0
        %v3762 = vand.u32 %v3164, 4294901760
        %3763 = vmatpush1.msra.mxu0 %v3762
        %3764 = vmatprep.subr.mxu0 0.0
        %v3765 = vand.u32 %v3165, 4294901760
        %3766 = vmatpush1.msra.mxu0 %v3765
        %3767 = vmatprep.subr.mxu0 0.0
        %v3768 = vand.u32 %v3166, 4294901760
        %3769 = vmatpush1.msra.mxu0 %v3768
        %3770 = vmatprep.subr.mxu0 0.0
        %v3771 = vand.u32 %v3167, 4294901760
        %3772 = vmatpush1.msra.mxu0 %v3771
        %3773 = vmatprep.subr.mxu0 0.0
        %3774 = vmatpush1.msra.mxu0 0.0
        %3775 = vmatprep.subr.mxu0 0.0
        %3776 = vmatpush1.msra.mxu0 0.0
        %3777 = vmatprep.subr.mxu0 0.0
        %3778 = vmatpush1.msra.mxu0 0.0
        %3779 = vmatprep.subr.mxu0 0.0
        %3780 = vmatpush1.msra.mxu0 0.0
        %3781 = vmatprep.subr.mxu0 0.0
        %3782 = vmatpush1.msra.mxu0 0.0
        %3783 = vmatprep.subr.mxu0 0.0
        %3784 = vmatpush1.msra.mxu0 0.0
        %3785 = vmatprep.subr.mxu0 0.0
        %3786 = vmatpush1.msra.mxu0 0.0
        %3787 = vmatprep.subr.mxu0 0.0
        %3788 = vmatpush1.msra.mxu0 0.0
        %3789 = vmatprep.subr.mxu0 0.0
        %3790 = vmatpush1.msra.mxu0 0.0
        %3791 = vmatprep.subr.mxu0 0.0
        %3792 = vmatpush1.msra.mxu0 0.0
        %3793 = vmatprep.subr.mxu0 0.0
        %3794 = vmatpush1.msra.mxu0 0.0
        %3795 = vmatprep.subr.mxu0 0.0
        %3796 = vmatpush1.msra.mxu0 0.0
        %3797 = vmatprep.subr.mxu0 0.0
        %3798 = vmatpush1.msra.mxu0 0.0
        %3799 = vmatprep.subr.mxu0 0.0
        %3800 = vmatpush1.msra.mxu0 0.0
        %3801 = vmatprep.subr.mxu0 0.0
        %3802 = vmatpush1.msra.mxu0 0.0
        %3803 = vmatprep.subr.mxu0 0.0
        %3804 = vmatpush1.msra.mxu0 0.0
        %3805 = vmatprep.mubr.f32.mxu0 0.0
        %v3806 = vand.u32 %v3170, 4294901760
        %3807 = vmatmul.mubr.f32.gmra.mrb[0].mxu0 %v3806
        %v3808 = vpop.f32.mrb[0].mxu0
        %v3809 = vadd.f32 %v3722, %v3808
        %v3810 = vpop.f32.mrb[0].mxu0
        %3811 = vdwg.mxu0
        %vm3812 = vcmask 1040384
        %v3813 = vsel %vm3812, %v3170, 0.0
        %3814 = vadd.xlane.f32.xlu0 %v3813
        %v3815 = vpop.xlane.xlu0 %3814
        %v3816 = vld [vmem:[%s324] sm:$0x1]
        %v3817 = vadd.f32 %v3816, %v3809
        %vm3818 = vcmask 0
        %3819 = vst.msk [vmem:[%s324] sm:$0x1] %vm3818, %v3817
        %v3820 = vld [vmem:[%s327] sm:$0x1]
        %v3821 = vadd.f32 %v3820, %v3815
        %3822 = vst.msk [vmem:[%s327] sm:$0x1] %vm3818, %v3821
        %p3823 = scmp.lt.s32.totalorder %s24, 1
        %s3824 = scalar_select %p3823, %s24, 1
        %s3825 = scalar_lea.vmem %s5, %s3824
        %p3826 = scmp.lt.s32.totalorder %s24, 1
        %s3827 = scalar_select %p3826, %s24, 1
        %s3828 = scalar_lea.vmem %s6, %s3827
        // Predicated region
        $region49: #{tpu_custom_call.1} parent=39 // pred_check
          %p3829 = pneg %p176
        $region50: #{tpu_custom_call.1} parent=39 // pred_check_branch
          %3831 = sbr.rel (%p3829) target = $region52
        $region51: #{tpu_custom_call.1} parent=39 // pred_region
          _
        $region52: #{tpu_custom_call.1} parent=39 // pred_fallthru
          _
        // Predicated region
        $region53: #{tpu_custom_call.1} parent=39 // pred_check
          %p3832 = pneg %p202
        $region54: #{tpu_custom_call.1} parent=39 // pred_check_branch
          %3834 = sbr.rel (%p3832) target = $region56
        $region55: #{tpu_custom_call.1} parent=39 // pred_region
          _
        $region56: #{tpu_custom_call.1} parent=39 // pred_fallthru
          _
      $region40: #{tpu_custom_call.1} parent=5 // pred_fallthru
        _
      %p3835 = scmp.le.s32.totalorder 2, %s15
      // Predicated region
      $region57: #{tpu_custom_call.1} parent=5 // pred_check
        %p3836 = pneg %p3835
      $region58: #{tpu_custom_call.1} parent=5 // pred_check_branch
        %3838 = sbr.rel (%p3836) target = $region60
      $region59: #{tpu_custom_call.1} parent=5 // pred_region
        %s3839 = ssub.s32 %s15, 2
        // Predicated region
        $region61: #{tpu_custom_call.1} parent=59 // pred_check
          %p3840 = pneg %p182
        $region62: #{tpu_custom_call.1} parent=59 // pred_check_branch
          %3842 = sbr.rel (%p3840) target = $region64
        $region63: #{tpu_custom_call.1} parent=59 // pred_region
          %p3843 = scmp.lt.s32.totalorder %s26, 1
          %s3844 = scalar_select %p3843, %s26, 1
          %s3845 = scalar_lea.vmem %s5, %s3844
        $region64: #{tpu_custom_call.1} parent=59 // pred_fallthru
          _
        // Predicated region
        $region65: #{tpu_custom_call.1} parent=59 // pred_check
          %p3846 = pneg %p208
        $region66: #{tpu_custom_call.1} parent=59 // pred_check_branch
          %3848 = sbr.rel (%p3846) target = $region68
        $region67: #{tpu_custom_call.1} parent=59 // pred_region
          %p3849 = scmp.lt.s32.totalorder %s26, 1
          %s3850 = scalar_select %p3849, %s26, 1
          %s3851 = scalar_lea.vmem %s6, %s3850
        $region68: #{tpu_custom_call.1} parent=59 // pred_fallthru
          _
      $region60: #{tpu_custom_call.1} parent=5 // pred_fallthru
        _
    $region6: #{tpu_custom_call.1} parent=1 // loop_footer
      %s19 = sadd.s32 1, %s15
    $region7: #{tpu_custom_call.1} parent=1 // loop_footer_branch
      %14 = sbr.rel target = $region3
    $region8: #{tpu_custom_call.1} parent=1 // loop_exit
      _
    %3852 = vsyncpa [#allocation4], 1
    %s3853 = scalar_lea.sflag [#allocation4], 1
    %3854 = vsyncpa %s3853, 1

</llo_original>
